<compile_context>
chip_gen: v7x
topology: tpu7x:2x2x1
jax: 0.10.0
libtpu: 0.0.40
codegen_flags: <defaults>
</compile_context>

<pallas_src>
import jax
import jax.numpy as jnp
from jax import lax
from jax.experimental import pallas as pl
from jax.experimental.pallas import tpu as pltpu


# ----------------------------- Pallas kernels -----------------------------

def haar_ll_kernel(x_ref, f_ref, ml_ref):
    """Haar (J=1, mode='zero') LL analysis band, flattened pixel layout.

    x_ref : (Bblk, C, H*W)     input block, lane-dense last dim
    f_ref : (H*W, H2*W2)       0.5-weighted analysis fold matrix (resident constant)
    ml_ref: (Bblk, C, H2*W2)   LL band = 0.5 * 2x2 block sums
    """
    Bblk, C, HW = x_ref.shape
    M = f_ref.shape[1]
    x2 = x_ref[...].reshape(Bblk * C, HW)
    ll = jnp.dot(x2, f_ref[...], preferred_element_type=jnp.float32)   # one MXU call
    ml_ref[...] = ll.reshape(Bblk, C, M)


def svt_idwt_add_kernel(tau_ref, u_ref, s_ref, vt_ref, f_ref, e_ref, x_ref, o_ref):
    """Fused singular-value soft-thresholding + Haar LL synthesis + residual add.

    tau_ref: SMEM (1,)          sigmoid(thre1), precomputed in the wrapper
    u_ref  : (Bblk, C, C)       U of M = LL (wide matrices; no RX/RTX transposes)
    s_ref  : (Bblk, 1, C)       singular values (descending)
    vt_ref : (Bblk, C, H2*W2)   V^T of M
    f_ref  : (H*W, H2*W2)       analysis matrix -- LL recomputed in-kernel from x (saves HBM read)
    e_ref  : (H2*W2, H*W)       0.5-weighted synthesis / 2x2-upsample matrix
    x_ref  : (Bblk, C, H*W)     original input block (lane-dense)
    o_ref  : (Bblk, C, H*W)     out = x + IDWT_LL(SVT(LL) - LL)  (aliased with x)
    """
    Bblk, C, HW = x_ref.shape
    M = f_ref.shape[1]

    x = x_ref[...]                                           # (Bblk, C, HW)
    x2 = x.reshape(Bblk * C, HW)
    ll = jnp.dot(x2, f_ref[...], preferred_element_type=jnp.float32)   # (Bblk*C, M)

    tau_scale = tau_ref[0]                                   # sigmoid(thre1) scalar (SMEM)
    s = s_ref[...]                                           # (Bblk, 1, C)
    sp = jnp.maximum(s - tau_scale * s[:, :, 0:1], 0.0)      # relu(S - sig*sigma_max)
    us = u_ref[...] * sp                                     # (Bblk, C, C) = U @ diag(S')
    vt = vt_ref[...]                                         # (Bblk, C, M)

    # Low-rank reconstruction U S' V^T as C broadcast MACs on the VPU (C is tiny, so the
    # batched micro-matmuls would under-fill the MXU and add launch/drain bubbles).
    lr = jnp.zeros((Bblk, C, M), jnp.float32)
    for l in range(C):
        lr = lr + us[:, :, l:l + 1] * vt[:, l:l + 1, :]

    diff = lr.reshape(Bblk * C, M) - ll                      # LL-band correction (pre 0.5)
    up = jnp.dot(diff, e_ref[...], preferred_element_type=jnp.float32)  # (Bblk*C, HW) upsample

    # single full-block, lane-dense, unmasked store
    o_ref[...] = x + up.reshape(Bblk, C, HW)


# ----------------------------- helpers -----------------------------

def _haar_matrices(h, w, dtype=jnp.float32):
    """0.5-weighted Haar LL analysis (H*W, H2*W2) and synthesis (H2*W2, H*W) matrices."""
    hw, m = h * w, (h // 2) * (w // 2)
    p = lax.broadcasted_iota(jnp.int32, (hw, m), 0)
    q = lax.broadcasted_iota(jnp.int32, (hw, m), 1)
    pr, pc = p // w, p % w
    qa, qb = q // (w // 2), q % (w // 2)
    fold = ((pr // 2 == qa) & (pc // 2 == qb)).astype(dtype) * 0.5
    return fold, fold.T


def _vmem_capacity_bytes():
    try:
        return int(pltpu.get_tpu_info().vmem_capacity_bytes)
    except Exception:
        return 64 * 1024 * 1024          # v7x-safe fallback (v5e/v6e have 128 MiB)


def _pick_bblk(B, C, HW, M, vmem_budget_bytes):
    """Largest divisor of B whose double-buffered working set fits the VMEM budget,
    keeping >= 2 grid steps so the parallel axis can shard across v7x's 2 TensorCores."""
    per_elem = 4 * (2 * (C * C + C + C * M + 2 * C * HW)     # double-buffered U,S,Vt,x,out
                    + 3 * C * M + 3 * C * HW)                # in-kernel temporaries
    best = 1
    for cand in range(1, B + 1):
        if B % cand != 0:
            continue
        if B >= 2 and B // cand < 2:
            continue
        if cand * per_elem > vmem_budget_bytes:
            continue
        best = max(best, cand)
    return best


# ----------------------------- pallas_call wrappers -----------------------------

def haar_ll(x, f, bblk, vmem_limit):
    B, C, HW = x.shape
    M = f.shape[1]
    return pl.pallas_call(
        haar_ll_kernel,
        out_shape=jax.ShapeDtypeStruct((B, C, M), jnp.float32),
        grid=(B // bblk,),
        in_specs=[
            pl.BlockSpec((bblk, C, HW), lambda i: (i, 0, 0)),
            pl.BlockSpec((HW, M), lambda i: (0, 0)),          # resident constant (block idx fixed)
        ],
        out_specs=pl.BlockSpec((bblk, C, M), lambda i: (i, 0, 0)),
        compiler_params=pltpu.CompilerParams(
            dimension_semantics=("parallel",),
            vmem_limit_bytes=vmem_limit),
    )(x, f)


def svt_idwt_add(tau, u, s3, vt, f, e, x, bblk, vmem_limit):
    B, C, HW = x.shape
    M = f.shape[1]
    return pl.pallas_call(
        svt_idwt_add_kernel,
        out_shape=jax.ShapeDtypeStruct((B, C, HW), jnp.float32),
        grid=(B // bblk,),
        in_specs=[
            pl.BlockSpec(memory_space=pltpu.MemorySpace.SMEM),    # sigmoid(thre1) scalar
            pl.BlockSpec((bblk, C, C), lambda i: (i, 0, 0)),      # U
            pl.BlockSpec((bblk, 1, C), lambda i: (i, 0, 0)),      # S
            pl.BlockSpec((bblk, C, M), lambda i: (i, 0, 0)),      # V^T
            pl.BlockSpec((HW, M), lambda i: (0, 0)),              # analysis matrix (resident)
            pl.BlockSpec((M, HW), lambda i: (0, 0)),              # synthesis matrix (resident)
            pl.BlockSpec((bblk, C, HW), lambda i: (i, 0, 0)),     # x
        ],
        out_specs=pl.BlockSpec((bblk, C, HW), lambda i: (i, 0, 0)),
        input_output_aliases={6: 0},                              # out aliases x (pure read+add)
        compiler_params=pltpu.CompilerParams(
            dimension_semantics=("parallel",),
            vmem_limit_bytes=vmem_limit),
    )(tau, u, s3, vt, f, e, x)


# ----------------------------- forward pass -----------------------------

@jax.jit
def recover_block_forward(x5, thre1):
    """Pallas equivalent of recoverBlock.forward.  x5: (b, channel, c, h, w) float32."""
    b, ch, c, h, w = x5.shape
    assert h % 2 == 0 and w % 2 == 0, "Haar J=1 kernel assumes even spatial dims"
    B = b * ch
    hw = h * w
    m = (h // 2) * (w // 2)

    vmem_cap = _vmem_capacity_bytes()
    vmem_budget = int(vmem_cap * 0.45)                       # double-buffered working-set budget
    vmem_limit = min(int(vmem_cap * 0.75), 96 * 1024 * 1024) # raise scoped limit, leave headroom
    bblk = _pick_bblk(B, c, hw, m, vmem_budget)

    x = x5.reshape(B, c, hw)                                  # free trailing-dim collapse
    f, e = _haar_matrices(h, w)                               # constants, folded by XLA

    # DWT (Haar LL band) -- Pallas, one matmul per block
    ml = haar_ll(x, f, bblk, vmem_limit)                      # (B, c, m)

    # TODO(synk): svdv2_1.apply (custom SVD autograd fn) has no Pallas equivalent; computed with
    # jnp.linalg.svd here.  The torch.save(S, ...) debug side effect is skipped.
    U, S, Vt = jnp.linalg.svd(ml, full_matrices=False)        # U:(B,c,c) S:(B,c) Vt:(B,c,m)

    tau = jax.nn.sigmoid(thre1).reshape(1).astype(jnp.float32)
    s3 = S.reshape(B, 1, c)

    # Fused SVT delta + IDWT(LL delta) + residual add -- Pallas
    out = svt_idwt_add(tau, U, s3, Vt, f, e, x, bblk, vmem_limit)   # (B, c, hw)
    return out.reshape(b, ch, c, h, w)


# ----------------------------- pure-JAX reference -----------------------------

def reference_forward(x5, thre1):
    b, ch, c, h, w = x5.shape
    h2, w2 = h // 2, w // 2
    xr = x5.reshape(b, ch, c, h2, 2, w2, 2)
    ml = 0.5 * (xr[:, :, :, :, 0, :, 0] + xr[:, :, :, :, 0, :, 1]
                + xr[:, :, :, :, 1, :, 0] + xr[:, :, :, :, 1, :, 1])   # (b,ch,c,h2,w2)
    X = ml.reshape(b, ch, c, h2 * w2).transpose(0, 1, 3, 2)            # (b,ch,m,c)
    U, S, Vt = jnp.linalg.svd(X, full_matrices=False)
    tau = jax.nn.sigmoid(thre1)[0] * S[..., 0:1]
    Sp = jnp.maximum(S - tau, 0.0)
    lrX = jnp.einsum('...mk,...k,...kc->...mc', U, Sp, Vt)
    lr_ml = lrX.transpose(0, 1, 3, 2).reshape(b, ch, c, h2, w2)
    delta = 0.5 * (lr_ml - ml)
    up = jnp.repeat(jnp.repeat(delta, 2, axis=-2), 2, axis=-1)
    return x5 + up


if __name__ == "__main__":
    key = jax.random.PRNGKey(0)
    b, channel, c, h, w = 2, 2, 8, 16, 16
    x = jax.random.normal(key, (b, channel, c, h, w), dtype=jnp.float32)
    # nn.Parameter(torch.zeros(1)) -> deterministic zero-initialized threshold parameter.
    thre1 = jnp.zeros((1,), dtype=jnp.float32)

    out = recover_block_forward(x, thre1)
    out = jax.block_until_ready(out)
    assert out.shape == x.shape and out.dtype == jnp.float32

    ref = reference_forward(x, thre1)
    max_err = float(jnp.max(jnp.abs(out - ref)))
    assert max_err < 1e-3, f"mismatch vs pure-JAX reference: {max_err}"
    print("KERNEL_OK")
</pallas_src>

<mosaic_0001>
module attributes {stable_mosaic.version = 11 : i64} {
  func.func @haar_ll_kernel(%arg0: i32, %arg1: memref<2x8x256xf32, #tpu.memory_space<vmem>>, %arg2: memref<256x64xf32, #tpu.memory_space<vmem>>, %arg3: memref<2x8x64xf32, #tpu.memory_space<vmem>>) attributes {dimension_semantics = [#tpu.dimension_semantics<parallel>], iteration_bounds = array<i64: 2>, scalar_prefetch = 0 : i64, scratch_operands = 0 : i64, tpu.core_type = #tpu.core_type<tc>, window_params = [{transform_indices = @transform_0, window_bounds = array<i64: 2, 8, 256>}, {pipeline_mode = #tpu.pipeline_mode<synchronous>, transform_indices = @transform_1, window_bounds = array<i64: 256, 64>}, {transform_indices = @transform_2, window_bounds = array<i64: 2, 8, 64>}]} {
    %c0 = arith.constant 0 : index
    %c0_0 = arith.constant 0 : index
    %c0_1 = arith.constant 0 : index
    %0 = vector.load %arg1[%c0, %c0_0, %c0_1] : memref<2x8x256xf32, #tpu.memory_space<vmem>>, vector<2x8x256xf32>
    %1 = vector.shape_cast %0 : vector<2x8x256xf32> to vector<16x256xf32>
    %c0_2 = arith.constant 0 : index
    %c0_3 = arith.constant 0 : index
    %2 = vector.load %arg2[%c0_2, %c0_3] : memref<256x64xf32, #tpu.memory_space<vmem>>, vector<256x64xf32>
    %cst = arith.constant dense<0.000000e+00> : vector<16x64xf32>
    %3 = tpu.matmul %1, %2, %cst {dimension_numbers = #tpu.dot_dimension_numbers<[1], [0], [0], [1], [0, 0, 1, 1], [], []>} : vector<16x256xf32>, vector<256x64xf32>, vector<16x64xf32> -> vector<16x64xf32>
    %4 = vector.shape_cast %3 : vector<16x64xf32> to vector<2x8x64xf32>
    %c0_4 = arith.constant 0 : index
    %c0_5 = arith.constant 0 : index
    %c0_6 = arith.constant 0 : index
    %5 = vector.load %arg3[%c0_4, %c0_5, %c0_6] : memref<2x8x64xf32, #tpu.memory_space<vmem>>, vector<2x8x64xf32>
    tpu.vector_store %arg3[%c0_4, %c0_5, %c0_6], %4 {strides = array<i32>} : memref<2x8x64xf32, #tpu.memory_space<vmem>>, vector<2x8x64xf32>,
    return
  }
  func.func @transform_0(%arg0: i32) -> (i32, i32, i32) {
    %c0_i32 = arith.constant 0 : i32
    %c0_i32_0 = arith.constant 0 : i32
    %c0_i32_1 = arith.constant 0 : i32
    return %arg0, %c0_i32, %c0_i32_0 : i32, i32, i32
  }
  func.func @transform_1(%arg0: i32) -> (i32, i32) {
    %c0_i32 = arith.constant 0 : i32
    %c0_i32_0 = arith.constant 0 : i32
    %c0_i32_1 = arith.constant 0 : i32
    return %c0_i32, %c0_i32_0 : i32, i32
  }
  func.func @transform_2(%arg0: i32) -> (i32, i32, i32) {
    %c0_i32 = arith.constant 0 : i32
    %c0_i32_0 = arith.constant 0 : i32
    %c0_i32_1 = arith.constant 0 : i32
    return %arg0, %c0_i32, %c0_i32_0 : i32, i32, i32
  }
}

module attributes {stable_mosaic.version = 11 : i64} {
  func.func @svt_idwt_add_kernel(%arg0: i32, %arg1: memref<1xf32, #tpu.memory_space<smem>>, %arg2: memref<2x8x8xf32, #tpu.memory_space<vmem>>, %arg3: memref<2x1x8xf32, #tpu.memory_space<vmem>>, %arg4: memref<2x8x64xf32, #tpu.memory_space<vmem>>, %arg5: memref<256x64xf32, #tpu.memory_space<vmem>>, %arg6: memref<64x256xf32, #tpu.memory_space<vmem>>, %arg7: memref<2x8x256xf32, #tpu.memory_space<vmem>>, %arg8: memref<2x8x256xf32, #tpu.memory_space<vmem>>) attributes {dimension_semantics = [#tpu.dimension_semantics<parallel>], iteration_bounds = array<i64: 2>, scalar_prefetch = 0 : i64, scratch_operands = 0 : i64, tpu.core_type = #tpu.core_type<tc>, window_params = [{transform_indices = @transform_0, window_bounds = array<i64: 1>}, {transform_indices = @transform_1, window_bounds = array<i64: 2, 8, 8>}, {transform_indices = @transform_2, window_bounds = array<i64: 2, 1, 8>}, {transform_indices = @transform_3, window_bounds = array<i64: 2, 8, 64>}, {pipeline_mode = #tpu.pipeline_mode<synchronous>, transform_indices = @transform_4, window_bounds = array<i64: 256, 64>}, {pipeline_mode = #tpu.pipeline_mode<synchronous>, transform_indices = @transform_5, window_bounds = array<i64: 64, 256>}, {transform_indices = @transform_6, window_bounds = array<i64: 2, 8, 256>}, {transform_indices = @transform_7, window_bounds = array<i64: 2, 8, 256>}]} {
    %c0 = arith.constant 0 : index
    %c0_0 = arith.constant 0 : index
    %c0_1 = arith.constant 0 : index
    %0 = vector.load %arg7[%c0, %c0_0, %c0_1] : memref<2x8x256xf32, #tpu.memory_space<vmem>>, vector<2x8x256xf32>
    %1 = vector.shape_cast %0 : vector<2x8x256xf32> to vector<16x256xf32>
    %c0_2 = arith.constant 0 : index
    %c0_3 = arith.constant 0 : index
    %2 = vector.load %arg5[%c0_2, %c0_3] : memref<256x64xf32, #tpu.memory_space<vmem>>, vector<256x64xf32>
    %cst = arith.constant dense<0.000000e+00> : vector<16x64xf32>
    %3 = tpu.matmul %1, %2, %cst {dimension_numbers = #tpu.dot_dimension_numbers<[1], [0], [0], [1], [0, 0, 1, 1], [], []>} : vector<16x256xf32>, vector<256x64xf32>, vector<16x64xf32> -> vector<16x64xf32>
    %c0_4 = arith.constant 0 : index
    %4 = memref.load %arg1[%c0_4] : memref<1xf32, #tpu.memory_space<smem>>
    %c0_5 = arith.constant 0 : index
    %c0_6 = arith.constant 0 : index
    %c0_7 = arith.constant 0 : index
    %5 = vector.load %arg3[%c0_5, %c0_6, %c0_7] : memref<2x1x8xf32, #tpu.memory_space<vmem>>, vector<2x1x8xf32>
    %6 = vector.extract_strided_slice %5 {offsets = [0, 0, 0], sizes = [2, 1, 1], strides = [1, 1, 1]} : vector<2x1x8xf32> to vector<2x1x1xf32>
    %7 = vector.broadcast %4 : f32 to vector<2x1x1xf32>
    %8 = arith.mulf %7, %6 : vector<2x1x1xf32>
    %9 = vector.broadcast %8 : vector<2x1x1xf32> to vector<2x1x8xf32>
    %10 = arith.subf %5, %9 : vector<2x1x8xf32>
    %cst_8 = arith.constant 0.000000e+00 : f32
    %11 = vector.broadcast %cst_8 : f32 to vector<2x1x8xf32>
    %12 = arith.maximumf %10, %11 : vector<2x1x8xf32>
    %c0_9 = arith.constant 0 : index
    %c0_10 = arith.constant 0 : index
    %c0_11 = arith.constant 0 : index
    %13 = vector.load %arg2[%c0_9, %c0_10, %c0_11] : memref<2x8x8xf32, #tpu.memory_space<vmem>>, vector<2x8x8xf32>
    %14 = vector.broadcast %12 : vector<2x1x8xf32> to vector<2x8x8xf32>
    %15 = arith.mulf %13, %14 : vector<2x8x8xf32>
    %c0_12 = arith.constant 0 : index
    %c0_13 = arith.constant 0 : index
    %c0_14 = arith.constant 0 : index
    %16 = vector.load %arg4[%c0_12, %c0_13, %c0_14] : memref<2x8x64xf32, #tpu.memory_space<vmem>>, vector<2x8x64xf32>
    %cst_15 = arith.constant 0.000000e+00 : f32
    %17 = vector.broadcast %cst_15 : f32 to vector<2x8x64xf32>
    %18 = vector.extract_strided_slice %15 {offsets = [0, 0, 0], sizes = [2, 8, 1], strides = [1, 1, 1]} : vector<2x8x8xf32> to vector<2x8x1xf32>
    %19 = vector.extract_strided_slice %16 {offsets = [0, 0, 0], sizes = [2, 1, 64], strides = [1, 1, 1]} : vector<2x8x64xf32> to vector<2x1x64xf32>
    %20 = vector.broadcast %18 : vector<2x8x1xf32> to vector<2x8x64xf32>
    %21 = vector.broadcast %19 : vector<2x1x64xf32> to vector<2x8x64xf32>
    %22 = arith.mulf %20, %21 : vector<2x8x64xf32>
    %23 = arith.addf %17, %22 : vector<2x8x64xf32>
    %24 = vector.extract_strided_slice %15 {offsets = [0, 0, 1], sizes = [2, 8, 1], strides = [1, 1, 1]} : vector<2x8x8xf32> to vector<2x8x1xf32>
    %25 = vector.extract_strided_slice %16 {offsets = [0, 1, 0], sizes = [2, 1, 64], strides = [1, 1, 1]} : vector<2x8x64xf32> to vector<2x1x64xf32>
    %26 = vector.broadcast %24 : vector<2x8x1xf32> to vector<2x8x64xf32>
    %27 = vector.broadcast %25 : vector<2x1x64xf32> to vector<2x8x64xf32>
    %28 = arith.mulf %26, %27 : vector<2x8x64xf32>
    %29 = arith.addf %23, %28 : vector<2x8x64xf32>
    %30 = vector.extract_strided_slice %15 {offsets = [0, 0, 2], sizes = [2, 8, 1], strides = [1, 1, 1]} : vector<2x8x8xf32> to vector<2x8x1xf32>
    %31 = vector.extract_strided_slice %16 {offsets = [0, 2, 0], sizes = [2, 1, 64], strides = [1, 1, 1]} : vector<2x8x64xf32> to vector<2x1x64xf32>
    %32 = vector.broadcast %30 : vector<2x8x1xf32> to vector<2x8x64xf32>
    %33 = vector.broadcast %31 : vector<2x1x64xf32> to vector<2x8x64xf32>
    %34 = arith.mulf %32, %33 : vector<2x8x64xf32>
    %35 = arith.addf %29, %34 : vector<2x8x64xf32>
    %36 = vector.extract_strided_slice %15 {offsets = [0, 0, 3], sizes = [2, 8, 1], strides = [1, 1, 1]} : vector<2x8x8xf32> to vector<2x8x1xf32>
    %37 = vector.extract_strided_slice %16 {offsets = [0, 3, 0], sizes = [2, 1, 64], strides = [1, 1, 1]} : vector<2x8x64xf32> to vector<2x1x64xf32>
    %38 = vector.broadcast %36 : vector<2x8x1xf32> to vector<2x8x64xf32>
    %39 = vector.broadcast %37 : vector<2x1x64xf32> to vector<2x8x64xf32>
    %40 = arith.mulf %38, %39 : vector<2x8x64xf32>
    %41 = arith.addf %35, %40 : vector<2x8x64xf32>
    %42 = vector.extract_strided_slice %15 {offsets = [0, 0, 4], sizes = [2, 8, 1], strides = [1, 1, 1]} : vector<2x8x8xf32> to vector<2x8x1xf32>
    %43 = vector.extract_strided_slice %16 {offsets = [0, 4, 0], sizes = [2, 1, 64], strides = [1, 1, 1]} : vector<2x8x64xf32> to vector<2x1x64xf32>
    %44 = vector.broadcast %42 : vector<2x8x1xf32> to vector<2x8x64xf32>
    %45 = vector.broadcast %43 : vector<2x1x64xf32> to vector<2x8x64xf32>
    %46 = arith.mulf %44, %45 : vector<2x8x64xf32>
    %47 = arith.addf %41, %46 : vector<2x8x64xf32>
    %48 = vector.extract_strided_slice %15 {offsets = [0, 0, 5], sizes = [2, 8, 1], strides = [1, 1, 1]} : vector<2x8x8xf32> to vector<2x8x1xf32>
    %49 = vector.extract_strided_slice %16 {offsets = [0, 5, 0], sizes = [2, 1, 64], strides = [1, 1, 1]} : vector<2x8x64xf32> to vector<2x1x64xf32>
    %50 = vector.broadcast %48 : vector<2x8x1xf32> to vector<2x8x64xf32>
    %51 = vector.broadcast %49 : vector<2x1x64xf32> to vector<2x8x64xf32>
    %52 = arith.mulf %50, %51 : vector<2x8x64xf32>
    %53 = arith.addf %47, %52 : vector<2x8x64xf32>
    %54 = vector.extract_strided_slice %15 {offsets = [0, 0, 6], sizes = [2, 8, 1], strides = [1, 1, 1]} : vector<2x8x8xf32> to vector<2x8x1xf32>
    %55 = vector.extract_strided_slice %16 {offsets = [0, 6, 0], sizes = [2, 1, 64], strides = [1, 1, 1]} : vector<2x8x64xf32> to vector<2x1x64xf32>
    %56 = vector.broadcast %54 : vector<2x8x1xf32> to vector<2x8x64xf32>
    %57 = vector.broadcast %55 : vector<2x1x64xf32> to vector<2x8x64xf32>
    %58 = arith.mulf %56, %57 : vector<2x8x64xf32>
    %59 = arith.addf %53, %58 : vector<2x8x64xf32>
    %60 = vector.extract_strided_slice %15 {offsets = [0, 0, 7], sizes = [2, 8, 1], strides = [1, 1, 1]} : vector<2x8x8xf32> to vector<2x8x1xf32>
    %61 = vector.extract_strided_slice %16 {offsets = [0, 7, 0], sizes = [2, 1, 64], strides = [1, 1, 1]} : vector<2x8x64xf32> to vector<2x1x64xf32>
    %62 = vector.broadcast %60 : vector<2x8x1xf32> to vector<2x8x64xf32>
    %63 = vector.broadcast %61 : vector<2x1x64xf32> to vector<2x8x64xf32>
    %64 = arith.mulf %62, %63 : vector<2x8x64xf32>
    %65 = arith.addf %59, %64 : vector<2x8x64xf32>
    %66 = vector.shape_cast %65 : vector<2x8x64xf32> to vector<16x64xf32>
    %67 = arith.subf %66, %3 : vector<16x64xf32>
    %c0_16 = arith.constant 0 : index
    %c0_17 = arith.constant 0 : index
    %68 = vector.load %arg6[%c0_16, %c0_17] : memref<64x256xf32, #tpu.memory_space<vmem>>, vector<64x256xf32>
    %cst_18 = arith.constant dense<0.000000e+00> : vector<16x256xf32>
    %69 = tpu.matmul %67, %68, %cst_18 {dimension_numbers = #tpu.dot_dimension_numbers<[1], [0], [0], [1], [0, 0, 1, 1], [], []>} : vector<16x64xf32>, vector<64x256xf32>, vector<16x256xf32> -> vector<16x256xf32>
    %70 = vector.shape_cast %69 : vector<16x256xf32> to vector<2x8x256xf32>
    %71 = arith.addf %0, %70 : vector<2x8x256xf32>
    %c0_19 = arith.constant 0 : index
    %c0_20 = arith.constant 0 : index
    %c0_21 = arith.constant 0 : index
    %72 = vector.load %arg8[%c0_19, %c0_20, %c0_21] : memref<2x8x256xf32, #tpu.memory_space<vmem>>, vector<2x8x256xf32>
    tpu.vector_store %arg8[%c0_19, %c0_20, %c0_21], %71 {strides = array<i32>} : memref<2x8x256xf32, #tpu.memory_space<vmem>>, vector<2x8x256xf32>,
    return
  }
  func.func @transform_0(%arg0: i32) -> i32 {
    %c0_i32 = arith.constant 0 : i32
    %c0_i32_0 = arith.constant 0 : i32
    return %c0_i32 : i32
  }
  func.func @transform_1(%arg0: i32) -> (i32, i32, i32) {
    %c0_i32 = arith.constant 0 : i32
    %c0_i32_0 = arith.constant 0 : i32
    %c0_i32_1 = arith.constant 0 : i32
    return %arg0, %c0_i32, %c0_i32_0 : i32, i32, i32
  }
  func.func @transform_2(%arg0: i32) -> (i32, i32, i32) {
    %c0_i32 = arith.constant 0 : i32
    %c0_i32_0 = arith.constant 0 : i32
    %c0_i32_1 = arith.constant 0 : i32
    return %arg0, %c0_i32, %c0_i32_0 : i32, i32, i32
  }
  func.func @transform_3(%arg0: i32) -> (i32, i32, i32) {
    %c0_i32 = arith.constant 0 : i32
    %c0_i32_0 = arith.constant 0 : i32
    %c0_i32_1 = arith.constant 0 : i32
    return %arg0, %c0_i32, %c0_i32_0 : i32, i32, i32
  }
  func.func @transform_4(%arg0: i32) -> (i32, i32) {
    %c0_i32 = arith.constant 0 : i32
    %c0_i32_0 = arith.constant 0 : i32
    %c0_i32_1 = arith.constant 0 : i32
    return %c0_i32, %c0_i32_0 : i32, i32
  }
  func.func @transform_5(%arg0: i32) -> (i32, i32) {
    %c0_i32 = arith.constant 0 : i32
    %c0_i32_0 = arith.constant 0 : i32
    %c0_i32_1 = arith.constant 0 : i32
    return %c0_i32, %c0_i32_0 : i32, i32
  }
  func.func @transform_6(%arg0: i32) -> (i32, i32, i32) {
    %c0_i32 = arith.constant 0 : i32
    %c0_i32_0 = arith.constant 0 : i32
    %c0_i32_1 = arith.constant 0 : i32
    return %arg0, %c0_i32, %c0_i32_0 : i32, i32, i32
  }
  func.func @transform_7(%arg0: i32) -> (i32, i32, i32) {
    %c0_i32 = arith.constant 0 : i32
    %c0_i32_0 = arith.constant 0 : i32
    %c0_i32_1 = arith.constant 0 : i32
    return %arg0, %c0_i32, %c0_i32_0 : i32, i32, i32
  }
}

</mosaic_0001>

<llo_original>
// kernel: custom-call.31
$region0: #{custom-call.31}
  %s0 = inlined_call_operand.vmem [shape: f32[4,64,8], index: 0, kind: input, shape index: {}]
  %s1 = inlined_call_operand.vmem [shape: f32[4,64,8], index: 1, kind: output, shape index: {0}]
  %s2 = inlined_call_operand.vmem [shape: f32[4,8], index: 2, kind: output, shape index: {1}]
  %3 = xla_tuple %s1, %s2
  $region1: #{custom-call.31} parent=0
    #allocation0 [shape = 'u8[65536]{0}', space=vmem, size = 0x10000, scoped, tag = 'operand span for operand 0']
    #allocation1 [shape = 'u8[65536]{0}', space=vmem, size = 0x10000, scoped, tag = 'operand span for operand 1']
    #allocation2 [shape = 'u8[4096]{0}', space=vmem, size = 0x1000, scoped, tag = 'operand span for operand 2']
    #allocation3 [shape = 'u8[4096]{0}', space=vmem, size = 0x1000, scoped, tag = 'packed  for operand 2']
    loop: start=0, step=1, limit=6
    $region2: #{custom-call.31} parent=1 // loop_pre_header
      _
    $region3: #{custom-call.31} parent=1 // loop_header
      %s5 = sphi 0, %s9
      %p6 = scmp.ge.s32.totalorder %s5, 6
      %s12 = sphi 0, %s31
      %s13 = sphi 0, %s27
      %s14 = sphi 0, %s23
      %s15 = sphi 0, %s12
      %s16 = sphi 0, %s13
      %s17 = sphi 0, %s14
      %s18 = sphi 0, %s15
      %s19 = sphi 0, %s16
      %s20 = sphi 0, %s17
      %s46 = sphi 0, %s48
      %s49 = sphi 0, %s46
      %s50 = sphi 0, %s49
      %s66 = sphi 0, %s50
    $region4: #{custom-call.31} parent=1 // loop_header_branch
      %8 = sbr.rel (%p6) target = $region8
    $region5: #{custom-call.31} parent=1 // loop_body
      %s10 = ssub.s32 %s5, 1
      %s11 = ssub.s32 %s5, 2
      %s21 = sadd.s32 1, %s14
      %p22 = scmp.ge.s32.totalorder %s21, 1
      %s23 = scalar_select %p22, 0, %s21
      %s24 = sadd.s32 1, %s13
      %s25 = scalar_select %p22, %s24, %s13
      %p26 = scmp.ge.s32.totalorder %s25, 1
      %s27 = scalar_select %p26, 0, %s25
      %s28 = sadd.s32 1, %s12
      %s29 = scalar_select %p26, %s28, %s12
      %p30 = scmp.ge.s32.totalorder %s29, 4
      %s31 = scalar_select %p30, 0, %s29
      %p32 = scmp.lt.s32.totalorder %s12, 0
      %s33 = ssub.s32 0, %s12
      %s34 = scalar_select %p32, %s33, %s12
      %s35 = sshrl.u32 %s34, 3
      %s36 = ssub.s32 0, %s35
      %s37 = scalar_select %p32, %s36, %s35
      %p38 = scmp.lt.s32.totalorder %s31, 0
      %s39 = ssub.s32 0, %s31
      %s40 = scalar_select %p38, %s39, %s31
      %s41 = sshrl.u32 %s40, 3
      %s42 = ssub.s32 0, %s41
      %s43 = scalar_select %p38, %s42, %s41
      %s44 = ssub.s32 %s37, %s43
      %p45 = scmp.eq.s32.totalorder %s44, 0
      %s47 = sadd.s32 %s46, 1
      %s48 = scalar_select %p45, %s46, %s47
      %p51 = pneg %p45
      %p52 = scmp.eq.s32.totalorder %s5, 3
      %p53 = por %p51, %p52
      %p54 = scmp.ne.s32.totalorder %s46, %s49
      %p55 = scmp.eq.s32.totalorder %s5, 0
      %p56 = por %p54, %p55
      %p57 = scmp.ne.s32.totalorder %s46, %s49
      %p58 = scmp.eq.s32.totalorder %s10, 3
      %p59 = por %p57, %p58
      %p60 = scmp.ne.s32.totalorder %s49, %s50
      %p61 = scmp.eq.s32.totalorder %s10, 0
      %p62 = por %p60, %p61
      %p63 = scmp.ne.s32.totalorder %s49, %s50
      %p64 = scmp.eq.s32.totalorder %s11, 3
      %p65 = por %p63, %p64
      %p67 = scmp.ne.s32.totalorder %s50, %s66
      %p68 = scmp.eq.s32.totalorder %s11, 0
      %p69 = por %p67, %p68
      %p70 = scmp.le.s32.totalorder 1, %s5
      %p71 = scmp.lt.s32.totalorder %s5, 5
      %p72 = pnand %p70, %p71
      %p73 = pneg %p72
      // Predicated region
      $region9: #{custom-call.31} parent=5 // pred_check
        _
      $region10: #{custom-call.31} parent=5 // pred_check_branch
        %75 = sbr.rel (%p72) target = $region12
      $region11: #{custom-call.31} parent=5 // pred_region
        %s76 = ssub.s32 %s5, 1
      $region12: #{custom-call.31} parent=5 // pred_fallthru
        _
      %p77 = scmp.lt.s32.totalorder %s5, 4
      // Predicated region
      $region13: #{custom-call.31} parent=5 // pred_check
        %p78 = pneg %p77
      $region14: #{custom-call.31} parent=5 // pred_check_branch
        %80 = sbr.rel (%p78) target = $region16
      $region15: #{custom-call.31} parent=5 // pred_region
        %s81 = sand.u32 %s5, 1
        %s82 = sand.u32 %s5, 1
        %s83 = smul.addr %s82, 64
        %s84 = scalar_lea.vmem [#allocation0], %s83
        %s85 = smul.u32 8, %s13
        %s86 = sadd.s32 %s14, %s85
        %s87 = smul.addr %s12, 8
        %s88 = sadd.s32 %s86, %s87
        %s89 = smul.addr %s88, 8
        %s90 = scalar_lea.vmem %s0, %s89
        // Predicated region
        $region17: #{custom-call.31} parent=15 // pred_check
          _
        $region18: #{custom-call.31} parent=15 // pred_check_branch
          %92 = sbr.rel (0) target = $region20
        $region19: #{custom-call.31} parent=15 // pred_region
          // Predicated region
          $region21: #{custom-call.31} parent=19 // pred_check
            _
          $region22: #{custom-call.31} parent=19 // pred_check_branch
            %94 = sbr.rel (0) target = $region24
          $region23: #{custom-call.31} parent=19 // pred_region
            // Predicated region
            $region36: #{custom-call.31} parent=23 // pred_check
              _
            $region37: #{custom-call.31} parent=23 // pred_check_branch
              %123 = sbr.rel (0) target = $region39
            $region38: #{custom-call.31} parent=23 // pred_region
              loop: start=0, step=1, limit=1
              $region40: #{custom-call.31} parent=38 // loop_pre_header
                _
              $region41: #{custom-call.31} parent=38 // loop_header
                %s125 = sphi 0, %s129
                %p126 = scmp.ge.s32.totalorder %s125, 1
                %s130 = sphi %s90, %s90
                %s131 = sphi %s84, %s84
              $region42: #{custom-call.31} parent=38 // loop_header_branch
                %128 = sbr.rel (%p126) target = $region46
              $region43: #{custom-call.31} parent=38 // loop_body
                %v132 = vld [vmem:[%s130] sm:$0xff]
                %133 = vst [vmem:[%s131] sm:$0xff] %v132
                %v134 = vld [vmem:[%s130 + $0x8] sm:$0xff]
                %135 = vst [vmem:[%s131 + $0x8] sm:$0xff] %v134
                %v136 = vld [vmem:[%s130 + $0x10] sm:$0xff]
                %137 = vst [vmem:[%s131 + $0x10] sm:$0xff] %v136
                %v138 = vld [vmem:[%s130 + $0x18] sm:$0xff]
                %139 = vst [vmem:[%s131 + $0x18] sm:$0xff] %v138
                %v140 = vld [vmem:[%s130 + $0x20] sm:$0xff]
                %141 = vst [vmem:[%s131 + $0x20] sm:$0xff] %v140
                %v142 = vld [vmem:[%s130 + $0x28] sm:$0xff]
                %143 = vst [vmem:[%s131 + $0x28] sm:$0xff] %v142
                %v144 = vld [vmem:[%s130 + $0x30] sm:$0xff]
                %145 = vst [vmem:[%s131 + $0x30] sm:$0xff] %v144
                %v146 = vld [vmem:[%s130 + $0x38] sm:$0xff]
                %147 = vst [vmem:[%s131 + $0x38] sm:$0xff] %v146
              $region44: #{custom-call.31} parent=38 // loop_footer
                %s129 = sadd.s32 1, %s125
              $region45: #{custom-call.31} parent=38 // loop_footer_branch
                %124 = sbr.rel target = $region41
              $region46: #{custom-call.31} parent=38 // loop_exit
                _
            $region39: #{custom-call.31} parent=23 // pred_fallthru
              _
            // Predicated region
            $region47: #{custom-call.31} parent=23 // pred_check
              _
            $region48: #{custom-call.31} parent=23 // pred_check_branch
              %149 = sbr.rel target = $region50
            $region49: #{custom-call.31} parent=23 // pred_region
              _
            $region50: #{custom-call.31} parent=23 // pred_fallthru
              _
          $region24: #{custom-call.31} parent=19 // pred_fallthru
            _
          // Predicated region
          $region25: #{custom-call.31} parent=19 // pred_check
            _
          $region26: #{custom-call.31} parent=19 // pred_check_branch
            %96 = sbr.rel target = $region28
          $region27: #{custom-call.31} parent=19 // pred_region
            loop: start=0, step=1, limit=1
            $region29: #{custom-call.31} parent=27 // loop_pre_header
              _
            $region30: #{custom-call.31} parent=27 // loop_header
              %s99 = sphi 0, %s103
              %p100 = scmp.ge.s32.totalorder %s99, 1
              %s104 = sphi %s90, %s90
              %s105 = sphi %s84, %s84
            $region31: #{custom-call.31} parent=27 // loop_header_branch
              %102 = sbr.rel (%p100) target = $region35
            $region32: #{custom-call.31} parent=27 // loop_body
              %v106 = vld [vmem:[%s104] sm:$0xff]
              %107 = vst [vmem:[%s105] sm:$0xff] %v106
              %v108 = vld [vmem:[%s104 + $0x8] sm:$0xff]
              %109 = vst [vmem:[%s105 + $0x8] sm:$0xff] %v108
              %v110 = vld [vmem:[%s104 + $0x10] sm:$0xff]
              %111 = vst [vmem:[%s105 + $0x10] sm:$0xff] %v110
              %v112 = vld [vmem:[%s104 + $0x18] sm:$0xff]
              %113 = vst [vmem:[%s105 + $0x18] sm:$0xff] %v112
              %v114 = vld [vmem:[%s104 + $0x20] sm:$0xff]
              %115 = vst [vmem:[%s105 + $0x20] sm:$0xff] %v114
              %v116 = vld [vmem:[%s104 + $0x28] sm:$0xff]
              %117 = vst [vmem:[%s105 + $0x28] sm:$0xff] %v116
              %v118 = vld [vmem:[%s104 + $0x30] sm:$0xff]
              %119 = vst [vmem:[%s105 + $0x30] sm:$0xff] %v118
              %v120 = vld [vmem:[%s104 + $0x38] sm:$0xff]
              %121 = vst [vmem:[%s105 + $0x38] sm:$0xff] %v120
            $region33: #{custom-call.31} parent=27 // loop_footer
              %s103 = sadd.s32 1, %s99
            $region34: #{custom-call.31} parent=27 // loop_footer_branch
              %98 = sbr.rel target = $region30
            $region35: #{custom-call.31} parent=27 // loop_exit
              _
          $region28: #{custom-call.31} parent=19 // pred_fallthru
            _
        $region20: #{custom-call.31} parent=15 // pred_fallthru
          _
        %150 = vnop
      $region16: #{custom-call.31} parent=5 // pred_fallthru
        _
      %p151 = scmp.le.s32.totalorder 1, %s5
      %p152 = scmp.lt.s32.totalorder %s5, 5
      %p153 = pnand %p151, %p152
      %p154 = pneg %p153
      // Predicated region
      $region51: #{custom-call.31} parent=5 // pred_check
        _
      $region52: #{custom-call.31} parent=5 // pred_check_branch
        %156 = sbr.rel (%p153) target = $region54
      $region53: #{custom-call.31} parent=5 // pred_region
        #allocation4 [shape = 'f32[64,128]{1,0}', space=vmem, size = 0x8000, scoped, tag = 'scratch for Householder reflectors']
        %s157 = ssub.s32 %s5, 1
        %s158 = sand.u32 %s10, 1
        %s159 = sand.u32 %s10, 1
        %s160 = smul.addr %s159, 64
        %s161 = scalar_lea.vmem [#allocation0], %s160
        %s162 = sand.u32 %s10, 1
        %s163 = sand.u32 %s10, 1
        %s164 = smul.addr %s163, 64
        %s165 = scalar_lea.vmem [#allocation0], %s164
        %s166 = sand.u32 %s10, 1
        %s167 = sand.u32 %s10, 1
        %s168 = smul.addr %s167, 64
        %s169 = scalar_lea.vmem [#allocation1], %s168
        %p170 = pneg %p62
        %p171 = pneg %p59
        %s172 = sand.u32 %s49, 1
        %s173 = sand.u32 %s49, 1
        %s174 = smul.addr %s173, 4
        %s175 = scalar_lea.vmem [#allocation3], %s174
        %s176 = smul.u32 8, %s16
        %s177 = smul.u32 8, %s16
        %p178 = scmp.lt.s32.totalorder %s15, 0
        %s179 = ssub.s32 0, %s15
        %s180 = scalar_select %p178, %s179, %s15
        %s181 = sshrl.u32 %s180, 3
        %s182 = ssub.s32 0, %s181
        %s183 = scalar_select %p178, %s182, %s181
        %s184 = sand.u32 %s15, 7
        %s185 = scalar_lea.vmem [#allocation2], %s184
        %v186 = vld [vmem:[%s161] sm:$0xff]
        %187 = vst [vmem:[%s169] sm:$0xff] %v186
        %s188 = scalar_lea.vmem %s169, 8 [#allocation1]
        %s189 = scalar_lea.vmem %s161, 8 [#allocation0]
        %v190 = vld [vmem:[%s189] sm:$0xff]
        %191 = vst [vmem:[%s188] sm:$0xff] %v190
        %s192 = scalar_lea.vmem %s169, 16 [#allocation1]
        %s193 = scalar_lea.vmem %s161, 16 [#allocation0]
        %v194 = vld [vmem:[%s193] sm:$0xff]
        %195 = vst [vmem:[%s192] sm:$0xff] %v194
        %s196 = scalar_lea.vmem %s169, 24 [#allocation1]
        %s197 = scalar_lea.vmem %s161, 24 [#allocation0]
        %v198 = vld [vmem:[%s197] sm:$0xff]
        %199 = vst [vmem:[%s196] sm:$0xff] %v198
        %s200 = scalar_lea.vmem %s169, 32 [#allocation1]
        %s201 = scalar_lea.vmem %s161, 32 [#allocation0]
        %v202 = vld [vmem:[%s201] sm:$0xff]
        %203 = vst [vmem:[%s200] sm:$0xff] %v202
        %s204 = scalar_lea.vmem %s169, 40 [#allocation1]
        %s205 = scalar_lea.vmem %s161, 40 [#allocation0]
        %v206 = vld [vmem:[%s205] sm:$0xff]
        %207 = vst [vmem:[%s204] sm:$0xff] %v206
        %s208 = scalar_lea.vmem %s169, 48 [#allocation1]
        %s209 = scalar_lea.vmem %s161, 48 [#allocation0]
        %v210 = vld [vmem:[%s209] sm:$0xff]
        %211 = vst [vmem:[%s208] sm:$0xff] %v210
        %s212 = scalar_lea.vmem %s169, 56 [#allocation1]
        %s213 = scalar_lea.vmem %s161, 56 [#allocation0]
        %v214 = vld [vmem:[%s213] sm:$0xff]
        %215 = vst [vmem:[%s212] sm:$0xff] %v214
        %216 = vst [vmem:[%s185] sm:$0x1] 0.0
        loop: start=0, step=1, limit=8
        $region55: #{custom-call.31} parent=53 // loop_pre_header
          _
        $region56: #{custom-call.31} parent=53 // loop_header
          %s218 = sphi 0, %s222
          %p219 = scmp.ge.s32.totalorder %s218, 8
        $region57: #{custom-call.31} parent=53 // loop_header_branch
          %221 = sbr.rel (%p219) target = $region61
        $region58: #{custom-call.31} parent=53 // loop_body
          %v223 = vld [vmem:[%s169] sm:$0xff]
          %v224 = vlaneseq
          %v225 = vshrl.u32 %v224, 7
          %v227 = vstv %s218
          %vm228 = vcmp.gt.s32.totalorder %v225, %v227
          %v229 = vsel %vm228, %v223, 0.0
          %v230 = vmul.f32 %v229, %v229
          %s231 = scalar_lea.vmem %s169, 8 [#allocation1]
          %v232 = vld [vmem:[%s231] sm:$0xff]
          %v233 = vlaneseq
          %v234 = vshrl.u32 %v233, 7
          %v235 = vadd.s32 %v234, 8
          %v236 = vstv %s218
          %vm237 = vcmp.gt.s32.totalorder %v235, %v236
          %v238 = vsel %vm237, %v232, 0.0
          %v239 = vmul.f32 %v238, %v238
          %v240 = vadd.f32 %v230, %v239
          %s241 = scalar_lea.vmem %s169, 16 [#allocation1]
          %v242 = vld [vmem:[%s241] sm:$0xff]
          %v243 = vlaneseq
          %v244 = vshrl.u32 %v243, 7
          %v245 = vadd.s32 %v244, 16
          %v246 = vstv %s218
          %vm247 = vcmp.gt.s32.totalorder %v245, %v246
          %v248 = vsel %vm247, %v242, 0.0
          %v249 = vmul.f32 %v248, %v248
          %v250 = vadd.f32 %v240, %v249
          %s251 = scalar_lea.vmem %s169, 24 [#allocation1]
          %v252 = vld [vmem:[%s251] sm:$0xff]
          %v253 = vlaneseq
          %v254 = vshrl.u32 %v253, 7
          %v255 = vadd.s32 %v254, 24
          %v256 = vstv %s218
          %vm257 = vcmp.gt.s32.totalorder %v255, %v256
          %v258 = vsel %vm257, %v252, 0.0
          %v259 = vmul.f32 %v258, %v258
          %v260 = vadd.f32 %v250, %v259
          %s261 = scalar_lea.vmem %s169, 32 [#allocation1]
          %v262 = vld [vmem:[%s261] sm:$0xff]
          %v263 = vlaneseq
          %v264 = vshrl.u32 %v263, 7
          %v265 = vadd.s32 %v264, 32
          %v266 = vstv %s218
          %vm267 = vcmp.gt.s32.totalorder %v265, %v266
          %v268 = vsel %vm267, %v262, 0.0
          %v269 = vmul.f32 %v268, %v268
          %v270 = vadd.f32 %v260, %v269
          %s271 = scalar_lea.vmem %s169, 40 [#allocation1]
          %v272 = vld [vmem:[%s271] sm:$0xff]
          %v273 = vlaneseq
          %v274 = vshrl.u32 %v273, 7
          %v275 = vadd.s32 %v274, 40
          %v276 = vstv %s218
          %vm277 = vcmp.gt.s32.totalorder %v275, %v276
          %v278 = vsel %vm277, %v272, 0.0
          %v279 = vmul.f32 %v278, %v278
          %v280 = vadd.f32 %v270, %v279
          %s281 = scalar_lea.vmem %s169, 48 [#allocation1]
          %v282 = vld [vmem:[%s281] sm:$0xff]
          %v283 = vlaneseq
          %v284 = vshrl.u32 %v283, 7
          %v285 = vadd.s32 %v284, 48
          %v286 = vstv %s218
          %vm287 = vcmp.gt.s32.totalorder %v285, %v286
          %v288 = vsel %vm287, %v282, 0.0
          %v289 = vmul.f32 %v288, %v288
          %v290 = vadd.f32 %v280, %v289
          %s291 = scalar_lea.vmem %s169, 56 [#allocation1]
          %v292 = vld [vmem:[%s291] sm:$0xff]
          %v293 = vlaneseq
          %v294 = vshrl.u32 %v293, 7
          %v295 = vadd.s32 %v294, 56
          %v296 = vstv %s218
          %vm297 = vcmp.gt.s32.totalorder %v295, %v296
          %vm298 = vcmp.lt.s32.totalorder %v295, 64
          %vm299 = vmand %vm297, %vm298
          %v300 = vsel %vm299, %v292, 0.0
          %v301 = vmul.f32 %v300, %v300
          %v302 = vadd.f32 %v290, %v301
          %v303 = vrot.slane %v302, 4
          %v304 = vadd.f32 %v302, %v303
          %v305 = vrot.slane %v304, 2
          %v306 = vadd.f32 %v304, %v305
          %v307 = vrot.slane %v306, 1
          %v308 = vadd.f32 %v306, %v307
          %v309 = vrsqrt.pop %v308
          %v310 = vmul.f32 %v308, %v309
          %vm311 = vcmp.eq.f32.partialorder %v308, inf
          %v312 = vsel %vm311, %v308, %v310
          %vm313 = vcmp.eq.f32.partialorder %v308, 0.0
          %v314 = vand.u32 %v308, 2147483648
          %v315 = vsel %vm313, %v314, %v312
          %vm316 = vcmp.eq.f32.partialorder %v308, 0.0
          %s317 = sshrl.u32 %s218, 3
          %s318 = sand.u32 %s218, 7
          %s319 = smul.addr %s317, 8
          %s320 = sadd.s32 %s318, %s319
          %s321 = scalar_lea.vmem %s169, %s320 [#allocation1]
          %v322 = vld [vmem:[%s321] ss:$0 sm:$0xff]
          %v323 = vand.u32 2147483647, %v322
          %v324 = vmax.f32 %v323, 0.0
          %v325 = vand.u32 2147483647, %v315
          %v326 = vmax.f32 %v324, %v325
          %v327 = vrcp.pop %v326
          %v328 = vmul.f32 %v323, %v327
          %v329 = vmul.f32 %v328, %v328
          %v330 = vrcp.pop %v326
          %v331 = vmul.f32 0.0, %v330
          %v332 = vmul.f32 %v331, %v331
          %v333 = vadd.f32 %v329, %v332
          %v334 = vrcp.pop %v326
          %v335 = vmul.f32 %v325, %v334
          %v336 = vmul.f32 %v335, %v335
          %v337 = vadd.f32 %v333, %v336
          %vm338 = vcmp.eq.f32.partialorder %v326, 0.0
          %v339 = vrsqrt.pop %v337
          %v340 = vmul.f32 %v337, %v339
          %vm341 = vcmp.eq.f32.partialorder %v337, inf
          %v342 = vsel %vm341, %v337, %v340
          %vm343 = vcmp.eq.f32.partialorder %v337, 0.0
          %v344 = vand.u32 %v337, 2147483648
          %v345 = vsel %vm343, %v344, %v342
          %v346 = vmul.f32 %v326, %v345
          %v347 = vsel %vm338, 0.0, %v346
          %vm348 = vcmp.lt.f32.partialorder %v322, 0.0
          %v349 = vxor.u32 %v347, 2147483648
          %v350 = vsel %vm348, %v347, %v349
          %v351 = vsub.f32 %v350, %v322
          %v352 = vrcp.pop %v350
          %v353 = vmul.f32 %v351, %v352
          %v354 = vsel %vm316, %v322, %v350
          %v355 = vsel %vm316, 0.0, %v353
          %v356 = vsub.f32 %v322, %v354
          %s357 = smov %s169
          %v358 = vlaneseq
          %v359 = vshrl.u32 %v358, 7
          %v360 = vmov %v359
          %v361 = vld [vmem:[%s357] sm:$0xff]
          %v363 = vstv %s218
          %vm364 = vcmp.gt.s32.totalorder %v360, %v363
          %v365 = vsel %vm364, %v361, 0.0
          %v366 = vrcp.pop %v356
          %v367 = vmul.f32 %v365, %v366
          %v368 = vsel %vm316, 0.0, %v367
          %v369 = vstv %s218
          %v370 = vlaneseq
          %v371 = vand.u32 %v370, 127
          %vm372 = vcmp.eq.s32.totalorder %v371, %v369
          %v373 = vsel %vm372, %v368, 0.0
          %374 = vadd.xlane.f32.xlu0 %v373
          %v375 = vpop.xlane.xlu0 %374
          %376 = vst [vmem:[#allocation4] sm:$0xff] %v375
          %s377 = scalar_lea.vmem %s357, 8
          %v378 = vld [vmem:[%s377] sm:$0xff]
          %v379 = vadd.s32 %v360, 8
          %v380 = vstv %s218
          %vm381 = vcmp.gt.s32.totalorder %v379, %v380
          %v382 = vsel %vm381, %v378, 0.0
          %v383 = vrcp.pop %v356
          %v384 = vmul.f32 %v382, %v383
          %v385 = vsel %vm316, 0.0, %v384
          %v386 = vstv %s218
          %v387 = vlaneseq
          %v388 = vand.u32 %v387, 127
          %vm389 = vcmp.eq.s32.totalorder %v388, %v386
          %v390 = vsel %vm389, %v385, 0.0
          %391 = vadd.xlane.f32.xlu0 %v390
          %v392 = vpop.xlane.xlu0 %391
          %s393 = scalar_lea.vmem [#allocation4], 8
          %394 = vst [vmem:[%s393] sm:$0xff] %v392
          %s395 = scalar_lea.vmem %s357, 16
          %v396 = vld [vmem:[%s395] sm:$0xff]
          %v397 = vadd.s32 %v360, 16
          %v398 = vstv %s218
          %vm399 = vcmp.gt.s32.totalorder %v397, %v398
          %v400 = vsel %vm399, %v396, 0.0
          %v401 = vrcp.pop %v356
          %v402 = vmul.f32 %v400, %v401
          %v403 = vsel %vm316, 0.0, %v402
          %v404 = vstv %s218
          %v405 = vlaneseq
          %v406 = vand.u32 %v405, 127
          %vm407 = vcmp.eq.s32.totalorder %v406, %v404
          %v408 = vsel %vm407, %v403, 0.0
          %409 = vadd.xlane.f32.xlu0 %v408
          %v410 = vpop.xlane.xlu0 %409
          %s411 = scalar_lea.vmem [#allocation4], 16
          %412 = vst [vmem:[%s411] sm:$0xff] %v410
          %s413 = scalar_lea.vmem %s357, 24
          %v414 = vld [vmem:[%s413] sm:$0xff]
          %v415 = vadd.s32 %v360, 24
          %v416 = vstv %s218
          %vm417 = vcmp.gt.s32.totalorder %v415, %v416
          %v418 = vsel %vm417, %v414, 0.0
          %v419 = vrcp.pop %v356
          %v420 = vmul.f32 %v418, %v419
          %v421 = vsel %vm316, 0.0, %v420
          %v422 = vstv %s218
          %v423 = vlaneseq
          %v424 = vand.u32 %v423, 127
          %vm425 = vcmp.eq.s32.totalorder %v424, %v422
          %v426 = vsel %vm425, %v421, 0.0
          %427 = vadd.xlane.f32.xlu0 %v426
          %v428 = vpop.xlane.xlu0 %427
          %s429 = scalar_lea.vmem [#allocation4], 24
          %430 = vst [vmem:[%s429] sm:$0xff] %v428
          %s431 = scalar_lea.vmem %s357, 32
          %v432 = vld [vmem:[%s431] sm:$0xff]
          %v433 = vadd.s32 %v360, 32
          %v434 = vstv %s218
          %vm435 = vcmp.gt.s32.totalorder %v433, %v434
          %v436 = vsel %vm435, %v432, 0.0
          %v437 = vrcp.pop %v356
          %v438 = vmul.f32 %v436, %v437
          %v439 = vsel %vm316, 0.0, %v438
          %v440 = vstv %s218
          %v441 = vlaneseq
          %v442 = vand.u32 %v441, 127
          %vm443 = vcmp.eq.s32.totalorder %v442, %v440
          %v444 = vsel %vm443, %v439, 0.0
          %445 = vadd.xlane.f32.xlu0 %v444
          %v446 = vpop.xlane.xlu0 %445
          %s447 = scalar_lea.vmem [#allocation4], 32
          %448 = vst [vmem:[%s447] sm:$0xff] %v446
          %s449 = scalar_lea.vmem %s357, 40
          %v450 = vld [vmem:[%s449] sm:$0xff]
          %v451 = vadd.s32 %v360, 40
          %v452 = vstv %s218
          %vm453 = vcmp.gt.s32.totalorder %v451, %v452
          %v454 = vsel %vm453, %v450, 0.0
          %v455 = vrcp.pop %v356
          %v456 = vmul.f32 %v454, %v455
          %v457 = vsel %vm316, 0.0, %v456
          %v458 = vstv %s218
          %v459 = vlaneseq
          %v460 = vand.u32 %v459, 127
          %vm461 = vcmp.eq.s32.totalorder %v460, %v458
          %v462 = vsel %vm461, %v457, 0.0
          %463 = vadd.xlane.f32.xlu0 %v462
          %v464 = vpop.xlane.xlu0 %463
          %s465 = scalar_lea.vmem [#allocation4], 40
          %466 = vst [vmem:[%s465] sm:$0xff] %v464
          %s467 = scalar_lea.vmem %s357, 48
          %v468 = vld [vmem:[%s467] sm:$0xff]
          %v469 = vadd.s32 %v360, 48
          %v470 = vstv %s218
          %vm471 = vcmp.gt.s32.totalorder %v469, %v470
          %v472 = vsel %vm471, %v468, 0.0
          %v473 = vrcp.pop %v356
          %v474 = vmul.f32 %v472, %v473
          %v475 = vsel %vm316, 0.0, %v474
          %v476 = vstv %s218
          %v477 = vlaneseq
          %v478 = vand.u32 %v477, 127
          %vm479 = vcmp.eq.s32.totalorder %v478, %v476
          %v480 = vsel %vm479, %v475, 0.0
          %481 = vadd.xlane.f32.xlu0 %v480
          %v482 = vpop.xlane.xlu0 %481
          %s483 = scalar_lea.vmem [#allocation4], 48
          %484 = vst [vmem:[%s483] sm:$0xff] %v482
          %s485 = scalar_lea.vmem %s357, 56
          %v486 = vld [vmem:[%s485] sm:$0xff]
          %v487 = vadd.s32 %v360, 56
          %v488 = vstv %s218
          %vm489 = vcmp.gt.s32.totalorder %v487, %v488
          %vm490 = vcmp.lt.s32.totalorder %v487, 64
          %vm491 = vmand %vm489, %vm490
          %v492 = vsel %vm491, %v486, 0.0
          %v493 = vrcp.pop %v356
          %v494 = vmul.f32 %v492, %v493
          %v495 = vsel %vm316, 0.0, %v494
          %v496 = vstv %s218
          %v497 = vlaneseq
          %v498 = vand.u32 %v497, 127
          %vm499 = vcmp.eq.s32.totalorder %v498, %v496
          %v500 = vsel %vm499, %v495, 0.0
          %501 = vadd.xlane.f32.xlu0 %v500
          %v502 = vpop.xlane.xlu0 %501
          %s503 = scalar_lea.vmem [#allocation4], 56
          %504 = vst [vmem:[%s503] sm:$0xff] %v502
          %s505 = scalar_lea.vmem [#allocation4], %s218
          %506 = vst [vmem:[%s505] sm:$0x1] 1.0
          %v507 = vstv %s218
          %v508 = vlaneseq
          %v509 = vand.u32 %v508, 127
          %vm510 = vcmp.eq.s32.totalorder %v509, %v507
          %v511 = vsel %vm510, %v355, 0.0
          %512 = vadd.xlane.f32.xlu0 %v511
          %v513 = vpop.xlane.xlu0 %512
          %v514 = vstv %s218
          %v515 = vlaneseq
          %v516 = vand.u32 %v515, 127
          %vm517 = vcmp.eq.s32.totalorder %v516, %v514
          %v518 = vld [vmem:[%s185] ss:$0 sm:$0xff]
          %v519 = vsel %vm517, %v513, %v518
          %520 = vst [vmem:[%s185] sm:$0x1] %v519
          %s521 = smov %s169
          %s522 = smov [#allocation4]
          %v523 = vlaneseq
          %v524 = vshrl.u32 %v523, 7
          %v525 = vmov %v524
          %v527 = vld [vmem:[%s522] sm:$0xff]
          %v528 = vld [vmem:[%s521] sm:$0xff]
          %v529 = vmul.f32 %v527, %v528
          %v530 = vadd.s32 %v525, 8
          %s531 = scalar_lea.vmem %s522, 8
          %v532 = vld [vmem:[%s531] sm:$0xff]
          %s533 = scalar_lea.vmem %s521, 8
          %v534 = vld [vmem:[%s533] sm:$0xff]
          %v535 = vmul.f32 %v532, %v534
          %v536 = vadd.f32 %v529, %v535
          %v537 = vadd.s32 %v525, 16
          %s538 = scalar_lea.vmem %s522, 16
          %v539 = vld [vmem:[%s538] sm:$0xff]
          %s540 = scalar_lea.vmem %s521, 16
          %v541 = vld [vmem:[%s540] sm:$0xff]
          %v542 = vmul.f32 %v539, %v541
          %v543 = vadd.f32 %v536, %v542
          %v544 = vadd.s32 %v525, 24
          %s545 = scalar_lea.vmem %s522, 24
          %v546 = vld [vmem:[%s545] sm:$0xff]
          %s547 = scalar_lea.vmem %s521, 24
          %v548 = vld [vmem:[%s547] sm:$0xff]
          %v549 = vmul.f32 %v546, %v548
          %v550 = vadd.f32 %v543, %v549
          %v551 = vadd.s32 %v525, 32
          %s552 = scalar_lea.vmem %s522, 32
          %v553 = vld [vmem:[%s552] sm:$0xff]
          %s554 = scalar_lea.vmem %s521, 32
          %v555 = vld [vmem:[%s554] sm:$0xff]
          %v556 = vmul.f32 %v553, %v555
          %v557 = vadd.f32 %v550, %v556
          %v558 = vadd.s32 %v525, 40
          %s559 = scalar_lea.vmem %s522, 40
          %v560 = vld [vmem:[%s559] sm:$0xff]
          %s561 = scalar_lea.vmem %s521, 40
          %v562 = vld [vmem:[%s561] sm:$0xff]
          %v563 = vmul.f32 %v560, %v562
          %v564 = vadd.f32 %v557, %v563
          %v565 = vadd.s32 %v525, 48
          %s566 = scalar_lea.vmem %s522, 48
          %v567 = vld [vmem:[%s566] sm:$0xff]
          %s568 = scalar_lea.vmem %s521, 48
          %v569 = vld [vmem:[%s568] sm:$0xff]
          %v570 = vmul.f32 %v567, %v569
          %v571 = vadd.f32 %v564, %v570
          %v572 = vadd.s32 %v525, 56
          %s573 = scalar_lea.vmem %s522, 56
          %v574 = vld [vmem:[%s573] sm:$0xff]
          %s575 = scalar_lea.vmem %s521, 56
          %v576 = vld [vmem:[%s575] sm:$0xff]
          %v577 = vmul.f32 %v574, %v576
          %vm578 = vcmp.lt.s32.totalorder %v572, 64
          %v579 = vsel %vm578, %v577, 0.0
          %v580 = vadd.f32 %v571, %v579
          %v581 = vrot.slane %v580, 4
          %v582 = vadd.f32 %v580, %v581
          %v583 = vrot.slane %v582, 2
          %v584 = vadd.f32 %v582, %v583
          %v585 = vrot.slane %v584, 1
          %v586 = vadd.f32 %v584, %v585
          %s587 = smov %s521
          %s588 = smov %s522
          %v589 = vlaneseq
          %v590 = vshrl.u32 %v589, 7
          %v591 = vmov %v590
          %v592 = vmul.f32 %v586, %v513
          %v594 = vlaneseq
          %v595 = vand.u32 %v594, 127
          %v596 = vld [vmem:[%s588] sm:$0xff]
          %v597 = vmul.f32 %v596, %v592
          %v598 = vld [vmem:[%s587] sm:$0xff]
          %v599 = vstv %s218
          %vm600 = vcmp.gt.s32.totalorder %v595, %v599
          %v601 = vsub.f32 %v598, %v597
          %v602 = vsel %vm600, %v601, %v598
          %v603 = vstv %s218
          %v604 = vlaneseq
          %v605 = vand.u32 %v604, 127
          %vm606 = vcmp.eq.s32.totalorder %v605, %v603
          %v607 = vstv %s218
          %vm608 = vcmp.ge.s32.totalorder %v591, %v607
          %vm609 = vmand %vm606, %vm608
          %v610 = vsel %vm609, %v596, %v602
          %611 = vst [vmem:[%s587] sm:$0xff] %v610
          %v612 = vadd.s32 %v591, 8
          %v613 = vlaneseq
          %v614 = vand.u32 %v613, 127
          %s615 = scalar_lea.vmem %s588, 8
          %v616 = vld [vmem:[%s615] sm:$0xff]
          %v617 = vmul.f32 %v616, %v592
          %s618 = scalar_lea.vmem %s587, 8
          %v619 = vld [vmem:[%s618] sm:$0xff]
          %v620 = vstv %s218
          %vm621 = vcmp.gt.s32.totalorder %v614, %v620
          %v622 = vsub.f32 %v619, %v617
          %v623 = vsel %vm621, %v622, %v619
          %v624 = vstv %s218
          %v625 = vlaneseq
          %v626 = vand.u32 %v625, 127
          %vm627 = vcmp.eq.s32.totalorder %v626, %v624
          %v628 = vstv %s218
          %vm629 = vcmp.ge.s32.totalorder %v612, %v628
          %vm630 = vmand %vm627, %vm629
          %v631 = vsel %vm630, %v616, %v623
          %632 = vst [vmem:[%s618] sm:$0xff] %v631
          %v633 = vadd.s32 %v591, 16
          %v634 = vlaneseq
          %v635 = vand.u32 %v634, 127
          %s636 = scalar_lea.vmem %s588, 16
          %v637 = vld [vmem:[%s636] sm:$0xff]
          %v638 = vmul.f32 %v637, %v592
          %s639 = scalar_lea.vmem %s587, 16
          %v640 = vld [vmem:[%s639] sm:$0xff]
          %v641 = vstv %s218
          %vm642 = vcmp.gt.s32.totalorder %v635, %v641
          %v643 = vsub.f32 %v640, %v638
          %v644 = vsel %vm642, %v643, %v640
          %v645 = vstv %s218
          %v646 = vlaneseq
          %v647 = vand.u32 %v646, 127
          %vm648 = vcmp.eq.s32.totalorder %v647, %v645
          %v649 = vstv %s218
          %vm650 = vcmp.ge.s32.totalorder %v633, %v649
          %vm651 = vmand %vm648, %vm650
          %v652 = vsel %vm651, %v637, %v644
          %653 = vst [vmem:[%s639] sm:$0xff] %v652
          %v654 = vadd.s32 %v591, 24
          %v655 = vlaneseq
          %v656 = vand.u32 %v655, 127
          %s657 = scalar_lea.vmem %s588, 24
          %v658 = vld [vmem:[%s657] sm:$0xff]
          %v659 = vmul.f32 %v658, %v592
          %s660 = scalar_lea.vmem %s587, 24
          %v661 = vld [vmem:[%s660] sm:$0xff]
          %v662 = vstv %s218
          %vm663 = vcmp.gt.s32.totalorder %v656, %v662
          %v664 = vsub.f32 %v661, %v659
          %v665 = vsel %vm663, %v664, %v661
          %v666 = vstv %s218
          %v667 = vlaneseq
          %v668 = vand.u32 %v667, 127
          %vm669 = vcmp.eq.s32.totalorder %v668, %v666
          %v670 = vstv %s218
          %vm671 = vcmp.ge.s32.totalorder %v654, %v670
          %vm672 = vmand %vm669, %vm671
          %v673 = vsel %vm672, %v658, %v665
          %674 = vst [vmem:[%s660] sm:$0xff] %v673
          %v675 = vadd.s32 %v591, 32
          %v676 = vlaneseq
          %v677 = vand.u32 %v676, 127
          %s678 = scalar_lea.vmem %s588, 32
          %v679 = vld [vmem:[%s678] sm:$0xff]
          %v680 = vmul.f32 %v679, %v592
          %s681 = scalar_lea.vmem %s587, 32
          %v682 = vld [vmem:[%s681] sm:$0xff]
          %v683 = vstv %s218
          %vm684 = vcmp.gt.s32.totalorder %v677, %v683
          %v685 = vsub.f32 %v682, %v680
          %v686 = vsel %vm684, %v685, %v682
          %v687 = vstv %s218
          %v688 = vlaneseq
          %v689 = vand.u32 %v688, 127
          %vm690 = vcmp.eq.s32.totalorder %v689, %v687
          %v691 = vstv %s218
          %vm692 = vcmp.ge.s32.totalorder %v675, %v691
          %vm693 = vmand %vm690, %vm692
          %v694 = vsel %vm693, %v679, %v686
          %695 = vst [vmem:[%s681] sm:$0xff] %v694
          %v696 = vadd.s32 %v591, 40
          %v697 = vlaneseq
          %v698 = vand.u32 %v697, 127
          %s699 = scalar_lea.vmem %s588, 40
          %v700 = vld [vmem:[%s699] sm:$0xff]
          %v701 = vmul.f32 %v700, %v592
          %s702 = scalar_lea.vmem %s587, 40
          %v703 = vld [vmem:[%s702] sm:$0xff]
          %v704 = vstv %s218
          %vm705 = vcmp.gt.s32.totalorder %v698, %v704
          %v706 = vsub.f32 %v703, %v701
          %v707 = vsel %vm705, %v706, %v703
          %v708 = vstv %s218
          %v709 = vlaneseq
          %v710 = vand.u32 %v709, 127
          %vm711 = vcmp.eq.s32.totalorder %v710, %v708
          %v712 = vstv %s218
          %vm713 = vcmp.ge.s32.totalorder %v696, %v712
          %vm714 = vmand %vm711, %vm713
          %v715 = vsel %vm714, %v700, %v707
          %716 = vst [vmem:[%s702] sm:$0xff] %v715
          %v717 = vadd.s32 %v591, 48
          %v718 = vlaneseq
          %v719 = vand.u32 %v718, 127
          %s720 = scalar_lea.vmem %s588, 48
          %v721 = vld [vmem:[%s720] sm:$0xff]
          %v722 = vmul.f32 %v721, %v592
          %s723 = scalar_lea.vmem %s587, 48
          %v724 = vld [vmem:[%s723] sm:$0xff]
          %v725 = vstv %s218
          %vm726 = vcmp.gt.s32.totalorder %v719, %v725
          %v727 = vsub.f32 %v724, %v722
          %v728 = vsel %vm726, %v727, %v724
          %v729 = vstv %s218
          %v730 = vlaneseq
          %v731 = vand.u32 %v730, 127
          %vm732 = vcmp.eq.s32.totalorder %v731, %v729
          %v733 = vstv %s218
          %vm734 = vcmp.ge.s32.totalorder %v717, %v733
          %vm735 = vmand %vm732, %vm734
          %v736 = vsel %vm735, %v721, %v728
          %737 = vst [vmem:[%s723] sm:$0xff] %v736
          %v738 = vadd.s32 %v591, 56
          %v739 = vlaneseq
          %v740 = vand.u32 %v739, 127
          %s741 = scalar_lea.vmem %s588, 56
          %v742 = vld [vmem:[%s741] sm:$0xff]
          %v743 = vmul.f32 %v742, %v592
          %s744 = scalar_lea.vmem %s587, 56
          %v745 = vld [vmem:[%s744] sm:$0xff]
          %v746 = vstv %s218
          %vm747 = vcmp.gt.s32.totalorder %v740, %v746
          %v748 = vsub.f32 %v745, %v743
          %v749 = vsel %vm747, %v748, %v745
          %v750 = vstv %s218
          %v751 = vlaneseq
          %v752 = vand.u32 %v751, 127
          %vm753 = vcmp.eq.s32.totalorder %v752, %v750
          %v754 = vstv %s218
          %vm755 = vcmp.ge.s32.totalorder %v738, %v754
          %vm756 = vmand %vm753, %vm755
          %v757 = vsel %vm756, %v742, %v749
          %758 = vst [vmem:[%s744] sm:$0xff] %v757
          %s759 = scalar_lea.vmem %s587, %s218
          %v760 = vld [vmem:[%s759] ss:$0 sm:$0xff]
          %v761 = vstv %s218
          %v762 = vlaneseq
          %v763 = vand.u32 %v762, 127
          %vm764 = vcmp.eq.s32.totalorder %v763, %v761
          %v765 = vsel %vm764, %v354, %v760
          %766 = vst [vmem:[%s759] sm:$0x1] %v765
        $region59: #{custom-call.31} parent=53 // loop_footer
          %s222 = sadd.s32 1, %s218
        $region60: #{custom-call.31} parent=53 // loop_footer_branch
          %217 = sbr.rel target = $region56
        $region61: #{custom-call.31} parent=53 // loop_exit
          _
        %s768 = sshllo.u32 0, 4
        %v770 = vld [vmem:[#allocation2] sm:%s768]
        %s771 = sshllo.u32 0, 4
        %772 = vst [vmem:[%s175] sm:%s771] %v770
        %s773 = sand.u32 %s10, 1
        %s774 = sand.u32 %s10, 1
        %s775 = smul.addr %s774, 64
        %s776 = scalar_lea.vmem [#allocation1], %s775
        %s777 = sand.u32 %s49, 1
        %s778 = sand.u32 %s49, 1
        %s779 = smul.addr %s778, 4
        %s780 = scalar_lea.vmem [#allocation3], %s779
        %s781 = smul.u32 8, %s16
        %s782 = sadd.s32 %s17, %s781
        %s783 = smul.addr %s15, 8
        %s784 = sadd.s32 %s782, %s783
        %s785 = smul.addr %s784, 8
        %s786 = scalar_lea.vmem %s1, %s785
        // Predicated region
        $region62: #{custom-call.31} parent=53 // pred_check
          _
        $region63: #{custom-call.31} parent=53 // pred_check_branch
          %788 = sbr.rel (0) target = $region65
        $region64: #{custom-call.31} parent=53 // pred_region
          // Predicated region
          $region66: #{custom-call.31} parent=64 // pred_check
            _
          $region67: #{custom-call.31} parent=64 // pred_check_branch
            %790 = sbr.rel (0) target = $region69
          $region68: #{custom-call.31} parent=64 // pred_region
            // Predicated region
            $region81: #{custom-call.31} parent=68 // pred_check
              _
            $region82: #{custom-call.31} parent=68 // pred_check_branch
              %819 = sbr.rel (0) target = $region84
            $region83: #{custom-call.31} parent=68 // pred_region
              loop: start=0, step=1, limit=1
              $region85: #{custom-call.31} parent=83 // loop_pre_header
                _
              $region86: #{custom-call.31} parent=83 // loop_header
                %s821 = sphi 0, %s825
                %p822 = scmp.ge.s32.totalorder %s821, 1
                %s826 = sphi %s776, %s776
                %s827 = sphi %s786, %s786
              $region87: #{custom-call.31} parent=83 // loop_header_branch
                %824 = sbr.rel (%p822) target = $region91
              $region88: #{custom-call.31} parent=83 // loop_body
                %v828 = vld [vmem:[%s826] sm:$0xff]
                %829 = vst [vmem:[%s827] sm:$0xff] %v828
                %v830 = vld [vmem:[%s826 + $0x8] sm:$0xff]
                %831 = vst [vmem:[%s827 + $0x8] sm:$0xff] %v830
                %v832 = vld [vmem:[%s826 + $0x10] sm:$0xff]
                %833 = vst [vmem:[%s827 + $0x10] sm:$0xff] %v832
                %v834 = vld [vmem:[%s826 + $0x18] sm:$0xff]
                %835 = vst [vmem:[%s827 + $0x18] sm:$0xff] %v834
                %v836 = vld [vmem:[%s826 + $0x20] sm:$0xff]
                %837 = vst [vmem:[%s827 + $0x20] sm:$0xff] %v836
                %v838 = vld [vmem:[%s826 + $0x28] sm:$0xff]
                %839 = vst [vmem:[%s827 + $0x28] sm:$0xff] %v838
                %v840 = vld [vmem:[%s826 + $0x30] sm:$0xff]
                %841 = vst [vmem:[%s827 + $0x30] sm:$0xff] %v840
                %v842 = vld [vmem:[%s826 + $0x38] sm:$0xff]
                %843 = vst [vmem:[%s827 + $0x38] sm:$0xff] %v842
              $region89: #{custom-call.31} parent=83 // loop_footer
                %s825 = sadd.s32 1, %s821
              $region90: #{custom-call.31} parent=83 // loop_footer_branch
                %820 = sbr.rel target = $region86
              $region91: #{custom-call.31} parent=83 // loop_exit
                _
            $region84: #{custom-call.31} parent=68 // pred_fallthru
              _
            // Predicated region
            $region92: #{custom-call.31} parent=68 // pred_check
              _
            $region93: #{custom-call.31} parent=68 // pred_check_branch
              %845 = sbr.rel target = $region95
            $region94: #{custom-call.31} parent=68 // pred_region
              _
            $region95: #{custom-call.31} parent=68 // pred_fallthru
              _
          $region69: #{custom-call.31} parent=64 // pred_fallthru
            _
          // Predicated region
          $region70: #{custom-call.31} parent=64 // pred_check
            _
          $region71: #{custom-call.31} parent=64 // pred_check_branch
            %792 = sbr.rel target = $region73
          $region72: #{custom-call.31} parent=64 // pred_region
            loop: start=0, step=1, limit=1
            $region74: #{custom-call.31} parent=72 // loop_pre_header
              _
            $region75: #{custom-call.31} parent=72 // loop_header
              %s795 = sphi 0, %s799
              %p796 = scmp.ge.s32.totalorder %s795, 1
              %s800 = sphi %s776, %s776
              %s801 = sphi %s786, %s786
            $region76: #{custom-call.31} parent=72 // loop_header_branch
              %798 = sbr.rel (%p796) target = $region80
            $region77: #{custom-call.31} parent=72 // loop_body
              %v802 = vld [vmem:[%s800] sm:$0xff]
              %803 = vst [vmem:[%s801] sm:$0xff] %v802
              %v804 = vld [vmem:[%s800 + $0x8] sm:$0xff]
              %805 = vst [vmem:[%s801 + $0x8] sm:$0xff] %v804
              %v806 = vld [vmem:[%s800 + $0x10] sm:$0xff]
              %807 = vst [vmem:[%s801 + $0x10] sm:$0xff] %v806
              %v808 = vld [vmem:[%s800 + $0x18] sm:$0xff]
              %809 = vst [vmem:[%s801 + $0x18] sm:$0xff] %v808
              %v810 = vld [vmem:[%s800 + $0x20] sm:$0xff]
              %811 = vst [vmem:[%s801 + $0x20] sm:$0xff] %v810
              %v812 = vld [vmem:[%s800 + $0x28] sm:$0xff]
              %813 = vst [vmem:[%s801 + $0x28] sm:$0xff] %v812
              %v814 = vld [vmem:[%s800 + $0x30] sm:$0xff]
              %815 = vst [vmem:[%s801 + $0x30] sm:$0xff] %v814
              %v816 = vld [vmem:[%s800 + $0x38] sm:$0xff]
              %817 = vst [vmem:[%s801 + $0x38] sm:$0xff] %v816
            $region78: #{custom-call.31} parent=72 // loop_footer
              %s799 = sadd.s32 1, %s795
            $region79: #{custom-call.31} parent=72 // loop_footer_branch
              %794 = sbr.rel target = $region75
            $region80: #{custom-call.31} parent=72 // loop_exit
              _
          $region73: #{custom-call.31} parent=64 // pred_fallthru
            _
        $region65: #{custom-call.31} parent=53 // pred_fallthru
          _
        %846 = vnop
        // Predicated region
        $region96: #{custom-call.31} parent=53 // pred_check
          %p847 = pneg %p59
        $region97: #{custom-call.31} parent=53 // pred_check_branch
          %849 = sbr.rel (%p847) target = $region99
        $region98: #{custom-call.31} parent=53 // pred_region
          %p850 = scmp.lt.s32.totalorder %s15, 0
          %s851 = ssub.s32 0, %s15
          %s852 = scalar_select %p850, %s851, %s15
          %s853 = sshrl.u32 %s852, 3
          %s854 = ssub.s32 0, %s853
          %s855 = scalar_select %p850, %s854, %s853
          %s856 = smul.addr %s855, 4
          %s857 = scalar_lea.vmem %s2, %s856
          // Predicated region
          $region100: #{custom-call.31} parent=98 // pred_check
            _
          $region101: #{custom-call.31} parent=98 // pred_check_branch
            %859 = sbr.rel (0) target = $region103
          $region102: #{custom-call.31} parent=98 // pred_region
            // Predicated region
            $region104: #{custom-call.31} parent=102 // pred_check
              _
            $region105: #{custom-call.31} parent=102 // pred_check_branch
              %861 = sbr.rel target = $region107
            $region106: #{custom-call.31} parent=102 // pred_region
              // Predicated region
              $region119: #{custom-call.31} parent=106 // pred_check
                _
              $region120: #{custom-call.31} parent=106 // pred_check_branch
                %876 = sbr.rel (0) target = $region122
              $region121: #{custom-call.31} parent=106 // pred_region
                loop: start=0, step=1, limit=1
                $region123: #{custom-call.31} parent=121 // loop_pre_header
                  _
                $region124: #{custom-call.31} parent=121 // loop_header
                  %s879 = sphi 0, %s883
                  %p880 = scmp.ge.s32.totalorder %s879, 1
                  %s884 = sphi %s780, %s780
                  %s885 = sphi %s857, %s857
                $region125: #{custom-call.31} parent=121 // loop_header_branch
                  %882 = sbr.rel (%p880) target = $region129
                $region126: #{custom-call.31} parent=121 // loop_body
                  %v886 = vld [vmem:[%s884] sm:$0xf]
                  %887 = vst [vmem:[%s885] sm:$0xf] %v886
                $region127: #{custom-call.31} parent=121 // loop_footer
                  %s883 = sadd.s32 1, %s879
                $region128: #{custom-call.31} parent=121 // loop_footer_branch
                  %878 = sbr.rel target = $region124
                $region129: #{custom-call.31} parent=121 // loop_exit
                  _
              $region122: #{custom-call.31} parent=106 // pred_fallthru
                _
            $region107: #{custom-call.31} parent=102 // pred_fallthru
              _
            // Predicated region
            $region108: #{custom-call.31} parent=102 // pred_check
              _
            $region109: #{custom-call.31} parent=102 // pred_check_branch
              %863 = sbr.rel (0) target = $region111
            $region110: #{custom-call.31} parent=102 // pred_region
              loop: start=0, step=1, limit=1
              $region112: #{custom-call.31} parent=110 // loop_pre_header
                _
              $region113: #{custom-call.31} parent=110 // loop_header
                %s866 = sphi 0, %s870
                %p867 = scmp.ge.s32.totalorder %s866, 1
                %s871 = sphi %s780, %s780
                %s872 = sphi %s857, %s857
              $region114: #{custom-call.31} parent=110 // loop_header_branch
                %869 = sbr.rel (%p867) target = $region118
              $region115: #{custom-call.31} parent=110 // loop_body
                %v873 = vld [vmem:[%s871] sm:$0xf]
                %874 = vst [vmem:[%s872] sm:$0xf] %v873
              $region116: #{custom-call.31} parent=110 // loop_footer
                %s870 = sadd.s32 1, %s866
              $region117: #{custom-call.31} parent=110 // loop_footer_branch
                %865 = sbr.rel target = $region113
              $region118: #{custom-call.31} parent=110 // loop_exit
                _
            $region111: #{custom-call.31} parent=102 // pred_fallthru
              _
          $region103: #{custom-call.31} parent=98 // pred_fallthru
            _
          %888 = vnop
        $region99: #{custom-call.31} parent=53 // pred_fallthru
          _
      $region54: #{custom-call.31} parent=5 // pred_fallthru
        _
      %p889 = scmp.le.s32.totalorder 2, %s5
      // Predicated region
      $region130: #{custom-call.31} parent=5 // pred_check
        %p890 = pneg %p889
      $region131: #{custom-call.31} parent=5 // pred_check_branch
        %892 = sbr.rel (%p890) target = $region133
      $region132: #{custom-call.31} parent=5 // pred_region
        %s893 = ssub.s32 %s5, 2
        %s894 = sand.u32 %s11, 1
        %s895 = sand.u32 %s11, 1
        %s896 = smul.addr %s895, 64
        %s897 = scalar_lea.vmem [#allocation1], %s896
        // Predicated region
        $region134: #{custom-call.31} parent=132 // pred_check
          %p898 = pneg %p65
        $region135: #{custom-call.31} parent=132 // pred_check_branch
          %900 = sbr.rel (%p898) target = $region137
        $region136: #{custom-call.31} parent=132 // pred_region
          %s901 = sand.u32 %s50, 1
          %s902 = sand.u32 %s50, 1
          %s903 = smul.addr %s902, 4
          %s904 = scalar_lea.vmem [#allocation3], %s903
        $region137: #{custom-call.31} parent=132 // pred_fallthru
          _
      $region133: #{custom-call.31} parent=5 // pred_fallthru
        _
    $region6: #{custom-call.31} parent=1 // loop_footer
      %s9 = sadd.s32 1, %s5
    $region7: #{custom-call.31} parent=1 // loop_footer_branch
      %4 = sbr.rel target = $region3
    $region8: #{custom-call.31} parent=1 // loop_exit
      _

// kernel: custom-call.33
$region0: #{custom-call.33}
  %s0 = inlined_call_operand.vmem [shape: f32[4,8,8], index: 0, kind: input, shape index: {}]
  %s1 = inlined_call_operand.vmem [shape: f32[4,8,8], index: 1, kind: output, shape index: {}]
  $region1: #{custom-call.33} parent=0
    #allocation0 [shape = 'u8[8192]{0}', space=vmem, size = 0x2000, scoped, tag = 'operand span for operand 0']
    #allocation1 [shape = 'u8[8192]{0}', space=vmem, size = 0x2000, scoped, tag = 'operand span for operand 1']
    loop: start=0, step=1, limit=6
    $region2: #{custom-call.33} parent=1 // loop_pre_header
      _
    $region3: #{custom-call.33} parent=1 // loop_header
      %s3 = sphi 0, %s7
      %p4 = scmp.ge.s32.totalorder %s3, 6
    $region4: #{custom-call.33} parent=1 // loop_header_branch
      %6 = sbr.rel (%p4) target = $region8
    $region5: #{custom-call.33} parent=1 // loop_body
      %s8 = ssub.s32 %s3, 1
      %s9 = ssub.s32 %s3, 2
      %s10 = sadd.s32 %s3, 1
      %p11 = scmp.le.s32.totalorder 1, %s3
      %p12 = scmp.lt.s32.totalorder %s3, 5
      %p13 = pnand %p11, %p12
      %p14 = pneg %p13
      // Predicated region
      $region9: #{custom-call.33} parent=5 // pred_check
        _
      $region10: #{custom-call.33} parent=5 // pred_check_branch
        %16 = sbr.rel (%p13) target = $region12
      $region11: #{custom-call.33} parent=5 // pred_region
        %s17 = ssub.s32 %s3, 1
      $region12: #{custom-call.33} parent=5 // pred_fallthru
        _
      %p18 = scmp.lt.s32.totalorder %s3, 4
      // Predicated region
      $region13: #{custom-call.33} parent=5 // pred_check
        %p19 = pneg %p18
      $region14: #{custom-call.33} parent=5 // pred_check_branch
        %21 = sbr.rel (%p19) target = $region16
      $region15: #{custom-call.33} parent=5 // pred_region
        %s22 = sand.u32 %s3, 1
        %s23 = sand.u32 %s3, 1
        %s24 = smul.addr %s23, 8
        %s25 = scalar_lea.vmem [#allocation0], %s24
        %s26 = smul.addr %s3, 8
        %s27 = scalar_lea.vmem %s0, %s26
        // Predicated region
        $region17: #{custom-call.33} parent=15 // pred_check
          _
        $region18: #{custom-call.33} parent=15 // pred_check_branch
          %29 = sbr.rel (0) target = $region20
        $region19: #{custom-call.33} parent=15 // pred_region
          // Predicated region
          $region21: #{custom-call.33} parent=19 // pred_check
            _
          $region22: #{custom-call.33} parent=19 // pred_check_branch
            %31 = sbr.rel (0) target = $region24
          $region23: #{custom-call.33} parent=19 // pred_region
            // Predicated region
            $region36: #{custom-call.33} parent=23 // pred_check
              _
            $region37: #{custom-call.33} parent=23 // pred_check_branch
              %46 = sbr.rel (0) target = $region39
            $region38: #{custom-call.33} parent=23 // pred_region
              loop: start=0, step=1, limit=1
              $region40: #{custom-call.33} parent=38 // loop_pre_header
                _
              $region41: #{custom-call.33} parent=38 // loop_header
                %s48 = sphi 0, %s52
                %p49 = scmp.ge.s32.totalorder %s48, 1
                %s53 = sphi %s27, %s27
                %s54 = sphi %s25, %s25
              $region42: #{custom-call.33} parent=38 // loop_header_branch
                %51 = sbr.rel (%p49) target = $region46
              $region43: #{custom-call.33} parent=38 // loop_body
                %v55 = vld [vmem:[%s53] sm:$0xff]
                %56 = vst [vmem:[%s54] sm:$0xff] %v55
              $region44: #{custom-call.33} parent=38 // loop_footer
                %s52 = sadd.s32 1, %s48
              $region45: #{custom-call.33} parent=38 // loop_footer_branch
                %47 = sbr.rel target = $region41
              $region46: #{custom-call.33} parent=38 // loop_exit
                _
            $region39: #{custom-call.33} parent=23 // pred_fallthru
              _
            // Predicated region
            $region47: #{custom-call.33} parent=23 // pred_check
              _
            $region48: #{custom-call.33} parent=23 // pred_check_branch
              %58 = sbr.rel target = $region50
            $region49: #{custom-call.33} parent=23 // pred_region
              _
            $region50: #{custom-call.33} parent=23 // pred_fallthru
              _
          $region24: #{custom-call.33} parent=19 // pred_fallthru
            _
          // Predicated region
          $region25: #{custom-call.33} parent=19 // pred_check
            _
          $region26: #{custom-call.33} parent=19 // pred_check_branch
            %33 = sbr.rel target = $region28
          $region27: #{custom-call.33} parent=19 // pred_region
            loop: start=0, step=1, limit=1
            $region29: #{custom-call.33} parent=27 // loop_pre_header
              _
            $region30: #{custom-call.33} parent=27 // loop_header
              %s36 = sphi 0, %s40
              %p37 = scmp.ge.s32.totalorder %s36, 1
              %s41 = sphi %s27, %s27
              %s42 = sphi %s25, %s25
            $region31: #{custom-call.33} parent=27 // loop_header_branch
              %39 = sbr.rel (%p37) target = $region35
            $region32: #{custom-call.33} parent=27 // loop_body
              %v43 = vld [vmem:[%s41] sm:$0xff]
              %44 = vst [vmem:[%s42] sm:$0xff] %v43
            $region33: #{custom-call.33} parent=27 // loop_footer
              %s40 = sadd.s32 1, %s36
            $region34: #{custom-call.33} parent=27 // loop_footer_branch
              %35 = sbr.rel target = $region30
            $region35: #{custom-call.33} parent=27 // loop_exit
              _
          $region28: #{custom-call.33} parent=19 // pred_fallthru
            _
        $region20: #{custom-call.33} parent=15 // pred_fallthru
          _
        %59 = vnop
      $region16: #{custom-call.33} parent=5 // pred_fallthru
        _
      %p60 = scmp.le.s32.totalorder 1, %s3
      %p61 = scmp.lt.s32.totalorder %s3, 5
      %p62 = pnand %p60, %p61
      %p63 = pneg %p62
      // Predicated region
      $region51: #{custom-call.33} parent=5 // pred_check
        _
      $region52: #{custom-call.33} parent=5 // pred_check_branch
        %65 = sbr.rel (%p62) target = $region54
      $region53: #{custom-call.33} parent=5 // pred_region
        %s66 = ssub.s32 %s3, 1
        %s67 = sand.u32 %s8, 1
        %s68 = sand.u32 %s8, 1
        %s69 = smul.addr %s68, 8
        %s70 = scalar_lea.vmem [#allocation0], %s69
        %s71 = sand.u32 %s8, 1
        %s72 = sand.u32 %s8, 1
        %s73 = smul.addr %s72, 8
        %s74 = scalar_lea.vmem [#allocation0], %s73
        %s75 = sand.u32 %s8, 1
        %s76 = sand.u32 %s8, 1
        %s77 = smul.addr %s76, 8
        %s78 = scalar_lea.vmem [#allocation1], %s77
        %v79 = vlaneseq
        %v80 = vand.u32 %v79, 127
        %v81 = vlaneseq
        %v82 = vshrl.u32 %v81, 7
        %vm84 = vcmp.eq.s32.totalorder %v80, %v82
        %v85 = vld [vmem:[%s70] sm:$0xff]
        %v86 = vlaneseq
        %v87 = vand.u32 %v86, 127
        %vm88 = vcmp.eq.s32.totalorder %v87, 0
        %v89 = vsel %vm88, %v85, 1.0
        %v90 = vsel %vm84, %v89, 0.0
        %s91 = scalar_lea.vmem %s70, 1 [#allocation0]
        %v92 = vld [vmem:[%s91] ss:$0 sm:$0xff]
        %vm93 = vcmask 64512
        %v94 = vsel %vm93, %v92, 0.0
        %v95 = vlaneseq
        %v96 = vand.u32 %v95, 127
        %vm97 = vcmp.eq.s32.totalorder %v96, 1
        %v98 = vmul.f32 %v94, %v90
        %99 = vadd.xlane.f32.xlu0 %v98
        %v100 = vpop.xlane.xlu0 %99
        %v101 = vsel %vm97, %v100, %v90
        %s102 = scalar_lea.vmem %s70, 2 [#allocation0]
        %v103 = vld [vmem:[%s102] ss:$0 sm:$0xff]
        %vm104 = vcmask 64512
        %v105 = vsel %vm104, %v103, 0.0
        %v106 = vlaneseq
        %v107 = vand.u32 %v106, 127
        %vm108 = vcmp.eq.s32.totalorder %v107, 2
        %v109 = vmul.f32 %v105, %v101
        %110 = vadd.xlane.f32.xlu0 %v109
        %v111 = vpop.xlane.xlu0 %110
        %v112 = vsel %vm108, %v111, %v101
        %s113 = scalar_lea.vmem %s70, 3 [#allocation0]
        %v114 = vld [vmem:[%s113] ss:$0 sm:$0xff]
        %vm115 = vcmask 64512
        %v116 = vsel %vm115, %v114, 0.0
        %v117 = vlaneseq
        %v118 = vand.u32 %v117, 127
        %vm119 = vcmp.eq.s32.totalorder %v118, 3
        %v120 = vmul.f32 %v116, %v112
        %121 = vadd.xlane.f32.xlu0 %v120
        %v122 = vpop.xlane.xlu0 %121
        %v123 = vsel %vm119, %v122, %v112
        %s124 = scalar_lea.vmem %s70, 4 [#allocation0]
        %v125 = vld [vmem:[%s124] ss:$0 sm:$0xff]
        %vm126 = vcmask 64512
        %v127 = vsel %vm126, %v125, 0.0
        %v128 = vlaneseq
        %v129 = vand.u32 %v128, 127
        %vm130 = vcmp.eq.s32.totalorder %v129, 4
        %v131 = vmul.f32 %v127, %v123
        %132 = vadd.xlane.f32.xlu0 %v131
        %v133 = vpop.xlane.xlu0 %132
        %v134 = vsel %vm130, %v133, %v123
        %s135 = scalar_lea.vmem %s70, 5 [#allocation0]
        %v136 = vld [vmem:[%s135] ss:$0 sm:$0xff]
        %vm137 = vcmask 64512
        %v138 = vsel %vm137, %v136, 0.0
        %v139 = vlaneseq
        %v140 = vand.u32 %v139, 127
        %vm141 = vcmp.eq.s32.totalorder %v140, 5
        %v142 = vmul.f32 %v138, %v134
        %143 = vadd.xlane.f32.xlu0 %v142
        %v144 = vpop.xlane.xlu0 %143
        %v145 = vsel %vm141, %v144, %v134
        %s146 = scalar_lea.vmem %s70, 6 [#allocation0]
        %v147 = vld [vmem:[%s146] ss:$0 sm:$0xff]
        %vm148 = vcmask 64512
        %v149 = vsel %vm148, %v147, 0.0
        %v150 = vlaneseq
        %v151 = vand.u32 %v150, 127
        %vm152 = vcmp.eq.s32.totalorder %v151, 6
        %v153 = vmul.f32 %v149, %v145
        %154 = vadd.xlane.f32.xlu0 %v153
        %v155 = vpop.xlane.xlu0 %154
        %v156 = vsel %vm152, %v155, %v145
        %s157 = scalar_lea.vmem %s70, 7 [#allocation0]
        %v158 = vld [vmem:[%s157] ss:$0 sm:$0xff]
        %vm159 = vcmask 64512
        %v160 = vsel %vm159, %v158, 0.0
        %v161 = vlaneseq
        %v162 = vand.u32 %v161, 127
        %vm163 = vcmp.eq.s32.totalorder %v162, 7
        %v164 = vmul.f32 %v160, %v156
        %165 = vadd.xlane.f32.xlu0 %v164
        %v166 = vpop.xlane.xlu0 %165
        %v167 = vsel %vm163, %v166, %v156
        %168 = vst [vmem:[%s78] sm:$0xff] %v167
        %s169 = sand.u32 %s8, 1
        %s170 = sand.u32 %s8, 1
        %s171 = smul.addr %s170, 8
        %s172 = scalar_lea.vmem [#allocation1], %s171
        %s173 = smul.addr %s8, 8
        %s174 = scalar_lea.vmem %s1, %s173
        // Predicated region
        $region55: #{custom-call.33} parent=53 // pred_check
          _
        $region56: #{custom-call.33} parent=53 // pred_check_branch
          %176 = sbr.rel (0) target = $region58
        $region57: #{custom-call.33} parent=53 // pred_region
          // Predicated region
          $region59: #{custom-call.33} parent=57 // pred_check
            _
          $region60: #{custom-call.33} parent=57 // pred_check_branch
            %178 = sbr.rel (0) target = $region62
          $region61: #{custom-call.33} parent=57 // pred_region
            // Predicated region
            $region74: #{custom-call.33} parent=61 // pred_check
              _
            $region75: #{custom-call.33} parent=61 // pred_check_branch
              %193 = sbr.rel (0) target = $region77
            $region76: #{custom-call.33} parent=61 // pred_region
              loop: start=0, step=1, limit=1
              $region78: #{custom-call.33} parent=76 // loop_pre_header
                _
              $region79: #{custom-call.33} parent=76 // loop_header
                %s195 = sphi 0, %s199
                %p196 = scmp.ge.s32.totalorder %s195, 1
                %s200 = sphi %s172, %s172
                %s201 = sphi %s174, %s174
              $region80: #{custom-call.33} parent=76 // loop_header_branch
                %198 = sbr.rel (%p196) target = $region84
              $region81: #{custom-call.33} parent=76 // loop_body
                %v202 = vld [vmem:[%s200] sm:$0xff]
                %203 = vst [vmem:[%s201] sm:$0xff] %v202
              $region82: #{custom-call.33} parent=76 // loop_footer
                %s199 = sadd.s32 1, %s195
              $region83: #{custom-call.33} parent=76 // loop_footer_branch
                %194 = sbr.rel target = $region79
              $region84: #{custom-call.33} parent=76 // loop_exit
                _
            $region77: #{custom-call.33} parent=61 // pred_fallthru
              _
            // Predicated region
            $region85: #{custom-call.33} parent=61 // pred_check
              _
            $region86: #{custom-call.33} parent=61 // pred_check_branch
              %205 = sbr.rel target = $region88
            $region87: #{custom-call.33} parent=61 // pred_region
              _
            $region88: #{custom-call.33} parent=61 // pred_fallthru
              _
          $region62: #{custom-call.33} parent=57 // pred_fallthru
            _
          // Predicated region
          $region63: #{custom-call.33} parent=57 // pred_check
            _
          $region64: #{custom-call.33} parent=57 // pred_check_branch
            %180 = sbr.rel target = $region66
          $region65: #{custom-call.33} parent=57 // pred_region
            loop: start=0, step=1, limit=1
            $region67: #{custom-call.33} parent=65 // loop_pre_header
              _
            $region68: #{custom-call.33} parent=65 // loop_header
              %s183 = sphi 0, %s187
              %p184 = scmp.ge.s32.totalorder %s183, 1
              %s188 = sphi %s172, %s172
              %s189 = sphi %s174, %s174
            $region69: #{custom-call.33} parent=65 // loop_header_branch
              %186 = sbr.rel (%p184) target = $region73
            $region70: #{custom-call.33} parent=65 // loop_body
              %v190 = vld [vmem:[%s188] sm:$0xff]
              %191 = vst [vmem:[%s189] sm:$0xff] %v190
            $region71: #{custom-call.33} parent=65 // loop_footer
              %s187 = sadd.s32 1, %s183
            $region72: #{custom-call.33} parent=65 // loop_footer_branch
              %182 = sbr.rel target = $region68
            $region73: #{custom-call.33} parent=65 // loop_exit
              _
          $region66: #{custom-call.33} parent=57 // pred_fallthru
            _
        $region58: #{custom-call.33} parent=53 // pred_fallthru
          _
        %206 = vnop
      $region54: #{custom-call.33} parent=5 // pred_fallthru
        _
      %p207 = scmp.le.s32.totalorder 2, %s3
      // Predicated region
      $region89: #{custom-call.33} parent=5 // pred_check
        %p208 = pneg %p207
      $region90: #{custom-call.33} parent=5 // pred_check_branch
        %210 = sbr.rel (%p208) target = $region92
      $region91: #{custom-call.33} parent=5 // pred_region
        %s211 = ssub.s32 %s3, 2
        %s212 = sand.u32 %s9, 1
        %s213 = sand.u32 %s9, 1
        %s214 = smul.addr %s213, 8
        %s215 = scalar_lea.vmem [#allocation1], %s214
      $region92: #{custom-call.33} parent=5 // pred_fallthru
        _
    $region6: #{custom-call.33} parent=1 // loop_footer
      %s7 = sadd.s32 1, %s3
    $region7: #{custom-call.33} parent=1 // loop_footer_branch
      %2 = sbr.rel target = $region3
    $region8: #{custom-call.33} parent=1 // loop_exit
      _

// kernel: recover_block_forward.2
$region0: #{recover_block_forward.2}
  #allocation0 [shape = 'u32[]', space=smem, size = 0x4, offset = 0x4, fixed_abs, tag = 'smem constant byte address 0x4 - core index']
  #allocation1 [shape = 'u32[144,128]{1,0:T(1,128)}', space=vmem, size = 0x12000, scoped, tag = 'internal scratch']
  %s0 = inlined_call_operand.vmem [shape: f32[4,8,256], index: 0, kind: input, shape index: {}]
  %s1 = inlined_call_operand.vmem [shape: f32[256,64], index: 1, kind: input, shape index: {}]
  %s2 = inlined_call_operand.vmem [shape: f32[4,8,64], index: 2, kind: output, shape index: {}]
  %s3 = sld [smem:[#allocation0]]
  $region41: #{recover_block_forward.2} parent=0
    _
  %s5 = ssub.s32 1, %s3
  %s6 = scalar_select 0, %s5, %s3
  loop: start=0, step=1, limit=4
  $region2: #{recover_block_forward.2} parent=0 // loop_pre_header
    _
  $region3: #{recover_block_forward.2} parent=0 // loop_header
    %s8 = sphi 0, %s12
    %p9 = scmp.ge.s32.totalorder %s8, 4
    %s18 = sphi 0, %s20
    %s21 = sphi 0, %s18
    %s22 = sphi 0, %s21
    %s38 = sphi 0, %s22
    %s42 = sphi 0, %s42
    %s44 = sphi 0, %s42
    %s45 = sphi 0, %s44
    %s59 = sphi 0, %s45
    %s65 = sphi 0, %s67
    %s68 = sphi 0, %s65
    %s69 = sphi 0, %s68
    %s85 = sphi 0, %s69
  $region4: #{recover_block_forward.2} parent=0 // loop_header_branch
    %11 = sbr.rel (%p9) target = $region8
  $region5: #{recover_block_forward.2} parent=0 // loop_body
    %s13 = ssub.s32 %s8, 1
    %s14 = ssub.s32 %s8, 2
    %s15 = sadd.s32 %s8, 1
    %s16 = ssub.s32 %s8, %s15
    %p17 = scmp.eq.s32.totalorder %s16, 0
    %s19 = sadd.s32 %s18, 1
    %s20 = scalar_select %p17, %s18, %s19
    %p23 = pneg %p17
    %p24 = scmp.eq.s32.totalorder %s8, 1
    %p25 = por %p23, %p24
    %p26 = scmp.ne.s32.totalorder %s18, %s21
    %p27 = scmp.eq.s32.totalorder %s8, 0
    %p28 = por %p26, %p27
    %p29 = scmp.ne.s32.totalorder %s18, %s21
    %p30 = scmp.eq.s32.totalorder %s13, 1
    %p31 = por %p29, %p30
    %p32 = scmp.ne.s32.totalorder %s21, %s22
    %p33 = scmp.eq.s32.totalorder %s13, 0
    %p34 = por %p32, %p33
    %p35 = scmp.ne.s32.totalorder %s21, %s22
    %p36 = scmp.eq.s32.totalorder %s14, 1
    %p37 = por %p35, %p36
    %p39 = scmp.ne.s32.totalorder %s22, %s38
    %p40 = scmp.eq.s32.totalorder %s14, 0
    %p41 = por %p39, %p40
    %s43 = sadd.s32 %s42, 1
    %p46 = scmp.eq.s32.totalorder %s8, 1
    %p47 = scmp.ne.s32.totalorder %s42, %s44
    %p48 = scmp.eq.s32.totalorder %s8, 0
    %p49 = por %p47, %p48
    %p50 = scmp.ne.s32.totalorder %s42, %s44
    %p51 = scmp.eq.s32.totalorder %s13, 1
    %p52 = por %p50, %p51
    %p53 = scmp.ne.s32.totalorder %s44, %s45
    %p54 = scmp.eq.s32.totalorder %s13, 0
    %p55 = por %p53, %p54
    %p56 = scmp.ne.s32.totalorder %s44, %s45
    %p57 = scmp.eq.s32.totalorder %s14, 1
    %p58 = por %p56, %p57
    %p60 = scmp.ne.s32.totalorder %s45, %s59
    %p61 = scmp.eq.s32.totalorder %s14, 0
    %p62 = por %p60, %p61
    %s63 = ssub.s32 %s8, %s15
    %p64 = scmp.eq.s32.totalorder %s63, 0
    %s66 = sadd.s32 %s65, 1
    %s67 = scalar_select %p64, %s65, %s66
    %p70 = pneg %p64
    %p71 = scmp.eq.s32.totalorder %s8, 1
    %p72 = por %p70, %p71
    %p73 = scmp.ne.s32.totalorder %s65, %s68
    %p74 = scmp.eq.s32.totalorder %s8, 0
    %p75 = por %p73, %p74
    %p76 = scmp.ne.s32.totalorder %s65, %s68
    %p77 = scmp.eq.s32.totalorder %s13, 1
    %p78 = por %p76, %p77
    %p79 = scmp.ne.s32.totalorder %s68, %s69
    %p80 = scmp.eq.s32.totalorder %s13, 0
    %p81 = por %p79, %p80
    %p82 = scmp.ne.s32.totalorder %s68, %s69
    %p83 = scmp.eq.s32.totalorder %s14, 1
    %p84 = por %p82, %p83
    %p86 = scmp.ne.s32.totalorder %s69, %s85
    %p87 = scmp.eq.s32.totalorder %s14, 0
    %p88 = por %p86, %p87
    %p89 = scmp.le.s32.totalorder 1, %s8
    %p90 = scmp.lt.s32.totalorder %s8, 3
    %p91 = pnand %p89, %p90
    %p92 = pneg %p91
    // Predicated region
    $region9: #{recover_block_forward.2} parent=5 // pred_check
      _
    $region10: #{recover_block_forward.2} parent=5 // pred_check_branch
      %94 = sbr.rel (%p91) target = $region12
    $region11: #{recover_block_forward.2} parent=5 // pred_region
      %s95 = ssub.s32 %s8, 1
      // Predicated region
      $region13: #{recover_block_forward.2} parent=11 // pred_check
        %p96 = pneg %p55
      $region14: #{recover_block_forward.2} parent=11 // pred_check_branch
        %98 = sbr.rel (%p96) target = $region16
      $region15: #{recover_block_forward.2} parent=11 // pred_region
        _
      $region16: #{recover_block_forward.2} parent=11 // pred_fallthru
        _
    $region12: #{recover_block_forward.2} parent=5 // pred_fallthru
      _
    %p99 = scmp.lt.s32.totalorder %s8, 2
    // Predicated region
    $region17: #{recover_block_forward.2} parent=5 // pred_check
      %p100 = pneg %p99
    $region18: #{recover_block_forward.2} parent=5 // pred_check_branch
      %102 = sbr.rel (%p100) target = $region20
    $region19: #{recover_block_forward.2} parent=5 // pred_region
      // Predicated region
      $region21: #{recover_block_forward.2} parent=19 // pred_check
        %p103 = pneg %p28
      $region22: #{recover_block_forward.2} parent=19 // pred_check_branch
        %105 = sbr.rel (%p103) target = $region24
      $region23: #{recover_block_forward.2} parent=19 // pred_region
        %s106 = smul.u32 2, %s8
        %p107 = scmp.lt.s32.totalorder %s106, 3
        %s108 = scalar_select %p107, %s106, 3
        %s109 = smul.addr %s108, 2
        %s110 = smul.addr %s109, 8
        %s111 = scalar_lea.vmem %s0, %s110
        %s112 = smul.u32 2, %s8
      $region24: #{recover_block_forward.2} parent=19 // pred_fallthru
        _
    $region20: #{recover_block_forward.2} parent=5 // pred_fallthru
      _
    %p113 = scmp.le.s32.totalorder 1, %s8
    %p114 = scmp.lt.s32.totalorder %s8, 3
    %p115 = pnand %p113, %p114
    %p116 = pneg %p115
    // Predicated region
    $region25: #{recover_block_forward.2} parent=5 // pred_check
      _
    $region26: #{recover_block_forward.2} parent=5 // pred_check_branch
      %118 = sbr.rel (%p115) target = $region28
    $region27: #{recover_block_forward.2} parent=5 // pred_region
      %s119 = ssub.s32 %s8, 1
      %s120 = smul.u32 2, %s13
      %p121 = scmp.lt.s32.totalorder %s120, 3
      %s122 = scalar_select %p121, %s120, 3
      %s123 = smul.addr %s122, 2
      %s124 = smul.addr %s123, 8
      %s125 = scalar_lea.vmem %s0, %s124
      %p126 = pneg %p34
      %p127 = pneg %p31
      %p128 = pneg %p55
      %p129 = pneg %p52
      %p130 = pneg %p81
      %p131 = pneg %p78
      %s132 = smul.u32 2, %s13
      %p133 = scmp.lt.s32.totalorder %s132, 3
      %s134 = scalar_select %p133, %s132, 3
      %s135 = smul.addr %s134, 8
      %s136 = scalar_lea.vmem %s2, %s135
      %s137 = smul.u32 2, %s13
      %p138 = scmp.lt.s32.totalorder %s137, 3
      %s139 = scalar_select %p138, %s137, 3
      %s140 = smul.addr %s139, 2
      %s141 = smul.addr %s140, 8
      %s142 = scalar_lea.vmem %s0, %s141
      %s143 = smul.u32 2, %s13
      %s144 = smul.u32 2, %s13
      %p145 = scmp.lt.s32.totalorder %s144, 3
      %s146 = scalar_select %p145, %s144, 3
      %s147 = smul.addr %s146, 8
      %s148 = scalar_lea.vmem %s2, %s147
      %s149 = smul.u32 2, %s13
      %v150 = vld [vmem:[%s142] sm:$0xff]
      %v151 = vld [vmem:[%s142 + $0x8] sm:$0xff]
      %v152 = vld [vmem:[%s142 + $0x10] sm:$0xff]
      %v153 = vld [vmem:[%s142 + $0x18] sm:$0xff]
      %v154 = vld [vmem:[%s1] sm:$0xff]
      %v155 = vld [vmem:[%s1 + $0x8] sm:$0xff]
      %v156 = vld [vmem:[%s1 + $0x10] sm:$0xff]
      %v157 = vld [vmem:[%s1 + $0x18] sm:$0xff]
      %v158 = vld [vmem:[%s1 + $0x20] sm:$0xff]
      %v159 = vld [vmem:[%s1 + $0x28] sm:$0xff]
      %v160 = vld [vmem:[%s1 + $0x30] sm:$0xff]
      %v161 = vld [vmem:[%s1 + $0x38] sm:$0xff]
      %v162 = vld [vmem:[%s1 + $0x40] sm:$0xff]
      %v163 = vld [vmem:[%s1 + $0x48] sm:$0xff]
      %v164 = vld [vmem:[%s1 + $0x50] sm:$0xff]
      %v165 = vld [vmem:[%s1 + $0x58] sm:$0xff]
      %v166 = vld [vmem:[%s1 + $0x60] sm:$0xff]
      %v167 = vld [vmem:[%s1 + $0x68] sm:$0xff]
      %v168 = vld [vmem:[%s1 + $0x70] sm:$0xff]
      %v169 = vld [vmem:[%s1 + $0x78] sm:$0xff]
      %v170 = vld [vmem:[%s1 + $0x80] sm:$0xff]
      %v171 = vld [vmem:[%s1 + $0x88] sm:$0xff]
      %v172 = vld [vmem:[%s1 + $0x90] sm:$0xff]
      %v173 = vld [vmem:[%s1 + $0x98] sm:$0xff]
      %v174 = vld [vmem:[%s1 + $0xa0] sm:$0xff]
      %v175 = vld [vmem:[%s1 + $0xa8] sm:$0xff]
      %v176 = vld [vmem:[%s1 + $0xb0] sm:$0xff]
      %v177 = vld [vmem:[%s1 + $0xb8] sm:$0xff]
      %v178 = vld [vmem:[%s1 + $0xc0] sm:$0xff]
      %v179 = vld [vmem:[%s1 + $0xc8] sm:$0xff]
      %v180 = vld [vmem:[%s1 + $0xd0] sm:$0xff]
      %v181 = vld [vmem:[%s1 + $0xd8] sm:$0xff]
      %v182 = vld [vmem:[%s1 + $0xe0] sm:$0xff]
      %v183 = vld [vmem:[%s1 + $0xe8] sm:$0xff]
      %v184 = vld [vmem:[%s1 + $0xf0] sm:$0xff]
      %v185 = vld [vmem:[%s1 + $0xf8] sm:$0xff]
      %186 = vmatprep.subr.mxu0 0.0
      %187 = vmatpush1.msra.mxu0 %v154
      %188 = vmatprep.subr.mxu0 0.0
      %189 = vmatpush1.msra.mxu0 %v155
      %190 = vmatprep.subr.mxu0 0.0
      %191 = vmatpush1.msra.mxu0 %v156
      %192 = vmatprep.subr.mxu0 0.0
      %193 = vmatpush1.msra.mxu0 %v157
      %194 = vmatprep.subr.mxu0 0.0
      %195 = vmatpush1.msra.mxu0 %v158
      %196 = vmatprep.subr.mxu0 0.0
      %197 = vmatpush1.msra.mxu0 %v159
      %198 = vmatprep.subr.mxu0 0.0
      %199 = vmatpush1.msra.mxu0 %v160
      %200 = vmatprep.subr.mxu0 0.0
      %201 = vmatpush1.msra.mxu0 %v161
      %202 = vmatprep.subr.mxu0 0.0
      %203 = vmatpush1.msra.mxu0 %v162
      %204 = vmatprep.subr.mxu0 0.0
      %205 = vmatpush1.msra.mxu0 %v163
      %206 = vmatprep.subr.mxu0 0.0
      %207 = vmatpush1.msra.mxu0 %v164
      %208 = vmatprep.subr.mxu0 0.0
      %209 = vmatpush1.msra.mxu0 %v165
      %210 = vmatprep.subr.mxu0 0.0
      %211 = vmatpush1.msra.mxu0 %v166
      %212 = vmatprep.subr.mxu0 0.0
      %213 = vmatpush1.msra.mxu0 %v167
      %214 = vmatprep.subr.mxu0 0.0
      %215 = vmatpush1.msra.mxu0 %v168
      %216 = vmatprep.subr.mxu0 0.0
      %217 = vmatpush1.msra.mxu0 %v169
      %218 = vmatprep.subr.mxu0 0.0
      %219 = vmatpush1.msra.mxu0 %v170
      %220 = vmatprep.subr.mxu0 0.0
      %221 = vmatpush1.msra.mxu0 %v171
      %222 = vmatprep.subr.mxu0 0.0
      %223 = vmatpush1.msra.mxu0 %v172
      %224 = vmatprep.subr.mxu0 0.0
      %225 = vmatpush1.msra.mxu0 %v173
      %226 = vmatprep.subr.mxu0 0.0
      %227 = vmatpush1.msra.mxu0 %v174
      %228 = vmatprep.subr.mxu0 0.0
      %229 = vmatpush1.msra.mxu0 %v175
      %230 = vmatprep.subr.mxu0 0.0
      %231 = vmatpush1.msra.mxu0 %v176
      %232 = vmatprep.subr.mxu0 0.0
      %233 = vmatpush1.msra.mxu0 %v177
      %234 = vmatprep.subr.mxu0 0.0
      %235 = vmatpush1.msra.mxu0 %v178
      %236 = vmatprep.subr.mxu0 0.0
      %237 = vmatpush1.msra.mxu0 %v179
      %238 = vmatprep.subr.mxu0 0.0
      %239 = vmatpush1.msra.mxu0 %v180
      %240 = vmatprep.subr.mxu0 0.0
      %241 = vmatpush1.msra.mxu0 %v181
      %242 = vmatprep.subr.mxu0 0.0
      %243 = vmatpush1.msra.mxu0 %v182
      %244 = vmatprep.subr.mxu0 0.0
      %245 = vmatpush1.msra.mxu0 %v183
      %246 = vmatprep.subr.mxu0 0.0
      %247 = vmatpush1.msra.mxu0 %v184
      %248 = vmatprep.subr.mxu0 0.0
      %249 = vmatpush1.msra.mxu0 %v185
      %250 = vmatprep.mubr.f32.mxu0 %v151
      %251 = vmatmul.mubr.f32.gmra.mrb[0].mxu0 %v150
      %v252 = vpop.f32.mrb[0].mxu0
      %v253 = vadd.f32 0.0, %v252
      %v254 = vpop.f32.mrb[0].mxu0
      %255 = vmatprep.mubr.f32.mxu0 %v153
      %256 = vmatmul.mubr.f32.gmra.mrb[0].mxu0 %v152
      %v257 = vpop.f32.mrb[0].mxu0
      %v258 = vadd.f32 0.0, %v257
      %v259 = vpop.f32.mrb[0].mxu0
      %260 = vdwg.mxu0
      %vm261 = vcmask 523264
      %262 = vst.msk [vmem:[%s148] sm:$0xff] %vm261, %v253
      %263 = vst.msk [vmem:[%s148 + $0x8] sm:$0xff] %vm261, %v258
      %s264 = smul.u32 2, %s13
      %p265 = scmp.lt.s32.totalorder %s264, 3
      %s266 = scalar_select %p265, %s264, 3
      %s267 = smul.addr %s266, 8
      %s268 = scalar_lea.vmem %s2, %s267
      // Predicated region
      $region29: #{recover_block_forward.2} parent=27 // pred_check
        %p269 = pneg %p78
      $region30: #{recover_block_forward.2} parent=27 // pred_check_branch
        %271 = sbr.rel (%p269) target = $region32
      $region31: #{recover_block_forward.2} parent=27 // pred_region
        %s272 = smul.u32 2, %s13
      $region32: #{recover_block_forward.2} parent=27 // pred_fallthru
        _
    $region28: #{recover_block_forward.2} parent=5 // pred_fallthru
      _
    %p273 = scmp.le.s32.totalorder 2, %s8
    // Predicated region
    $region33: #{recover_block_forward.2} parent=5 // pred_check
      %p274 = pneg %p273
    $region34: #{recover_block_forward.2} parent=5 // pred_check_branch
      %276 = sbr.rel (%p274) target = $region36
    $region35: #{recover_block_forward.2} parent=5 // pred_region
      %s277 = ssub.s32 %s8, 2
      // Predicated region
      $region37: #{recover_block_forward.2} parent=35 // pred_check
        %p278 = pneg %p84
      $region38: #{recover_block_forward.2} parent=35 // pred_check_branch
        %280 = sbr.rel (%p278) target = $region40
      $region39: #{recover_block_forward.2} parent=35 // pred_region
        %s281 = smul.u32 2, %s14
        %p282 = scmp.lt.s32.totalorder %s281, 3
        %s283 = scalar_select %p282, %s281, 3
        %s284 = smul.addr %s283, 8
        %s285 = scalar_lea.vmem %s2, %s284
      $region40: #{recover_block_forward.2} parent=35 // pred_fallthru
        _
    $region36: #{recover_block_forward.2} parent=5 // pred_fallthru
      _
  $region6: #{recover_block_forward.2} parent=0 // loop_footer
    %s12 = sadd.s32 1, %s8
  $region7: #{recover_block_forward.2} parent=0 // loop_footer_branch
    %7 = sbr.rel target = $region3
  $region8: #{recover_block_forward.2} parent=0 // loop_exit
    _

// kernel: custom-call.69
$region0: #{custom-call.69}
  %s0 = inlined_call_operand.vmem [shape: f32[4,16,8], index: 0, kind: input, shape index: {}]
  %s1 = inlined_call_operand.vmem [shape: f32[4,16,8], index: 1, kind: output, shape index: {0}]
  %s2 = inlined_call_operand.vmem [shape: f32[4,8], index: 2, kind: output, shape index: {1}]
  %3 = xla_tuple %s1, %s2
  $region1: #{custom-call.69} parent=0
    #allocation0 [shape = 'u8[16384]{0}', space=vmem, size = 0x4000, scoped, tag = 'operand span for operand 0']
    #allocation1 [shape = 'u8[16384]{0}', space=vmem, size = 0x4000, scoped, tag = 'operand span for operand 1']
    #allocation2 [shape = 'u8[4096]{0}', space=vmem, size = 0x1000, scoped, tag = 'operand span for operand 2']
    #allocation3 [shape = 'u8[4096]{0}', space=vmem, size = 0x1000, scoped, tag = 'packed  for operand 2']
    loop: start=0, step=1, limit=6
    $region2: #{custom-call.69} parent=1 // loop_pre_header
      _
    $region3: #{custom-call.69} parent=1 // loop_header
      %s5 = sphi 0, %s9
      %p6 = scmp.ge.s32.totalorder %s5, 6
      %s12 = sphi 0, %s31
      %s13 = sphi 0, %s27
      %s14 = sphi 0, %s23
      %s15 = sphi 0, %s12
      %s16 = sphi 0, %s13
      %s17 = sphi 0, %s14
      %s18 = sphi 0, %s15
      %s19 = sphi 0, %s16
      %s20 = sphi 0, %s17
      %s46 = sphi 0, %s48
      %s49 = sphi 0, %s46
      %s50 = sphi 0, %s49
      %s66 = sphi 0, %s50
    $region4: #{custom-call.69} parent=1 // loop_header_branch
      %8 = sbr.rel (%p6) target = $region8
    $region5: #{custom-call.69} parent=1 // loop_body
      %s10 = ssub.s32 %s5, 1
      %s11 = ssub.s32 %s5, 2
      %s21 = sadd.s32 1, %s14
      %p22 = scmp.ge.s32.totalorder %s21, 1
      %s23 = scalar_select %p22, 0, %s21
      %s24 = sadd.s32 1, %s13
      %s25 = scalar_select %p22, %s24, %s13
      %p26 = scmp.ge.s32.totalorder %s25, 1
      %s27 = scalar_select %p26, 0, %s25
      %s28 = sadd.s32 1, %s12
      %s29 = scalar_select %p26, %s28, %s12
      %p30 = scmp.ge.s32.totalorder %s29, 4
      %s31 = scalar_select %p30, 0, %s29
      %p32 = scmp.lt.s32.totalorder %s12, 0
      %s33 = ssub.s32 0, %s12
      %s34 = scalar_select %p32, %s33, %s12
      %s35 = sshrl.u32 %s34, 3
      %s36 = ssub.s32 0, %s35
      %s37 = scalar_select %p32, %s36, %s35
      %p38 = scmp.lt.s32.totalorder %s31, 0
      %s39 = ssub.s32 0, %s31
      %s40 = scalar_select %p38, %s39, %s31
      %s41 = sshrl.u32 %s40, 3
      %s42 = ssub.s32 0, %s41
      %s43 = scalar_select %p38, %s42, %s41
      %s44 = ssub.s32 %s37, %s43
      %p45 = scmp.eq.s32.totalorder %s44, 0
      %s47 = sadd.s32 %s46, 1
      %s48 = scalar_select %p45, %s46, %s47
      %p51 = pneg %p45
      %p52 = scmp.eq.s32.totalorder %s5, 3
      %p53 = por %p51, %p52
      %p54 = scmp.ne.s32.totalorder %s46, %s49
      %p55 = scmp.eq.s32.totalorder %s5, 0
      %p56 = por %p54, %p55
      %p57 = scmp.ne.s32.totalorder %s46, %s49
      %p58 = scmp.eq.s32.totalorder %s10, 3
      %p59 = por %p57, %p58
      %p60 = scmp.ne.s32.totalorder %s49, %s50
      %p61 = scmp.eq.s32.totalorder %s10, 0
      %p62 = por %p60, %p61
      %p63 = scmp.ne.s32.totalorder %s49, %s50
      %p64 = scmp.eq.s32.totalorder %s11, 3
      %p65 = por %p63, %p64
      %p67 = scmp.ne.s32.totalorder %s50, %s66
      %p68 = scmp.eq.s32.totalorder %s11, 0
      %p69 = por %p67, %p68
      %p70 = scmp.le.s32.totalorder 1, %s5
      %p71 = scmp.lt.s32.totalorder %s5, 5
      %p72 = pnand %p70, %p71
      %p73 = pneg %p72
      // Predicated region
      $region9: #{custom-call.69} parent=5 // pred_check
        _
      $region10: #{custom-call.69} parent=5 // pred_check_branch
        %75 = sbr.rel (%p72) target = $region12
      $region11: #{custom-call.69} parent=5 // pred_region
        %s76 = ssub.s32 %s5, 1
      $region12: #{custom-call.69} parent=5 // pred_fallthru
        _
      %p77 = scmp.lt.s32.totalorder %s5, 4
      // Predicated region
      $region13: #{custom-call.69} parent=5 // pred_check
        %p78 = pneg %p77
      $region14: #{custom-call.69} parent=5 // pred_check_branch
        %80 = sbr.rel (%p78) target = $region16
      $region15: #{custom-call.69} parent=5 // pred_region
        %s81 = sand.u32 %s5, 1
        %s82 = sand.u32 %s5, 1
        %s83 = smul.addr %s82, 16
        %s84 = scalar_lea.vmem [#allocation0], %s83
        %s85 = smul.u32 2, %s13
        %s86 = sadd.s32 %s14, %s85
        %s87 = smul.addr %s12, 2
        %s88 = sadd.s32 %s86, %s87
        %s89 = smul.addr %s88, 8
        %s90 = scalar_lea.vmem %s0, %s89
        // Predicated region
        $region17: #{custom-call.69} parent=15 // pred_check
          _
        $region18: #{custom-call.69} parent=15 // pred_check_branch
          %92 = sbr.rel (0) target = $region20
        $region19: #{custom-call.69} parent=15 // pred_region
          // Predicated region
          $region21: #{custom-call.69} parent=19 // pred_check
            _
          $region22: #{custom-call.69} parent=19 // pred_check_branch
            %94 = sbr.rel (0) target = $region24
          $region23: #{custom-call.69} parent=19 // pred_region
            // Predicated region
            $region36: #{custom-call.69} parent=23 // pred_check
              _
            $region37: #{custom-call.69} parent=23 // pred_check_branch
              %111 = sbr.rel (0) target = $region39
            $region38: #{custom-call.69} parent=23 // pred_region
              loop: start=0, step=1, limit=1
              $region40: #{custom-call.69} parent=38 // loop_pre_header
                _
              $region41: #{custom-call.69} parent=38 // loop_header
                %s113 = sphi 0, %s117
                %p114 = scmp.ge.s32.totalorder %s113, 1
                %s118 = sphi %s90, %s90
                %s119 = sphi %s84, %s84
              $region42: #{custom-call.69} parent=38 // loop_header_branch
                %116 = sbr.rel (%p114) target = $region46
              $region43: #{custom-call.69} parent=38 // loop_body
                %v120 = vld [vmem:[%s118] sm:$0xff]
                %121 = vst [vmem:[%s119] sm:$0xff] %v120
                %v122 = vld [vmem:[%s118 + $0x8] sm:$0xff]
                %123 = vst [vmem:[%s119 + $0x8] sm:$0xff] %v122
              $region44: #{custom-call.69} parent=38 // loop_footer
                %s117 = sadd.s32 1, %s113
              $region45: #{custom-call.69} parent=38 // loop_footer_branch
                %112 = sbr.rel target = $region41
              $region46: #{custom-call.69} parent=38 // loop_exit
                _
            $region39: #{custom-call.69} parent=23 // pred_fallthru
              _
            // Predicated region
            $region47: #{custom-call.69} parent=23 // pred_check
              _
            $region48: #{custom-call.69} parent=23 // pred_check_branch
              %125 = sbr.rel target = $region50
            $region49: #{custom-call.69} parent=23 // pred_region
              _
            $region50: #{custom-call.69} parent=23 // pred_fallthru
              _
          $region24: #{custom-call.69} parent=19 // pred_fallthru
            _
          // Predicated region
          $region25: #{custom-call.69} parent=19 // pred_check
            _
          $region26: #{custom-call.69} parent=19 // pred_check_branch
            %96 = sbr.rel target = $region28
          $region27: #{custom-call.69} parent=19 // pred_region
            loop: start=0, step=1, limit=1
            $region29: #{custom-call.69} parent=27 // loop_pre_header
              _
            $region30: #{custom-call.69} parent=27 // loop_header
              %s99 = sphi 0, %s103
              %p100 = scmp.ge.s32.totalorder %s99, 1
              %s104 = sphi %s90, %s90
              %s105 = sphi %s84, %s84
            $region31: #{custom-call.69} parent=27 // loop_header_branch
              %102 = sbr.rel (%p100) target = $region35
            $region32: #{custom-call.69} parent=27 // loop_body
              %v106 = vld [vmem:[%s104] sm:$0xff]
              %107 = vst [vmem:[%s105] sm:$0xff] %v106
              %v108 = vld [vmem:[%s104 + $0x8] sm:$0xff]
              %109 = vst [vmem:[%s105 + $0x8] sm:$0xff] %v108
            $region33: #{custom-call.69} parent=27 // loop_footer
              %s103 = sadd.s32 1, %s99
            $region34: #{custom-call.69} parent=27 // loop_footer_branch
              %98 = sbr.rel target = $region30
            $region35: #{custom-call.69} parent=27 // loop_exit
              _
          $region28: #{custom-call.69} parent=19 // pred_fallthru
            _
        $region20: #{custom-call.69} parent=15 // pred_fallthru
          _
        %126 = vnop
      $region16: #{custom-call.69} parent=5 // pred_fallthru
        _
      %p127 = scmp.le.s32.totalorder 1, %s5
      %p128 = scmp.lt.s32.totalorder %s5, 5
      %p129 = pnand %p127, %p128
      %p130 = pneg %p129
      // Predicated region
      $region51: #{custom-call.69} parent=5 // pred_check
        _
      $region52: #{custom-call.69} parent=5 // pred_check_branch
        %132 = sbr.rel (%p129) target = $region54
      $region53: #{custom-call.69} parent=5 // pred_region
        #allocation4 [shape = 'f32[16,128]{1,0}', space=vmem, size = 0x2000, scoped, tag = 'scratch for Householder reflectors']
        %s133 = ssub.s32 %s5, 1
        %s134 = sand.u32 %s10, 1
        %s135 = sand.u32 %s10, 1
        %s136 = smul.addr %s135, 16
        %s137 = scalar_lea.vmem [#allocation0], %s136
        %s138 = sand.u32 %s10, 1
        %s139 = sand.u32 %s10, 1
        %s140 = smul.addr %s139, 16
        %s141 = scalar_lea.vmem [#allocation0], %s140
        %s142 = sand.u32 %s10, 1
        %s143 = sand.u32 %s10, 1
        %s144 = smul.addr %s143, 16
        %s145 = scalar_lea.vmem [#allocation1], %s144
        %p146 = pneg %p62
        %p147 = pneg %p59
        %s148 = sand.u32 %s49, 1
        %s149 = sand.u32 %s49, 1
        %s150 = smul.addr %s149, 4
        %s151 = scalar_lea.vmem [#allocation3], %s150
        %s152 = smul.u32 2, %s16
        %s153 = smul.u32 2, %s16
        %p154 = scmp.lt.s32.totalorder %s15, 0
        %s155 = ssub.s32 0, %s15
        %s156 = scalar_select %p154, %s155, %s15
        %s157 = sshrl.u32 %s156, 3
        %s158 = ssub.s32 0, %s157
        %s159 = scalar_select %p154, %s158, %s157
        %s160 = sand.u32 %s15, 7
        %s161 = scalar_lea.vmem [#allocation2], %s160
        %v162 = vld [vmem:[%s137] sm:$0xff]
        %163 = vst [vmem:[%s145] sm:$0xff] %v162
        %s164 = scalar_lea.vmem %s145, 8 [#allocation1]
        %s165 = scalar_lea.vmem %s137, 8 [#allocation0]
        %v166 = vld [vmem:[%s165] sm:$0xff]
        %167 = vst [vmem:[%s164] sm:$0xff] %v166
        %168 = vst [vmem:[%s161] sm:$0x1] 0.0
        loop: start=0, step=1, limit=8
        $region55: #{custom-call.69} parent=53 // loop_pre_header
          _
        $region56: #{custom-call.69} parent=53 // loop_header
          %s170 = sphi 0, %s174
          %p171 = scmp.ge.s32.totalorder %s170, 8
        $region57: #{custom-call.69} parent=53 // loop_header_branch
          %173 = sbr.rel (%p171) target = $region61
        $region58: #{custom-call.69} parent=53 // loop_body
          %v175 = vld [vmem:[%s145] sm:$0xff]
          %v176 = vlaneseq
          %v177 = vshrl.u32 %v176, 7
          %v179 = vstv %s170
          %vm180 = vcmp.gt.s32.totalorder %v177, %v179
          %v181 = vsel %vm180, %v175, 0.0
          %v182 = vmul.f32 %v181, %v181
          %s183 = scalar_lea.vmem %s145, 8 [#allocation1]
          %v184 = vld [vmem:[%s183] sm:$0xff]
          %v185 = vlaneseq
          %v186 = vshrl.u32 %v185, 7
          %v187 = vadd.s32 %v186, 8
          %v188 = vstv %s170
          %vm189 = vcmp.gt.s32.totalorder %v187, %v188
          %vm190 = vcmp.lt.s32.totalorder %v187, 16
          %vm191 = vmand %vm189, %vm190
          %v192 = vsel %vm191, %v184, 0.0
          %v193 = vmul.f32 %v192, %v192
          %v194 = vadd.f32 %v182, %v193
          %v195 = vrot.slane %v194, 4
          %v196 = vadd.f32 %v194, %v195
          %v197 = vrot.slane %v196, 2
          %v198 = vadd.f32 %v196, %v197
          %v199 = vrot.slane %v198, 1
          %v200 = vadd.f32 %v198, %v199
          %v201 = vrsqrt.pop %v200
          %v202 = vmul.f32 %v200, %v201
          %vm203 = vcmp.eq.f32.partialorder %v200, inf
          %v204 = vsel %vm203, %v200, %v202
          %vm205 = vcmp.eq.f32.partialorder %v200, 0.0
          %v206 = vand.u32 %v200, 2147483648
          %v207 = vsel %vm205, %v206, %v204
          %vm208 = vcmp.eq.f32.partialorder %v200, 0.0
          %s209 = sshrl.u32 %s170, 3
          %s210 = sand.u32 %s170, 7
          %s211 = smul.addr %s209, 8
          %s212 = sadd.s32 %s210, %s211
          %s213 = scalar_lea.vmem %s145, %s212 [#allocation1]
          %v214 = vld [vmem:[%s213] ss:$0 sm:$0xff]
          %v215 = vand.u32 2147483647, %v214
          %v216 = vmax.f32 %v215, 0.0
          %v217 = vand.u32 2147483647, %v207
          %v218 = vmax.f32 %v216, %v217
          %v219 = vrcp.pop %v218
          %v220 = vmul.f32 %v215, %v219
          %v221 = vmul.f32 %v220, %v220
          %v222 = vrcp.pop %v218
          %v223 = vmul.f32 0.0, %v222
          %v224 = vmul.f32 %v223, %v223
          %v225 = vadd.f32 %v221, %v224
          %v226 = vrcp.pop %v218
          %v227 = vmul.f32 %v217, %v226
          %v228 = vmul.f32 %v227, %v227
          %v229 = vadd.f32 %v225, %v228
          %vm230 = vcmp.eq.f32.partialorder %v218, 0.0
          %v231 = vrsqrt.pop %v229
          %v232 = vmul.f32 %v229, %v231
          %vm233 = vcmp.eq.f32.partialorder %v229, inf
          %v234 = vsel %vm233, %v229, %v232
          %vm235 = vcmp.eq.f32.partialorder %v229, 0.0
          %v236 = vand.u32 %v229, 2147483648
          %v237 = vsel %vm235, %v236, %v234
          %v238 = vmul.f32 %v218, %v237
          %v239 = vsel %vm230, 0.0, %v238
          %vm240 = vcmp.lt.f32.partialorder %v214, 0.0
          %v241 = vxor.u32 %v239, 2147483648
          %v242 = vsel %vm240, %v239, %v241
          %v243 = vsub.f32 %v242, %v214
          %v244 = vrcp.pop %v242
          %v245 = vmul.f32 %v243, %v244
          %v246 = vsel %vm208, %v214, %v242
          %v247 = vsel %vm208, 0.0, %v245
          %v248 = vsub.f32 %v214, %v246
          %s249 = smov %s145
          %v250 = vlaneseq
          %v251 = vshrl.u32 %v250, 7
          %v252 = vmov %v251
          %v253 = vld [vmem:[%s249] sm:$0xff]
          %v255 = vstv %s170
          %vm256 = vcmp.gt.s32.totalorder %v252, %v255
          %v257 = vsel %vm256, %v253, 0.0
          %v258 = vrcp.pop %v248
          %v259 = vmul.f32 %v257, %v258
          %v260 = vsel %vm208, 0.0, %v259
          %v261 = vstv %s170
          %v262 = vlaneseq
          %v263 = vand.u32 %v262, 127
          %vm264 = vcmp.eq.s32.totalorder %v263, %v261
          %v265 = vsel %vm264, %v260, 0.0
          %266 = vadd.xlane.f32.xlu0 %v265
          %v267 = vpop.xlane.xlu0 %266
          %268 = vst [vmem:[#allocation4] sm:$0xff] %v267
          %s269 = scalar_lea.vmem %s249, 8
          %v270 = vld [vmem:[%s269] sm:$0xff]
          %v271 = vadd.s32 %v252, 8
          %v272 = vstv %s170
          %vm273 = vcmp.gt.s32.totalorder %v271, %v272
          %vm274 = vcmp.lt.s32.totalorder %v271, 16
          %vm275 = vmand %vm273, %vm274
          %v276 = vsel %vm275, %v270, 0.0
          %v277 = vrcp.pop %v248
          %v278 = vmul.f32 %v276, %v277
          %v279 = vsel %vm208, 0.0, %v278
          %v280 = vstv %s170
          %v281 = vlaneseq
          %v282 = vand.u32 %v281, 127
          %vm283 = vcmp.eq.s32.totalorder %v282, %v280
          %v284 = vsel %vm283, %v279, 0.0
          %285 = vadd.xlane.f32.xlu0 %v284
          %v286 = vpop.xlane.xlu0 %285
          %s287 = scalar_lea.vmem [#allocation4], 8
          %288 = vst [vmem:[%s287] sm:$0xff] %v286
          %s289 = scalar_lea.vmem [#allocation4], %s170
          %290 = vst [vmem:[%s289] sm:$0x1] 1.0
          %v291 = vstv %s170
          %v292 = vlaneseq
          %v293 = vand.u32 %v292, 127
          %vm294 = vcmp.eq.s32.totalorder %v293, %v291
          %v295 = vsel %vm294, %v247, 0.0
          %296 = vadd.xlane.f32.xlu0 %v295
          %v297 = vpop.xlane.xlu0 %296
          %v298 = vstv %s170
          %v299 = vlaneseq
          %v300 = vand.u32 %v299, 127
          %vm301 = vcmp.eq.s32.totalorder %v300, %v298
          %v302 = vld [vmem:[%s161] ss:$0 sm:$0xff]
          %v303 = vsel %vm301, %v297, %v302
          %304 = vst [vmem:[%s161] sm:$0x1] %v303
          %s305 = smov %s145
          %s306 = smov [#allocation4]
          %v307 = vlaneseq
          %v308 = vshrl.u32 %v307, 7
          %v309 = vmov %v308
          %v311 = vld [vmem:[%s306] sm:$0xff]
          %v312 = vld [vmem:[%s305] sm:$0xff]
          %v313 = vmul.f32 %v311, %v312
          %v314 = vadd.s32 %v309, 8
          %s315 = scalar_lea.vmem %s306, 8
          %v316 = vld [vmem:[%s315] sm:$0xff]
          %s317 = scalar_lea.vmem %s305, 8
          %v318 = vld [vmem:[%s317] sm:$0xff]
          %v319 = vmul.f32 %v316, %v318
          %vm320 = vcmp.lt.s32.totalorder %v314, 16
          %v321 = vsel %vm320, %v319, 0.0
          %v322 = vadd.f32 %v313, %v321
          %v323 = vrot.slane %v322, 4
          %v324 = vadd.f32 %v322, %v323
          %v325 = vrot.slane %v324, 2
          %v326 = vadd.f32 %v324, %v325
          %v327 = vrot.slane %v326, 1
          %v328 = vadd.f32 %v326, %v327
          %s329 = smov %s305
          %s330 = smov %s306
          %v331 = vlaneseq
          %v332 = vshrl.u32 %v331, 7
          %v333 = vmov %v332
          %v334 = vmul.f32 %v328, %v297
          %v336 = vlaneseq
          %v337 = vand.u32 %v336, 127
          %v338 = vld [vmem:[%s330] sm:$0xff]
          %v339 = vmul.f32 %v338, %v334
          %v340 = vld [vmem:[%s329] sm:$0xff]
          %v341 = vstv %s170
          %vm342 = vcmp.gt.s32.totalorder %v337, %v341
          %v343 = vsub.f32 %v340, %v339
          %v344 = vsel %vm342, %v343, %v340
          %v345 = vstv %s170
          %v346 = vlaneseq
          %v347 = vand.u32 %v346, 127
          %vm348 = vcmp.eq.s32.totalorder %v347, %v345
          %v349 = vstv %s170
          %vm350 = vcmp.ge.s32.totalorder %v333, %v349
          %vm351 = vmand %vm348, %vm350
          %v352 = vsel %vm351, %v338, %v344
          %353 = vst [vmem:[%s329] sm:$0xff] %v352
          %v354 = vadd.s32 %v333, 8
          %v355 = vlaneseq
          %v356 = vand.u32 %v355, 127
          %s357 = scalar_lea.vmem %s330, 8
          %v358 = vld [vmem:[%s357] sm:$0xff]
          %v359 = vmul.f32 %v358, %v334
          %s360 = scalar_lea.vmem %s329, 8
          %v361 = vld [vmem:[%s360] sm:$0xff]
          %v362 = vstv %s170
          %vm363 = vcmp.gt.s32.totalorder %v356, %v362
          %v364 = vsub.f32 %v361, %v359
          %v365 = vsel %vm363, %v364, %v361
          %v366 = vstv %s170
          %v367 = vlaneseq
          %v368 = vand.u32 %v367, 127
          %vm369 = vcmp.eq.s32.totalorder %v368, %v366
          %v370 = vstv %s170
          %vm371 = vcmp.ge.s32.totalorder %v354, %v370
          %vm372 = vmand %vm369, %vm371
          %v373 = vsel %vm372, %v358, %v365
          %374 = vst [vmem:[%s360] sm:$0xff] %v373
          %s375 = scalar_lea.vmem %s329, %s170
          %v376 = vld [vmem:[%s375] ss:$0 sm:$0xff]
          %v377 = vstv %s170
          %v378 = vlaneseq
          %v379 = vand.u32 %v378, 127
          %vm380 = vcmp.eq.s32.totalorder %v379, %v377
          %v381 = vsel %vm380, %v246, %v376
          %382 = vst [vmem:[%s375] sm:$0x1] %v381
        $region59: #{custom-call.69} parent=53 // loop_footer
          %s174 = sadd.s32 1, %s170
        $region60: #{custom-call.69} parent=53 // loop_footer_branch
          %169 = sbr.rel target = $region56
        $region61: #{custom-call.69} parent=53 // loop_exit
          _
        %s384 = sshllo.u32 0, 4
        %v386 = vld [vmem:[#allocation2] sm:%s384]
        %s387 = sshllo.u32 0, 4
        %388 = vst [vmem:[%s151] sm:%s387] %v386
        %s389 = sand.u32 %s10, 1
        %s390 = sand.u32 %s10, 1
        %s391 = smul.addr %s390, 16
        %s392 = scalar_lea.vmem [#allocation1], %s391
        %s393 = sand.u32 %s49, 1
        %s394 = sand.u32 %s49, 1
        %s395 = smul.addr %s394, 4
        %s396 = scalar_lea.vmem [#allocation3], %s395
        %s397 = smul.u32 2, %s16
        %s398 = sadd.s32 %s17, %s397
        %s399 = smul.addr %s15, 2
        %s400 = sadd.s32 %s398, %s399
        %s401 = smul.addr %s400, 8
        %s402 = scalar_lea.vmem %s1, %s401
        // Predicated region
        $region62: #{custom-call.69} parent=53 // pred_check
          _
        $region63: #{custom-call.69} parent=53 // pred_check_branch
          %404 = sbr.rel (0) target = $region65
        $region64: #{custom-call.69} parent=53 // pred_region
          // Predicated region
          $region66: #{custom-call.69} parent=64 // pred_check
            _
          $region67: #{custom-call.69} parent=64 // pred_check_branch
            %406 = sbr.rel (0) target = $region69
          $region68: #{custom-call.69} parent=64 // pred_region
            // Predicated region
            $region81: #{custom-call.69} parent=68 // pred_check
              _
            $region82: #{custom-call.69} parent=68 // pred_check_branch
              %423 = sbr.rel (0) target = $region84
            $region83: #{custom-call.69} parent=68 // pred_region
              loop: start=0, step=1, limit=1
              $region85: #{custom-call.69} parent=83 // loop_pre_header
                _
              $region86: #{custom-call.69} parent=83 // loop_header
                %s425 = sphi 0, %s429
                %p426 = scmp.ge.s32.totalorder %s425, 1
                %s430 = sphi %s392, %s392
                %s431 = sphi %s402, %s402
              $region87: #{custom-call.69} parent=83 // loop_header_branch
                %428 = sbr.rel (%p426) target = $region91
              $region88: #{custom-call.69} parent=83 // loop_body
                %v432 = vld [vmem:[%s430] sm:$0xff]
                %433 = vst [vmem:[%s431] sm:$0xff] %v432
                %v434 = vld [vmem:[%s430 + $0x8] sm:$0xff]
                %435 = vst [vmem:[%s431 + $0x8] sm:$0xff] %v434
              $region89: #{custom-call.69} parent=83 // loop_footer
                %s429 = sadd.s32 1, %s425
              $region90: #{custom-call.69} parent=83 // loop_footer_branch
                %424 = sbr.rel target = $region86
              $region91: #{custom-call.69} parent=83 // loop_exit
                _
            $region84: #{custom-call.69} parent=68 // pred_fallthru
              _
            // Predicated region
            $region92: #{custom-call.69} parent=68 // pred_check
              _
            $region93: #{custom-call.69} parent=68 // pred_check_branch
              %437 = sbr.rel target = $region95
            $region94: #{custom-call.69} parent=68 // pred_region
              _
            $region95: #{custom-call.69} parent=68 // pred_fallthru
              _
          $region69: #{custom-call.69} parent=64 // pred_fallthru
            _
          // Predicated region
          $region70: #{custom-call.69} parent=64 // pred_check
            _
          $region71: #{custom-call.69} parent=64 // pred_check_branch
            %408 = sbr.rel target = $region73
          $region72: #{custom-call.69} parent=64 // pred_region
            loop: start=0, step=1, limit=1
            $region74: #{custom-call.69} parent=72 // loop_pre_header
              _
            $region75: #{custom-call.69} parent=72 // loop_header
              %s411 = sphi 0, %s415
              %p412 = scmp.ge.s32.totalorder %s411, 1
              %s416 = sphi %s392, %s392
              %s417 = sphi %s402, %s402
            $region76: #{custom-call.69} parent=72 // loop_header_branch
              %414 = sbr.rel (%p412) target = $region80
            $region77: #{custom-call.69} parent=72 // loop_body
              %v418 = vld [vmem:[%s416] sm:$0xff]
              %419 = vst [vmem:[%s417] sm:$0xff] %v418
              %v420 = vld [vmem:[%s416 + $0x8] sm:$0xff]
              %421 = vst [vmem:[%s417 + $0x8] sm:$0xff] %v420
            $region78: #{custom-call.69} parent=72 // loop_footer
              %s415 = sadd.s32 1, %s411
            $region79: #{custom-call.69} parent=72 // loop_footer_branch
              %410 = sbr.rel target = $region75
            $region80: #{custom-call.69} parent=72 // loop_exit
              _
          $region73: #{custom-call.69} parent=64 // pred_fallthru
            _
        $region65: #{custom-call.69} parent=53 // pred_fallthru
          _
        %438 = vnop
        // Predicated region
        $region96: #{custom-call.69} parent=53 // pred_check
          %p439 = pneg %p59
        $region97: #{custom-call.69} parent=53 // pred_check_branch
          %441 = sbr.rel (%p439) target = $region99
        $region98: #{custom-call.69} parent=53 // pred_region
          %p442 = scmp.lt.s32.totalorder %s15, 0
          %s443 = ssub.s32 0, %s15
          %s444 = scalar_select %p442, %s443, %s15
          %s445 = sshrl.u32 %s444, 3
          %s446 = ssub.s32 0, %s445
          %s447 = scalar_select %p442, %s446, %s445
          %s448 = smul.addr %s447, 4
          %s449 = scalar_lea.vmem %s2, %s448
          // Predicated region
          $region100: #{custom-call.69} parent=98 // pred_check
            _
          $region101: #{custom-call.69} parent=98 // pred_check_branch
            %451 = sbr.rel (0) target = $region103
          $region102: #{custom-call.69} parent=98 // pred_region
            // Predicated region
            $region104: #{custom-call.69} parent=102 // pred_check
              _
            $region105: #{custom-call.69} parent=102 // pred_check_branch
              %453 = sbr.rel target = $region107
            $region106: #{custom-call.69} parent=102 // pred_region
              // Predicated region
              $region119: #{custom-call.69} parent=106 // pred_check
                _
              $region120: #{custom-call.69} parent=106 // pred_check_branch
                %468 = sbr.rel (0) target = $region122
              $region121: #{custom-call.69} parent=106 // pred_region
                loop: start=0, step=1, limit=1
                $region123: #{custom-call.69} parent=121 // loop_pre_header
                  _
                $region124: #{custom-call.69} parent=121 // loop_header
                  %s471 = sphi 0, %s475
                  %p472 = scmp.ge.s32.totalorder %s471, 1
                  %s476 = sphi %s396, %s396
                  %s477 = sphi %s449, %s449
                $region125: #{custom-call.69} parent=121 // loop_header_branch
                  %474 = sbr.rel (%p472) target = $region129
                $region126: #{custom-call.69} parent=121 // loop_body
                  %v478 = vld [vmem:[%s476] sm:$0xf]
                  %479 = vst [vmem:[%s477] sm:$0xf] %v478
                $region127: #{custom-call.69} parent=121 // loop_footer
                  %s475 = sadd.s32 1, %s471
                $region128: #{custom-call.69} parent=121 // loop_footer_branch
                  %470 = sbr.rel target = $region124
                $region129: #{custom-call.69} parent=121 // loop_exit
                  _
              $region122: #{custom-call.69} parent=106 // pred_fallthru
                _
            $region107: #{custom-call.69} parent=102 // pred_fallthru
              _
            // Predicated region
            $region108: #{custom-call.69} parent=102 // pred_check
              _
            $region109: #{custom-call.69} parent=102 // pred_check_branch
              %455 = sbr.rel (0) target = $region111
            $region110: #{custom-call.69} parent=102 // pred_region
              loop: start=0, step=1, limit=1
              $region112: #{custom-call.69} parent=110 // loop_pre_header
                _
              $region113: #{custom-call.69} parent=110 // loop_header
                %s458 = sphi 0, %s462
                %p459 = scmp.ge.s32.totalorder %s458, 1
                %s463 = sphi %s396, %s396
                %s464 = sphi %s449, %s449
              $region114: #{custom-call.69} parent=110 // loop_header_branch
                %461 = sbr.rel (%p459) target = $region118
              $region115: #{custom-call.69} parent=110 // loop_body
                %v465 = vld [vmem:[%s463] sm:$0xf]
                %466 = vst [vmem:[%s464] sm:$0xf] %v465
              $region116: #{custom-call.69} parent=110 // loop_footer
                %s462 = sadd.s32 1, %s458
              $region117: #{custom-call.69} parent=110 // loop_footer_branch
                %457 = sbr.rel target = $region113
              $region118: #{custom-call.69} parent=110 // loop_exit
                _
            $region111: #{custom-call.69} parent=102 // pred_fallthru
              _
          $region103: #{custom-call.69} parent=98 // pred_fallthru
            _
          %480 = vnop
        $region99: #{custom-call.69} parent=53 // pred_fallthru
          _
      $region54: #{custom-call.69} parent=5 // pred_fallthru
        _
      %p481 = scmp.le.s32.totalorder 2, %s5
      // Predicated region
      $region130: #{custom-call.69} parent=5 // pred_check
        %p482 = pneg %p481
      $region131: #{custom-call.69} parent=5 // pred_check_branch
        %484 = sbr.rel (%p482) target = $region133
      $region132: #{custom-call.69} parent=5 // pred_region
        %s485 = ssub.s32 %s5, 2
        %s486 = sand.u32 %s11, 1
        %s487 = sand.u32 %s11, 1
        %s488 = smul.addr %s487, 16
        %s489 = scalar_lea.vmem [#allocation1], %s488
        // Predicated region
        $region134: #{custom-call.69} parent=132 // pred_check
          %p490 = pneg %p65
        $region135: #{custom-call.69} parent=132 // pred_check_branch
          %492 = sbr.rel (%p490) target = $region137
        $region136: #{custom-call.69} parent=132 // pred_region
          %s493 = sand.u32 %s50, 1
          %s494 = sand.u32 %s50, 1
          %s495 = smul.addr %s494, 4
          %s496 = scalar_lea.vmem [#allocation3], %s495
        $region137: #{custom-call.69} parent=132 // pred_fallthru
          _
      $region133: #{custom-call.69} parent=5 // pred_fallthru
        _
    $region6: #{custom-call.69} parent=1 // loop_footer
      %s9 = sadd.s32 1, %s5
    $region7: #{custom-call.69} parent=1 // loop_footer_branch
      %4 = sbr.rel target = $region3
    $region8: #{custom-call.69} parent=1 // loop_exit
      _

// kernel: custom-call.62
$region0: #{custom-call.62}
  %s0 = inlined_call_operand.hbm [shape: pred[4], index: 0, kind: output, shape index: {}]

// kernel: custom-call.67
$region0: #{custom-call.67}
  %s0 = inlined_call_operand.vmem [shape: f32[4,8,8], index: 0, kind: input, shape index: {}]
  %s1 = inlined_call_operand.vmem [shape: f32[4,8,8], index: 1, kind: output, shape index: {}]
  $region1: #{custom-call.67} parent=0
    #allocation0 [shape = 'u8[8192]{0}', space=vmem, size = 0x2000, scoped, tag = 'operand span for operand 0']
    #allocation1 [shape = 'u8[8192]{0}', space=vmem, size = 0x2000, scoped, tag = 'operand span for operand 1']
    loop: start=0, step=1, limit=6
    $region2: #{custom-call.67} parent=1 // loop_pre_header
      _
    $region3: #{custom-call.67} parent=1 // loop_header
      %s3 = sphi 0, %s7
      %p4 = scmp.ge.s32.totalorder %s3, 6
      %s10 = sphi 0, %s29
      %s11 = sphi 0, %s25
      %s12 = sphi 0, %s21
      %s13 = sphi 0, %s10
      %s14 = sphi 0, %s11
      %s15 = sphi 0, %s12
      %s16 = sphi 0, %s13
      %s17 = sphi 0, %s14
      %s18 = sphi 0, %s15
    $region4: #{custom-call.67} parent=1 // loop_header_branch
      %6 = sbr.rel (%p4) target = $region8
    $region5: #{custom-call.67} parent=1 // loop_body
      %s8 = ssub.s32 %s3, 1
      %s9 = ssub.s32 %s3, 2
      %s19 = sadd.s32 1, %s12
      %p20 = scmp.ge.s32.totalorder %s19, 1
      %s21 = scalar_select %p20, 0, %s19
      %s22 = sadd.s32 1, %s11
      %s23 = scalar_select %p20, %s22, %s11
      %p24 = scmp.ge.s32.totalorder %s23, 1
      %s25 = scalar_select %p24, 0, %s23
      %s26 = sadd.s32 1, %s10
      %s27 = scalar_select %p24, %s26, %s10
      %p28 = scmp.ge.s32.totalorder %s27, 4
      %s29 = scalar_select %p28, 0, %s27
      %p30 = scmp.le.s32.totalorder 1, %s3
      %p31 = scmp.lt.s32.totalorder %s3, 5
      %p32 = pnand %p30, %p31
      %p33 = pneg %p32
      // Predicated region
      $region9: #{custom-call.67} parent=5 // pred_check
        _
      $region10: #{custom-call.67} parent=5 // pred_check_branch
        %35 = sbr.rel (%p32) target = $region12
      $region11: #{custom-call.67} parent=5 // pred_region
        %s36 = ssub.s32 %s3, 1
      $region12: #{custom-call.67} parent=5 // pred_fallthru
        _
      %p37 = scmp.lt.s32.totalorder %s3, 4
      // Predicated region
      $region13: #{custom-call.67} parent=5 // pred_check
        %p38 = pneg %p37
      $region14: #{custom-call.67} parent=5 // pred_check_branch
        %40 = sbr.rel (%p38) target = $region16
      $region15: #{custom-call.67} parent=5 // pred_region
        %s41 = sand.u32 %s3, 1
        %s42 = sand.u32 %s3, 1
        %s43 = smul.addr %s42, 8
        %s44 = scalar_lea.vmem [#allocation0], %s43
        %s45 = sadd.s32 %s12, %s11
        %s46 = sadd.s32 %s45, %s10
        %s47 = smul.addr %s46, 8
        %s48 = scalar_lea.vmem %s0, %s47
        // Predicated region
        $region17: #{custom-call.67} parent=15 // pred_check
          _
        $region18: #{custom-call.67} parent=15 // pred_check_branch
          %50 = sbr.rel (0) target = $region20
        $region19: #{custom-call.67} parent=15 // pred_region
          // Predicated region
          $region21: #{custom-call.67} parent=19 // pred_check
            _
          $region22: #{custom-call.67} parent=19 // pred_check_branch
            %52 = sbr.rel (0) target = $region24
          $region23: #{custom-call.67} parent=19 // pred_region
            // Predicated region
            $region36: #{custom-call.67} parent=23 // pred_check
              _
            $region37: #{custom-call.67} parent=23 // pred_check_branch
              %67 = sbr.rel (0) target = $region39
            $region38: #{custom-call.67} parent=23 // pred_region
              loop: start=0, step=1, limit=1
              $region40: #{custom-call.67} parent=38 // loop_pre_header
                _
              $region41: #{custom-call.67} parent=38 // loop_header
                %s69 = sphi 0, %s73
                %p70 = scmp.ge.s32.totalorder %s69, 1
                %s74 = sphi %s48, %s48
                %s75 = sphi %s44, %s44
              $region42: #{custom-call.67} parent=38 // loop_header_branch
                %72 = sbr.rel (%p70) target = $region46
              $region43: #{custom-call.67} parent=38 // loop_body
                %v76 = vld [vmem:[%s74] sm:$0xff]
                %77 = vst [vmem:[%s75] sm:$0xff] %v76
              $region44: #{custom-call.67} parent=38 // loop_footer
                %s73 = sadd.s32 1, %s69
              $region45: #{custom-call.67} parent=38 // loop_footer_branch
                %68 = sbr.rel target = $region41
              $region46: #{custom-call.67} parent=38 // loop_exit
                _
            $region39: #{custom-call.67} parent=23 // pred_fallthru
              _
            // Predicated region
            $region47: #{custom-call.67} parent=23 // pred_check
              _
            $region48: #{custom-call.67} parent=23 // pred_check_branch
              %79 = sbr.rel target = $region50
            $region49: #{custom-call.67} parent=23 // pred_region
              _
            $region50: #{custom-call.67} parent=23 // pred_fallthru
              _
          $region24: #{custom-call.67} parent=19 // pred_fallthru
            _
          // Predicated region
          $region25: #{custom-call.67} parent=19 // pred_check
            _
          $region26: #{custom-call.67} parent=19 // pred_check_branch
            %54 = sbr.rel target = $region28
          $region27: #{custom-call.67} parent=19 // pred_region
            loop: start=0, step=1, limit=1
            $region29: #{custom-call.67} parent=27 // loop_pre_header
              _
            $region30: #{custom-call.67} parent=27 // loop_header
              %s57 = sphi 0, %s61
              %p58 = scmp.ge.s32.totalorder %s57, 1
              %s62 = sphi %s48, %s48
              %s63 = sphi %s44, %s44
            $region31: #{custom-call.67} parent=27 // loop_header_branch
              %60 = sbr.rel (%p58) target = $region35
            $region32: #{custom-call.67} parent=27 // loop_body
              %v64 = vld [vmem:[%s62] sm:$0xff]
              %65 = vst [vmem:[%s63] sm:$0xff] %v64
            $region33: #{custom-call.67} parent=27 // loop_footer
              %s61 = sadd.s32 1, %s57
            $region34: #{custom-call.67} parent=27 // loop_footer_branch
              %56 = sbr.rel target = $region30
            $region35: #{custom-call.67} parent=27 // loop_exit
              _
          $region28: #{custom-call.67} parent=19 // pred_fallthru
            _
        $region20: #{custom-call.67} parent=15 // pred_fallthru
          _
        %80 = vnop
      $region16: #{custom-call.67} parent=5 // pred_fallthru
        _
      %p81 = scmp.le.s32.totalorder 1, %s3
      %p82 = scmp.lt.s32.totalorder %s3, 5
      %p83 = pnand %p81, %p82
      %p84 = pneg %p83
      // Predicated region
      $region51: #{custom-call.67} parent=5 // pred_check
        _
      $region52: #{custom-call.67} parent=5 // pred_check_branch
        %86 = sbr.rel (%p83) target = $region54
      $region53: #{custom-call.67} parent=5 // pred_region
        %s87 = ssub.s32 %s3, 1
        %s88 = sand.u32 %s8, 1
        %s89 = sand.u32 %s8, 1
        %s90 = smul.addr %s89, 8
        %s91 = scalar_lea.vmem [#allocation0], %s90
        %s92 = sand.u32 %s8, 1
        %s93 = sand.u32 %s8, 1
        %s94 = smul.addr %s93, 8
        %s95 = scalar_lea.vmem [#allocation0], %s94
        %s96 = sand.u32 %s8, 1
        %s97 = sand.u32 %s8, 1
        %s98 = smul.addr %s97, 8
        %s99 = scalar_lea.vmem [#allocation1], %s98
        %100 = vst [vmem:[%s99] sm:$0xff] 0.0
        %vm101 = vcmask 7168
        %v102 = vld [vmem:[%s99] ss:$0 sm:$0xff]
        %v103 = vld [vmem:[%s91] ss:$0 sm:$0xff]
        %v104 = vmul.f32 %v102, %v102
        %105 = vadd.xlane.f32.xlu0 %v104
        %v106 = vpop.xlane.xlu0 %105
        %v107 = vsub.f32 %v103, %v106
        %v108 = vrsqrt.pop %v107
        %v109 = vld [vmem:[%s91] sm:$0xff]
        %v110 = vld [vmem:[%s99] sm:$0xff]
        %v111 = vmul.f32 %v110, %v102
        %112 = vadd.xlane.f32.xlu0 %v111
        %v113 = vpop.xlane.xlu0 %112
        %v114 = vsub.f32 %v109, %v113
        %v115 = vmul.f32 %v114, %v108
        %v116 = vsel %vm101, %v115, 0.0
        %v117 = vadd.f32 %v110, %v116
        %118 = vst [vmem:[%s99] sm:$0xff] %v117
        %vm119 = vcmask 15368
        %s120 = scalar_lea.vmem %s99, 1 [#allocation1]
        %v121 = vld [vmem:[%s120] ss:$0 sm:$0xff]
        %s122 = scalar_lea.vmem %s91, 1 [#allocation0]
        %v123 = vld [vmem:[%s122] ss:$0 sm:$0xff]
        %v124 = vmul.f32 %v121, %v121
        %125 = vadd.xlane.f32.xlu0 %v124
        %v126 = vpop.xlane.xlu0 %125
        %v127 = vsub.f32 %v123, %v126
        %v128 = vrsqrt.pop %v127
        %v129 = vld [vmem:[%s91] sm:$0xff]
        %v130 = vld [vmem:[%s99] sm:$0xff]
        %v131 = vmul.f32 %v130, %v121
        %132 = vadd.xlane.f32.xlu0 %v131
        %v133 = vpop.xlane.xlu0 %132
        %v134 = vsub.f32 %v129, %v133
        %v135 = vmul.f32 %v134, %v128
        %vm136 = vcmask 1047553
        %vm137 = vmand %vm119, %vm136
        %v138 = vsel %vm137, %v135, 0.0
        %v139 = vadd.f32 %v130, %v138
        %140 = vst [vmem:[%s99] sm:$0xff] %v139
        %vm141 = vcmask 23568
        %s142 = scalar_lea.vmem %s99, 2 [#allocation1]
        %v143 = vld [vmem:[%s142] ss:$0 sm:$0xff]
        %s144 = scalar_lea.vmem %s91, 2 [#allocation0]
        %v145 = vld [vmem:[%s144] ss:$0 sm:$0xff]
        %v146 = vmul.f32 %v143, %v143
        %147 = vadd.xlane.f32.xlu0 %v146
        %v148 = vpop.xlane.xlu0 %147
        %v149 = vsub.f32 %v145, %v148
        %v150 = vrsqrt.pop %v149
        %v151 = vld [vmem:[%s91] sm:$0xff]
        %v152 = vld [vmem:[%s99] sm:$0xff]
        %v153 = vmul.f32 %v152, %v143
        %154 = vadd.xlane.f32.xlu0 %v153
        %v155 = vpop.xlane.xlu0 %154
        %v156 = vsub.f32 %v151, %v155
        %v157 = vmul.f32 %v156, %v150
        %vm158 = vcmask 1047554
        %vm159 = vmand %vm141, %vm158
        %v160 = vsel %vm159, %v157, 0.0
        %v161 = vadd.f32 %v152, %v160
        %162 = vst [vmem:[%s99] sm:$0xff] %v161
        %vm163 = vcmask 31768
        %s164 = scalar_lea.vmem %s99, 3 [#allocation1]
        %v165 = vld [vmem:[%s164] ss:$0 sm:$0xff]
        %s166 = scalar_lea.vmem %s91, 3 [#allocation0]
        %v167 = vld [vmem:[%s166] ss:$0 sm:$0xff]
        %v168 = vmul.f32 %v165, %v165
        %169 = vadd.xlane.f32.xlu0 %v168
        %v170 = vpop.xlane.xlu0 %169
        %v171 = vsub.f32 %v167, %v170
        %v172 = vrsqrt.pop %v171
        %v173 = vld [vmem:[%s91] sm:$0xff]
        %v174 = vld [vmem:[%s99] sm:$0xff]
        %v175 = vmul.f32 %v174, %v165
        %176 = vadd.xlane.f32.xlu0 %v175
        %v177 = vpop.xlane.xlu0 %176
        %v178 = vsub.f32 %v173, %v177
        %v179 = vmul.f32 %v178, %v172
        %vm180 = vcmask 1047555
        %vm181 = vmand %vm163, %vm180
        %v182 = vsel %vm181, %v179, 0.0
        %v183 = vadd.f32 %v174, %v182
        %184 = vst [vmem:[%s99] sm:$0xff] %v183
        %vm185 = vcmask 39968
        %s186 = scalar_lea.vmem %s99, 4 [#allocation1]
        %v187 = vld [vmem:[%s186] ss:$0 sm:$0xff]
        %s188 = scalar_lea.vmem %s91, 4 [#allocation0]
        %v189 = vld [vmem:[%s188] ss:$0 sm:$0xff]
        %v190 = vmul.f32 %v187, %v187
        %191 = vadd.xlane.f32.xlu0 %v190
        %v192 = vpop.xlane.xlu0 %191
        %v193 = vsub.f32 %v189, %v192
        %v194 = vrsqrt.pop %v193
        %v195 = vld [vmem:[%s91] sm:$0xff]
        %v196 = vld [vmem:[%s99] sm:$0xff]
        %v197 = vmul.f32 %v196, %v187
        %198 = vadd.xlane.f32.xlu0 %v197
        %v199 = vpop.xlane.xlu0 %198
        %v200 = vsub.f32 %v195, %v199
        %v201 = vmul.f32 %v200, %v194
        %vm202 = vcmask 1047556
        %vm203 = vmand %vm185, %vm202
        %v204 = vsel %vm203, %v201, 0.0
        %v205 = vadd.f32 %v196, %v204
        %206 = vst [vmem:[%s99] sm:$0xff] %v205
        %vm207 = vcmask 48168
        %s208 = scalar_lea.vmem %s99, 5 [#allocation1]
        %v209 = vld [vmem:[%s208] ss:$0 sm:$0xff]
        %s210 = scalar_lea.vmem %s91, 5 [#allocation0]
        %v211 = vld [vmem:[%s210] ss:$0 sm:$0xff]
        %v212 = vmul.f32 %v209, %v209
        %213 = vadd.xlane.f32.xlu0 %v212
        %v214 = vpop.xlane.xlu0 %213
        %v215 = vsub.f32 %v211, %v214
        %v216 = vrsqrt.pop %v215
        %v217 = vld [vmem:[%s91] sm:$0xff]
        %v218 = vld [vmem:[%s99] sm:$0xff]
        %v219 = vmul.f32 %v218, %v209
        %220 = vadd.xlane.f32.xlu0 %v219
        %v221 = vpop.xlane.xlu0 %220
        %v222 = vsub.f32 %v217, %v221
        %v223 = vmul.f32 %v222, %v216
        %vm224 = vcmask 1047557
        %vm225 = vmand %vm207, %vm224
        %v226 = vsel %vm225, %v223, 0.0
        %v227 = vadd.f32 %v218, %v226
        %228 = vst [vmem:[%s99] sm:$0xff] %v227
        %vm229 = vcmask 56368
        %s230 = scalar_lea.vmem %s99, 6 [#allocation1]
        %v231 = vld [vmem:[%s230] ss:$0 sm:$0xff]
        %s232 = scalar_lea.vmem %s91, 6 [#allocation0]
        %v233 = vld [vmem:[%s232] ss:$0 sm:$0xff]
        %v234 = vmul.f32 %v231, %v231
        %235 = vadd.xlane.f32.xlu0 %v234
        %v236 = vpop.xlane.xlu0 %235
        %v237 = vsub.f32 %v233, %v236
        %v238 = vrsqrt.pop %v237
        %v239 = vld [vmem:[%s91] sm:$0xff]
        %v240 = vld [vmem:[%s99] sm:$0xff]
        %v241 = vmul.f32 %v240, %v231
        %242 = vadd.xlane.f32.xlu0 %v241
        %v243 = vpop.xlane.xlu0 %242
        %v244 = vsub.f32 %v239, %v243
        %v245 = vmul.f32 %v244, %v238
        %vm246 = vcmask 1047558
        %vm247 = vmand %vm229, %vm246
        %v248 = vsel %vm247, %v245, 0.0
        %v249 = vadd.f32 %v240, %v248
        %250 = vst [vmem:[%s99] sm:$0xff] %v249
        %vm251 = vcmask 64568
        %s252 = scalar_lea.vmem %s99, 7 [#allocation1]
        %v253 = vld [vmem:[%s252] ss:$0 sm:$0xff]
        %s254 = scalar_lea.vmem %s91, 7 [#allocation0]
        %v255 = vld [vmem:[%s254] ss:$0 sm:$0xff]
        %v256 = vmul.f32 %v253, %v253
        %257 = vadd.xlane.f32.xlu0 %v256
        %v258 = vpop.xlane.xlu0 %257
        %v259 = vsub.f32 %v255, %v258
        %v260 = vrsqrt.pop %v259
        %v261 = vld [vmem:[%s91] sm:$0xff]
        %v262 = vld [vmem:[%s99] sm:$0xff]
        %v263 = vmul.f32 %v262, %v253
        %264 = vadd.xlane.f32.xlu0 %v263
        %v265 = vpop.xlane.xlu0 %264
        %v266 = vsub.f32 %v261, %v265
        %v267 = vmul.f32 %v266, %v260
        %vm268 = vcmask 1047559
        %vm269 = vmand %vm251, %vm268
        %v270 = vsel %vm269, %v267, 0.0
        %v271 = vadd.f32 %v262, %v270
        %272 = vst [vmem:[%s99] sm:$0xff] %v271
        %s273 = sand.u32 %s8, 1
        %s274 = sand.u32 %s8, 1
        %s275 = smul.addr %s274, 8
        %s276 = scalar_lea.vmem [#allocation1], %s275
        %s277 = sadd.s32 %s15, %s14
        %s278 = sadd.s32 %s277, %s13
        %s279 = smul.addr %s278, 8
        %s280 = scalar_lea.vmem %s1, %s279
        // Predicated region
        $region55: #{custom-call.67} parent=53 // pred_check
          _
        $region56: #{custom-call.67} parent=53 // pred_check_branch
          %282 = sbr.rel (0) target = $region58
        $region57: #{custom-call.67} parent=53 // pred_region
          // Predicated region
          $region59: #{custom-call.67} parent=57 // pred_check
            _
          $region60: #{custom-call.67} parent=57 // pred_check_branch
            %284 = sbr.rel (0) target = $region62
          $region61: #{custom-call.67} parent=57 // pred_region
            // Predicated region
            $region74: #{custom-call.67} parent=61 // pred_check
              _
            $region75: #{custom-call.67} parent=61 // pred_check_branch
              %299 = sbr.rel (0) target = $region77
            $region76: #{custom-call.67} parent=61 // pred_region
              loop: start=0, step=1, limit=1
              $region78: #{custom-call.67} parent=76 // loop_pre_header
                _
              $region79: #{custom-call.67} parent=76 // loop_header
                %s301 = sphi 0, %s305
                %p302 = scmp.ge.s32.totalorder %s301, 1
                %s306 = sphi %s276, %s276
                %s307 = sphi %s280, %s280
              $region80: #{custom-call.67} parent=76 // loop_header_branch
                %304 = sbr.rel (%p302) target = $region84
              $region81: #{custom-call.67} parent=76 // loop_body
                %v308 = vld [vmem:[%s306] sm:$0xff]
                %309 = vst [vmem:[%s307] sm:$0xff] %v308
              $region82: #{custom-call.67} parent=76 // loop_footer
                %s305 = sadd.s32 1, %s301
              $region83: #{custom-call.67} parent=76 // loop_footer_branch
                %300 = sbr.rel target = $region79
              $region84: #{custom-call.67} parent=76 // loop_exit
                _
            $region77: #{custom-call.67} parent=61 // pred_fallthru
              _
            // Predicated region
            $region85: #{custom-call.67} parent=61 // pred_check
              _
            $region86: #{custom-call.67} parent=61 // pred_check_branch
              %311 = sbr.rel target = $region88
            $region87: #{custom-call.67} parent=61 // pred_region
              _
            $region88: #{custom-call.67} parent=61 // pred_fallthru
              _
          $region62: #{custom-call.67} parent=57 // pred_fallthru
            _
          // Predicated region
          $region63: #{custom-call.67} parent=57 // pred_check
            _
          $region64: #{custom-call.67} parent=57 // pred_check_branch
            %286 = sbr.rel target = $region66
          $region65: #{custom-call.67} parent=57 // pred_region
            loop: start=0, step=1, limit=1
            $region67: #{custom-call.67} parent=65 // loop_pre_header
              _
            $region68: #{custom-call.67} parent=65 // loop_header
              %s289 = sphi 0, %s293
              %p290 = scmp.ge.s32.totalorder %s289, 1
              %s294 = sphi %s276, %s276
              %s295 = sphi %s280, %s280
            $region69: #{custom-call.67} parent=65 // loop_header_branch
              %292 = sbr.rel (%p290) target = $region73
            $region70: #{custom-call.67} parent=65 // loop_body
              %v296 = vld [vmem:[%s294] sm:$0xff]
              %297 = vst [vmem:[%s295] sm:$0xff] %v296
            $region71: #{custom-call.67} parent=65 // loop_footer
              %s293 = sadd.s32 1, %s289
            $region72: #{custom-call.67} parent=65 // loop_footer_branch
              %288 = sbr.rel target = $region68
            $region73: #{custom-call.67} parent=65 // loop_exit
              _
          $region66: #{custom-call.67} parent=57 // pred_fallthru
            _
        $region58: #{custom-call.67} parent=53 // pred_fallthru
          _
        %312 = vnop
      $region54: #{custom-call.67} parent=5 // pred_fallthru
        _
      %p313 = scmp.le.s32.totalorder 2, %s3
      // Predicated region
      $region89: #{custom-call.67} parent=5 // pred_check
        %p314 = pneg %p313
      $region90: #{custom-call.67} parent=5 // pred_check_branch
        %316 = sbr.rel (%p314) target = $region92
      $region91: #{custom-call.67} parent=5 // pred_region
        %s317 = ssub.s32 %s3, 2
        %s318 = sand.u32 %s9, 1
        %s319 = sand.u32 %s9, 1
        %s320 = smul.addr %s319, 8
        %s321 = scalar_lea.vmem [#allocation1], %s320
      $region92: #{custom-call.67} parent=5 // pred_fallthru
        _
    $region6: #{custom-call.67} parent=1 // loop_footer
      %s7 = sadd.s32 1, %s3
    $region7: #{custom-call.67} parent=1 // loop_footer_branch
      %2 = sbr.rel target = $region3
    $region8: #{custom-call.67} parent=1 // loop_exit
      _

// kernel: custom-call.68
$region0: #{custom-call.68}
  %s0 = inlined_call_operand.vmem [shape: f32[4,1,8,8], index: 0, kind: input, shape index: {}]
  %s1 = inlined_call_operand.vmem [shape: f32[4,1,8,8], index: 1, kind: output, shape index: {}]
  $region1: #{custom-call.68} parent=0
    #allocation0 [shape = 'u8[8192]{0}', space=vmem, size = 0x2000, scoped, tag = 'operand span for operand 0']
    #allocation1 [shape = 'u8[8192]{0}', space=vmem, size = 0x2000, scoped, tag = 'operand span for operand 1']
    loop: start=0, step=1, limit=6
    $region2: #{custom-call.68} parent=1 // loop_pre_header
      _
    $region3: #{custom-call.68} parent=1 // loop_header
      %s3 = sphi 0, %s7
      %p4 = scmp.ge.s32.totalorder %s3, 6
      %s10 = sphi 0, %s36
      %s11 = sphi 0, %s32
      %s12 = sphi 0, %s28
      %s13 = sphi 0, %s24
      %s14 = sphi 0, %s10
      %s15 = sphi 0, %s11
      %s16 = sphi 0, %s12
      %s17 = sphi 0, %s13
      %s18 = sphi 0, %s14
      %s19 = sphi 0, %s15
      %s20 = sphi 0, %s16
      %s21 = sphi 0, %s17
    $region4: #{custom-call.68} parent=1 // loop_header_branch
      %6 = sbr.rel (%p4) target = $region8
    $region5: #{custom-call.68} parent=1 // loop_body
      %s8 = ssub.s32 %s3, 1
      %s9 = ssub.s32 %s3, 2
      %s22 = sadd.s32 1, %s13
      %p23 = scmp.ge.s32.totalorder %s22, 1
      %s24 = scalar_select %p23, 0, %s22
      %s25 = sadd.s32 1, %s12
      %s26 = scalar_select %p23, %s25, %s12
      %p27 = scmp.ge.s32.totalorder %s26, 1
      %s28 = scalar_select %p27, 0, %s26
      %s29 = sadd.s32 1, %s11
      %s30 = scalar_select %p27, %s29, %s11
      %p31 = scmp.ge.s32.totalorder %s30, 1
      %s32 = scalar_select %p31, 0, %s30
      %s33 = sadd.s32 1, %s10
      %s34 = scalar_select %p31, %s33, %s10
      %p35 = scmp.ge.s32.totalorder %s34, 4
      %s36 = scalar_select %p35, 0, %s34
      %p37 = scmp.le.s32.totalorder 1, %s3
      %p38 = scmp.lt.s32.totalorder %s3, 5
      %p39 = pnand %p37, %p38
      %p40 = pneg %p39
      // Predicated region
      $region9: #{custom-call.68} parent=5 // pred_check
        _
      $region10: #{custom-call.68} parent=5 // pred_check_branch
        %42 = sbr.rel (%p39) target = $region12
      $region11: #{custom-call.68} parent=5 // pred_region
        %s43 = ssub.s32 %s3, 1
      $region12: #{custom-call.68} parent=5 // pred_fallthru
        _
      %p44 = scmp.lt.s32.totalorder %s3, 4
      // Predicated region
      $region13: #{custom-call.68} parent=5 // pred_check
        %p45 = pneg %p44
      $region14: #{custom-call.68} parent=5 // pred_check_branch
        %47 = sbr.rel (%p45) target = $region16
      $region15: #{custom-call.68} parent=5 // pred_region
        %s48 = sand.u32 %s3, 1
        %s49 = sand.u32 %s3, 1
        %s50 = smul.addr %s49, 8
        %s51 = scalar_lea.vmem [#allocation0], %s50
        %s52 = sadd.s32 %s13, %s12
        %s53 = sadd.s32 %s52, %s11
        %s54 = sadd.s32 %s53, %s10
        %s55 = smul.addr %s54, 8
        %s56 = scalar_lea.vmem %s0, %s55
        // Predicated region
        $region17: #{custom-call.68} parent=15 // pred_check
          _
        $region18: #{custom-call.68} parent=15 // pred_check_branch
          %58 = sbr.rel (0) target = $region20
        $region19: #{custom-call.68} parent=15 // pred_region
          // Predicated region
          $region21: #{custom-call.68} parent=19 // pred_check
            _
          $region22: #{custom-call.68} parent=19 // pred_check_branch
            %60 = sbr.rel (0) target = $region24
          $region23: #{custom-call.68} parent=19 // pred_region
            // Predicated region
            $region36: #{custom-call.68} parent=23 // pred_check
              _
            $region37: #{custom-call.68} parent=23 // pred_check_branch
              %75 = sbr.rel (0) target = $region39
            $region38: #{custom-call.68} parent=23 // pred_region
              loop: start=0, step=1, limit=1
              $region40: #{custom-call.68} parent=38 // loop_pre_header
                _
              $region41: #{custom-call.68} parent=38 // loop_header
                %s77 = sphi 0, %s81
                %p78 = scmp.ge.s32.totalorder %s77, 1
                %s82 = sphi %s56, %s56
                %s83 = sphi %s51, %s51
              $region42: #{custom-call.68} parent=38 // loop_header_branch
                %80 = sbr.rel (%p78) target = $region46
              $region43: #{custom-call.68} parent=38 // loop_body
                %v84 = vld [vmem:[%s82] sm:$0xff]
                %85 = vst [vmem:[%s83] sm:$0xff] %v84
              $region44: #{custom-call.68} parent=38 // loop_footer
                %s81 = sadd.s32 1, %s77
              $region45: #{custom-call.68} parent=38 // loop_footer_branch
                %76 = sbr.rel target = $region41
              $region46: #{custom-call.68} parent=38 // loop_exit
                _
            $region39: #{custom-call.68} parent=23 // pred_fallthru
              _
            // Predicated region
            $region47: #{custom-call.68} parent=23 // pred_check
              _
            $region48: #{custom-call.68} parent=23 // pred_check_branch
              %87 = sbr.rel target = $region50
            $region49: #{custom-call.68} parent=23 // pred_region
              _
            $region50: #{custom-call.68} parent=23 // pred_fallthru
              _
          $region24: #{custom-call.68} parent=19 // pred_fallthru
            _
          // Predicated region
          $region25: #{custom-call.68} parent=19 // pred_check
            _
          $region26: #{custom-call.68} parent=19 // pred_check_branch
            %62 = sbr.rel target = $region28
          $region27: #{custom-call.68} parent=19 // pred_region
            loop: start=0, step=1, limit=1
            $region29: #{custom-call.68} parent=27 // loop_pre_header
              _
            $region30: #{custom-call.68} parent=27 // loop_header
              %s65 = sphi 0, %s69
              %p66 = scmp.ge.s32.totalorder %s65, 1
              %s70 = sphi %s56, %s56
              %s71 = sphi %s51, %s51
            $region31: #{custom-call.68} parent=27 // loop_header_branch
              %68 = sbr.rel (%p66) target = $region35
            $region32: #{custom-call.68} parent=27 // loop_body
              %v72 = vld [vmem:[%s70] sm:$0xff]
              %73 = vst [vmem:[%s71] sm:$0xff] %v72
            $region33: #{custom-call.68} parent=27 // loop_footer
              %s69 = sadd.s32 1, %s65
            $region34: #{custom-call.68} parent=27 // loop_footer_branch
              %64 = sbr.rel target = $region30
            $region35: #{custom-call.68} parent=27 // loop_exit
              _
          $region28: #{custom-call.68} parent=19 // pred_fallthru
            _
        $region20: #{custom-call.68} parent=15 // pred_fallthru
          _
        %88 = vnop
      $region16: #{custom-call.68} parent=5 // pred_fallthru
        _
      %p89 = scmp.le.s32.totalorder 1, %s3
      %p90 = scmp.lt.s32.totalorder %s3, 5
      %p91 = pnand %p89, %p90
      %p92 = pneg %p91
      // Predicated region
      $region51: #{custom-call.68} parent=5 // pred_check
        _
      $region52: #{custom-call.68} parent=5 // pred_check_branch
        %94 = sbr.rel (%p91) target = $region54
      $region53: #{custom-call.68} parent=5 // pred_region
        #allocation2 [shape = 'f32[8,8]{1,0}', space=vmem, size = 0x1000, scoped, tag = 'rescaled input a']
        %s95 = ssub.s32 %s3, 1
        %s96 = sand.u32 %s8, 1
        %s97 = sand.u32 %s8, 1
        %s98 = smul.addr %s97, 8
        %s99 = scalar_lea.vmem [#allocation0], %s98
        %s100 = sand.u32 %s8, 1
        %s101 = sand.u32 %s8, 1
        %s102 = smul.addr %s101, 8
        %s103 = scalar_lea.vmem [#allocation0], %s102
        %s104 = sand.u32 %s8, 1
        %s105 = sand.u32 %s8, 1
        %s106 = smul.addr %s105, 8
        %s107 = scalar_lea.vmem [#allocation1], %s106
        %v108 = vlaneseq
        %v109 = vand.u32 %v108, 127
        %vm110 = vcmp.lt.s32.totalorder %v109, 8
        %v111 = vlaneseq
        %v112 = vshrl.u32 %v111, 7
        %vm114 = vcmp.eq.s32.totalorder %v112, %v109
        %v115 = vld [vmem:[%s99] sm:$0xff]
        %v116 = vsel %vm114, %v115, 0.0
        %117 = vadd.xlane.f32.xlu0 %v116
        %v118 = vpop.xlane.xlu0 %117
        %vm119 = vcmp.ge.s32.totalorder %v112, %v109
        %vm120 = vmand %vm119, %vm110
        %v121 = vsel %vm120, %v115, 0.0
        %v122 = vrcp.pop %v118
        %v123 = vmul.f32 %v121, %v122
        %124 = vst [vmem:[#allocation2] sm:$0xff] %v123
        %v125 = vlaneseq
        %v126 = vand.u32 %v125, 127
        %v127 = vlaneseq
        %v128 = vshrl.u32 %v127, 7
        %vm130 = vcmp.eq.s32.totalorder %v126, %v128
        %v131 = vlaneseq
        %v132 = vand.u32 %v131, 127
        %vm133 = vcmp.eq.s32.totalorder %v132, 0
        %v134 = vsel %vm133, 1.0, -1.0
        %v135 = vsel %vm130, %v134, 0.0
        %s136 = scalar_lea.vmem [#allocation2], 1
        %v137 = vld [vmem:[%s136] ss:$0 sm:$0xff]
        %v138 = vxor.u32 %v137, 2147483648
        %v139 = vlaneseq
        %v140 = vand.u32 %v139, 127
        %vm141 = vcmp.eq.s32.totalorder %v140, 1
        %v142 = vmul.f32 %v138, %v135
        %143 = vadd.xlane.f32.xlu0 %v142
        %v144 = vpop.xlane.xlu0 %143
        %v145 = vsel %vm141, %v144, %v135
        %s146 = scalar_lea.vmem [#allocation2], 2
        %v147 = vld [vmem:[%s146] ss:$0 sm:$0xff]
        %v148 = vxor.u32 %v147, 2147483648
        %v149 = vlaneseq
        %v150 = vand.u32 %v149, 127
        %vm151 = vcmp.eq.s32.totalorder %v150, 2
        %v152 = vmul.f32 %v148, %v145
        %153 = vadd.xlane.f32.xlu0 %v152
        %v154 = vpop.xlane.xlu0 %153
        %v155 = vsel %vm151, %v154, %v145
        %s156 = scalar_lea.vmem [#allocation2], 3
        %v157 = vld [vmem:[%s156] ss:$0 sm:$0xff]
        %v158 = vxor.u32 %v157, 2147483648
        %v159 = vlaneseq
        %v160 = vand.u32 %v159, 127
        %vm161 = vcmp.eq.s32.totalorder %v160, 3
        %v162 = vmul.f32 %v158, %v155
        %163 = vadd.xlane.f32.xlu0 %v162
        %v164 = vpop.xlane.xlu0 %163
        %v165 = vsel %vm161, %v164, %v155
        %s166 = scalar_lea.vmem [#allocation2], 4
        %v167 = vld [vmem:[%s166] ss:$0 sm:$0xff]
        %v168 = vxor.u32 %v167, 2147483648
        %v169 = vlaneseq
        %v170 = vand.u32 %v169, 127
        %vm171 = vcmp.eq.s32.totalorder %v170, 4
        %v172 = vmul.f32 %v168, %v165
        %173 = vadd.xlane.f32.xlu0 %v172
        %v174 = vpop.xlane.xlu0 %173
        %v175 = vsel %vm171, %v174, %v165
        %s176 = scalar_lea.vmem [#allocation2], 5
        %v177 = vld [vmem:[%s176] ss:$0 sm:$0xff]
        %v178 = vxor.u32 %v177, 2147483648
        %v179 = vlaneseq
        %v180 = vand.u32 %v179, 127
        %vm181 = vcmp.eq.s32.totalorder %v180, 5
        %v182 = vmul.f32 %v178, %v175
        %183 = vadd.xlane.f32.xlu0 %v182
        %v184 = vpop.xlane.xlu0 %183
        %v185 = vsel %vm181, %v184, %v175
        %s186 = scalar_lea.vmem [#allocation2], 6
        %v187 = vld [vmem:[%s186] ss:$0 sm:$0xff]
        %v188 = vxor.u32 %v187, 2147483648
        %v189 = vlaneseq
        %v190 = vand.u32 %v189, 127
        %vm191 = vcmp.eq.s32.totalorder %v190, 6
        %v192 = vmul.f32 %v188, %v185
        %193 = vadd.xlane.f32.xlu0 %v192
        %v194 = vpop.xlane.xlu0 %193
        %v195 = vsel %vm191, %v194, %v185
        %s196 = scalar_lea.vmem [#allocation2], 7
        %v197 = vld [vmem:[%s196] ss:$0 sm:$0xff]
        %v198 = vxor.u32 %v197, 2147483648
        %v199 = vlaneseq
        %v200 = vand.u32 %v199, 127
        %vm201 = vcmp.eq.s32.totalorder %v200, 7
        %v202 = vmul.f32 %v198, %v195
        %203 = vadd.xlane.f32.xlu0 %v202
        %v204 = vpop.xlane.xlu0 %203
        %v205 = vsel %vm201, %v204, %v195
        %v206 = vrcp.pop %v118
        %v207 = vmul.f32 %v205, %v206
        %vm208 = vweird.f32 %v118
        %v209 = vsel %vm208, %v205, %v207
        %210 = vst [vmem:[%s107] sm:$0xff] %v209
        %s211 = sand.u32 %s8, 1
        %s212 = sand.u32 %s8, 1
        %s213 = smul.addr %s212, 8
        %s214 = scalar_lea.vmem [#allocation1], %s213
        %s215 = sadd.s32 %s17, %s16
        %s216 = sadd.s32 %s215, %s15
        %s217 = sadd.s32 %s216, %s14
        %s218 = smul.addr %s217, 8
        %s219 = scalar_lea.vmem %s1, %s218
        // Predicated region
        $region55: #{custom-call.68} parent=53 // pred_check
          _
        $region56: #{custom-call.68} parent=53 // pred_check_branch
          %221 = sbr.rel (0) target = $region58
        $region57: #{custom-call.68} parent=53 // pred_region
          // Predicated region
          $region59: #{custom-call.68} parent=57 // pred_check
            _
          $region60: #{custom-call.68} parent=57 // pred_check_branch
            %223 = sbr.rel (0) target = $region62
          $region61: #{custom-call.68} parent=57 // pred_region
            // Predicated region
            $region74: #{custom-call.68} parent=61 // pred_check
              _
            $region75: #{custom-call.68} parent=61 // pred_check_branch
              %238 = sbr.rel (0) target = $region77
            $region76: #{custom-call.68} parent=61 // pred_region
              loop: start=0, step=1, limit=1
              $region78: #{custom-call.68} parent=76 // loop_pre_header
                _
              $region79: #{custom-call.68} parent=76 // loop_header
                %s240 = sphi 0, %s244
                %p241 = scmp.ge.s32.totalorder %s240, 1
                %s245 = sphi %s214, %s214
                %s246 = sphi %s219, %s219
              $region80: #{custom-call.68} parent=76 // loop_header_branch
                %243 = sbr.rel (%p241) target = $region84
              $region81: #{custom-call.68} parent=76 // loop_body
                %v247 = vld [vmem:[%s245] sm:$0xff]
                %248 = vst [vmem:[%s246] sm:$0xff] %v247
              $region82: #{custom-call.68} parent=76 // loop_footer
                %s244 = sadd.s32 1, %s240
              $region83: #{custom-call.68} parent=76 // loop_footer_branch
                %239 = sbr.rel target = $region79
              $region84: #{custom-call.68} parent=76 // loop_exit
                _
            $region77: #{custom-call.68} parent=61 // pred_fallthru
              _
            // Predicated region
            $region85: #{custom-call.68} parent=61 // pred_check
              _
            $region86: #{custom-call.68} parent=61 // pred_check_branch
              %250 = sbr.rel target = $region88
            $region87: #{custom-call.68} parent=61 // pred_region
              _
            $region88: #{custom-call.68} parent=61 // pred_fallthru
              _
          $region62: #{custom-call.68} parent=57 // pred_fallthru
            _
          // Predicated region
          $region63: #{custom-call.68} parent=57 // pred_check
            _
          $region64: #{custom-call.68} parent=57 // pred_check_branch
            %225 = sbr.rel target = $region66
          $region65: #{custom-call.68} parent=57 // pred_region
            loop: start=0, step=1, limit=1
            $region67: #{custom-call.68} parent=65 // loop_pre_header
              _
            $region68: #{custom-call.68} parent=65 // loop_header
              %s228 = sphi 0, %s232
              %p229 = scmp.ge.s32.totalorder %s228, 1
              %s233 = sphi %s214, %s214
              %s234 = sphi %s219, %s219
            $region69: #{custom-call.68} parent=65 // loop_header_branch
              %231 = sbr.rel (%p229) target = $region73
            $region70: #{custom-call.68} parent=65 // loop_body
              %v235 = vld [vmem:[%s233] sm:$0xff]
              %236 = vst [vmem:[%s234] sm:$0xff] %v235
            $region71: #{custom-call.68} parent=65 // loop_footer
              %s232 = sadd.s32 1, %s228
            $region72: #{custom-call.68} parent=65 // loop_footer_branch
              %227 = sbr.rel target = $region68
            $region73: #{custom-call.68} parent=65 // loop_exit
              _
          $region66: #{custom-call.68} parent=57 // pred_fallthru
            _
        $region58: #{custom-call.68} parent=53 // pred_fallthru
          _
        %251 = vnop
      $region54: #{custom-call.68} parent=5 // pred_fallthru
        _
      %p252 = scmp.le.s32.totalorder 2, %s3
      // Predicated region
      $region89: #{custom-call.68} parent=5 // pred_check
        %p253 = pneg %p252
      $region90: #{custom-call.68} parent=5 // pred_check_branch
        %255 = sbr.rel (%p253) target = $region92
      $region91: #{custom-call.68} parent=5 // pred_region
        %s256 = ssub.s32 %s3, 2
        %s257 = sand.u32 %s9, 1
        %s258 = sand.u32 %s9, 1
        %s259 = smul.addr %s258, 8
        %s260 = scalar_lea.vmem [#allocation1], %s259
      $region92: #{custom-call.68} parent=5 // pred_fallthru
        _
    $region6: #{custom-call.68} parent=1 // loop_footer
      %s7 = sadd.s32 1, %s3
    $region7: #{custom-call.68} parent=1 // loop_footer_branch
      %2 = sbr.rel target = $region3
    $region8: #{custom-call.68} parent=1 // loop_exit
      _

// kernel: custom-call.34
$region0: #{custom-call.34}
  %s0 = inlined_call_operand.vmem [shape: f32[4,4,4], index: 0, kind: input, shape index: {}]
  %s1 = inlined_call_operand.vmem [shape: f32[4,4,4], index: 1, kind: input, shape index: {}]
  %s2 = inlined_call_operand.vmem [shape: f32[4,4,4], index: 2, kind: input, shape index: {}]
  %s3 = inlined_call_operand.vmem [shape: f32[4,4,4], index: 3, kind: input, shape index: {}]
  %s4 = inlined_call_operand.vmem [shape: f32[4,4], index: 4, kind: output, shape index: {0}]
  %s5 = inlined_call_operand.vmem [shape: f32[4,4], index: 5, kind: output, shape index: {1}]
  %s6 = inlined_call_operand.vmem [shape: f32[4,4,4], index: 6, kind: output, shape index: {2}]
  %s7 = inlined_call_operand.vmem [shape: f32[4,4,4], index: 7, kind: output, shape index: {3}]
  %s8 = inlined_call_operand.vmem [shape: f32[4,4,4], index: 8, kind: output, shape index: {4}]
  %s9 = inlined_call_operand.vmem [shape: f32[4,4,4], index: 9, kind: output, shape index: {5}]
  %10 = xla_tuple %s4, %s5, %s6, %s7, %s8, %s9
  $region1: #{custom-call.34} parent=0
    #allocation0 [shape = 'u8[4096]{0}', space=vmem, size = 0x1000, scoped, tag = 'operand span for operand 0']
    #allocation1 [shape = 'u8[4096]{0}', space=vmem, size = 0x1000, scoped, tag = 'packed  for operand 0']
    #allocation2 [shape = 'u8[4096]{0}', space=vmem, size = 0x1000, scoped, tag = 'operand span for operand 1']
    #allocation3 [shape = 'u8[4096]{0}', space=vmem, size = 0x1000, scoped, tag = 'packed  for operand 1']
    #allocation4 [shape = 'u8[4096]{0}', space=vmem, size = 0x1000, scoped, tag = 'operand span for operand 2']
    #allocation5 [shape = 'u8[4096]{0}', space=vmem, size = 0x1000, scoped, tag = 'packed  for operand 2']
    #allocation6 [shape = 'u8[4096]{0}', space=vmem, size = 0x1000, scoped, tag = 'operand span for operand 3']
    #allocation7 [shape = 'u8[4096]{0}', space=vmem, size = 0x1000, scoped, tag = 'packed  for operand 3']
    #allocation8 [shape = 'u8[4096]{0}', space=vmem, size = 0x1000, scoped, tag = 'operand span for operand 4']
    #allocation9 [shape = 'u8[4096]{0}', space=vmem, size = 0x1000, scoped, tag = 'packed  for operand 4']
    #allocation10 [shape = 'u8[4096]{0}', space=vmem, size = 0x1000, scoped, tag = 'operand span for operand 5']
    #allocation11 [shape = 'u8[4096]{0}', space=vmem, size = 0x1000, scoped, tag = 'packed  for operand 5']
    #allocation12 [shape = 'u8[4096]{0}', space=vmem, size = 0x1000, scoped, tag = 'operand span for operand 6']
    #allocation13 [shape = 'u8[4096]{0}', space=vmem, size = 0x1000, scoped, tag = 'packed  for operand 6']
    #allocation14 [shape = 'u8[4096]{0}', space=vmem, size = 0x1000, scoped, tag = 'operand span for operand 7']
    #allocation15 [shape = 'u8[4096]{0}', space=vmem, size = 0x1000, scoped, tag = 'packed  for operand 7']
    #allocation16 [shape = 'u8[4096]{0}', space=vmem, size = 0x1000, scoped, tag = 'operand span for operand 8']
    #allocation17 [shape = 'u8[4096]{0}', space=vmem, size = 0x1000, scoped, tag = 'packed  for operand 8']
    #allocation18 [shape = 'u8[4096]{0}', space=vmem, size = 0x1000, scoped, tag = 'operand span for operand 9']
    #allocation19 [shape = 'u8[4096]{0}', space=vmem, size = 0x1000, scoped, tag = 'packed  for operand 9']
    loop: start=0, step=1, limit=6
    $region2: #{custom-call.34} parent=1 // loop_pre_header
      _
    $region3: #{custom-call.34} parent=1 // loop_header
      %s12 = sphi 0, %s16
      %p13 = scmp.ge.s32.totalorder %s12, 6
      %s24 = sphi 0, %s26
      %s27 = sphi 0, %s24
      %s28 = sphi 0, %s27
      %s44 = sphi 0, %s28
      %s52 = sphi 0, %s54
      %s55 = sphi 0, %s52
      %s56 = sphi 0, %s55
      %s72 = sphi 0, %s56
    $region4: #{custom-call.34} parent=1 // loop_header_branch
      %15 = sbr.rel (%p13) target = $region8
    $region5: #{custom-call.34} parent=1 // loop_body
      %s17 = ssub.s32 %s12, 1
      %s18 = ssub.s32 %s12, 2
      %s19 = sadd.s32 %s12, 1
      %s20 = sshrl.u32 %s12, 3
      %s21 = sshrl.u32 %s19, 3
      %s22 = ssub.s32 %s20, %s21
      %p23 = scmp.eq.s32.totalorder %s22, 0
      %s25 = sadd.s32 %s24, 1
      %s26 = scalar_select %p23, %s24, %s25
      %p29 = pneg %p23
      %p30 = scmp.eq.s32.totalorder %s12, 3
      %p31 = por %p29, %p30
      %p32 = scmp.ne.s32.totalorder %s24, %s27
      %p33 = scmp.eq.s32.totalorder %s12, 0
      %p34 = por %p32, %p33
      %p35 = scmp.ne.s32.totalorder %s24, %s27
      %p36 = scmp.eq.s32.totalorder %s17, 3
      %p37 = por %p35, %p36
      %p38 = scmp.ne.s32.totalorder %s27, %s28
      %p39 = scmp.eq.s32.totalorder %s17, 0
      %p40 = por %p38, %p39
      %p41 = scmp.ne.s32.totalorder %s27, %s28
      %p42 = scmp.eq.s32.totalorder %s18, 3
      %p43 = por %p41, %p42
      %p45 = scmp.ne.s32.totalorder %s28, %s44
      %p46 = scmp.eq.s32.totalorder %s18, 0
      %p47 = por %p45, %p46
      %s48 = sshrl.u32 %s12, 3
      %s49 = sshrl.u32 %s19, 3
      %s50 = ssub.s32 %s48, %s49
      %p51 = scmp.eq.s32.totalorder %s50, 0
      %s53 = sadd.s32 %s52, 1
      %s54 = scalar_select %p51, %s52, %s53
      %p57 = pneg %p51
      %p58 = scmp.eq.s32.totalorder %s12, 3
      %p59 = por %p57, %p58
      %p60 = scmp.ne.s32.totalorder %s52, %s55
      %p61 = scmp.eq.s32.totalorder %s12, 0
      %p62 = por %p60, %p61
      %p63 = scmp.ne.s32.totalorder %s52, %s55
      %p64 = scmp.eq.s32.totalorder %s17, 3
      %p65 = por %p63, %p64
      %p66 = scmp.ne.s32.totalorder %s55, %s56
      %p67 = scmp.eq.s32.totalorder %s17, 0
      %p68 = por %p66, %p67
      %p69 = scmp.ne.s32.totalorder %s55, %s56
      %p70 = scmp.eq.s32.totalorder %s18, 3
      %p71 = por %p69, %p70
      %p73 = scmp.ne.s32.totalorder %s56, %s72
      %p74 = scmp.eq.s32.totalorder %s18, 0
      %p75 = por %p73, %p74
      %p76 = scmp.le.s32.totalorder 1, %s12
      %p77 = scmp.lt.s32.totalorder %s12, 5
      %p78 = pnand %p76, %p77
      %p79 = pneg %p78
      // Predicated region
      $region9: #{custom-call.34} parent=5 // pred_check
        _
      $region10: #{custom-call.34} parent=5 // pred_check_branch
        %81 = sbr.rel (%p78) target = $region12
      $region11: #{custom-call.34} parent=5 // pred_region
        %s82 = ssub.s32 %s12, 1
      $region12: #{custom-call.34} parent=5 // pred_fallthru
        _
      %p83 = scmp.lt.s32.totalorder %s12, 4
      // Predicated region
      $region13: #{custom-call.34} parent=5 // pred_check
        %p84 = pneg %p83
      $region14: #{custom-call.34} parent=5 // pred_check_branch
        %86 = sbr.rel (%p84) target = $region16
      $region15: #{custom-call.34} parent=5 // pred_region
        %s87 = sand.u32 %s12, 1
        %s88 = sand.u32 %s12, 1
        %s89 = smul.addr %s88, 4
        %s90 = scalar_lea.vmem [#allocation1], %s89
        %s91 = smul.addr %s12, 4
        %s92 = scalar_lea.vmem %s0, %s91
        // Predicated region
        $region17: #{custom-call.34} parent=15 // pred_check
          _
        $region18: #{custom-call.34} parent=15 // pred_check_branch
          %94 = sbr.rel (0) target = $region20
        $region19: #{custom-call.34} parent=15 // pred_region
          // Predicated region
          $region21: #{custom-call.34} parent=19 // pred_check
            _
          $region22: #{custom-call.34} parent=19 // pred_check_branch
            %96 = sbr.rel target = $region24
          $region23: #{custom-call.34} parent=19 // pred_region
            // Predicated region
            $region36: #{custom-call.34} parent=23 // pred_check
              _
            $region37: #{custom-call.34} parent=23 // pred_check_branch
              %111 = sbr.rel (0) target = $region39
            $region38: #{custom-call.34} parent=23 // pred_region
              loop: start=0, step=1, limit=1
              $region40: #{custom-call.34} parent=38 // loop_pre_header
                _
              $region41: #{custom-call.34} parent=38 // loop_header
                %s114 = sphi 0, %s118
                %p115 = scmp.ge.s32.totalorder %s114, 1
                %s119 = sphi %s92, %s92
                %s120 = sphi %s90, %s90
              $region42: #{custom-call.34} parent=38 // loop_header_branch
                %117 = sbr.rel (%p115) target = $region46
              $region43: #{custom-call.34} parent=38 // loop_body
                %v121 = vld [vmem:[%s119] sm:$0xf]
                %122 = vst [vmem:[%s120] sm:$0xf] %v121
              $region44: #{custom-call.34} parent=38 // loop_footer
                %s118 = sadd.s32 1, %s114
              $region45: #{custom-call.34} parent=38 // loop_footer_branch
                %113 = sbr.rel target = $region41
              $region46: #{custom-call.34} parent=38 // loop_exit
                _
            $region39: #{custom-call.34} parent=23 // pred_fallthru
              _
          $region24: #{custom-call.34} parent=19 // pred_fallthru
            _
          // Predicated region
          $region25: #{custom-call.34} parent=19 // pred_check
            _
          $region26: #{custom-call.34} parent=19 // pred_check_branch
            %98 = sbr.rel (0) target = $region28
          $region27: #{custom-call.34} parent=19 // pred_region
            loop: start=0, step=1, limit=1
            $region29: #{custom-call.34} parent=27 // loop_pre_header
              _
            $region30: #{custom-call.34} parent=27 // loop_header
              %s101 = sphi 0, %s105
              %p102 = scmp.ge.s32.totalorder %s101, 1
              %s106 = sphi %s92, %s92
              %s107 = sphi %s90, %s90
            $region31: #{custom-call.34} parent=27 // loop_header_branch
              %104 = sbr.rel (%p102) target = $region35
            $region32: #{custom-call.34} parent=27 // loop_body
              %v108 = vld [vmem:[%s106] sm:$0xf]
              %109 = vst [vmem:[%s107] sm:$0xf] %v108
            $region33: #{custom-call.34} parent=27 // loop_footer
              %s105 = sadd.s32 1, %s101
            $region34: #{custom-call.34} parent=27 // loop_footer_branch
              %100 = sbr.rel target = $region30
            $region35: #{custom-call.34} parent=27 // loop_exit
              _
          $region28: #{custom-call.34} parent=19 // pred_fallthru
            _
        $region20: #{custom-call.34} parent=15 // pred_fallthru
          _
        %123 = vnop
        %s124 = sand.u32 %s12, 1
        %s125 = sand.u32 %s12, 1
        %s126 = smul.addr %s125, 4
        %s127 = scalar_lea.vmem [#allocation3], %s126
        %s128 = smul.addr %s12, 4
        %s129 = scalar_lea.vmem %s1, %s128
        // Predicated region
        $region47: #{custom-call.34} parent=15 // pred_check
          _
        $region48: #{custom-call.34} parent=15 // pred_check_branch
          %131 = sbr.rel (0) target = $region50
        $region49: #{custom-call.34} parent=15 // pred_region
          // Predicated region
          $region51: #{custom-call.34} parent=49 // pred_check
            _
          $region52: #{custom-call.34} parent=49 // pred_check_branch
            %133 = sbr.rel target = $region54
          $region53: #{custom-call.34} parent=49 // pred_region
            // Predicated region
            $region66: #{custom-call.34} parent=53 // pred_check
              _
            $region67: #{custom-call.34} parent=53 // pred_check_branch
              %148 = sbr.rel (0) target = $region69
            $region68: #{custom-call.34} parent=53 // pred_region
              loop: start=0, step=1, limit=1
              $region70: #{custom-call.34} parent=68 // loop_pre_header
                _
              $region71: #{custom-call.34} parent=68 // loop_header
                %s151 = sphi 0, %s155
                %p152 = scmp.ge.s32.totalorder %s151, 1
                %s156 = sphi %s129, %s129
                %s157 = sphi %s127, %s127
              $region72: #{custom-call.34} parent=68 // loop_header_branch
                %154 = sbr.rel (%p152) target = $region76
              $region73: #{custom-call.34} parent=68 // loop_body
                %v158 = vld [vmem:[%s156] sm:$0xf]
                %159 = vst [vmem:[%s157] sm:$0xf] %v158
              $region74: #{custom-call.34} parent=68 // loop_footer
                %s155 = sadd.s32 1, %s151
              $region75: #{custom-call.34} parent=68 // loop_footer_branch
                %150 = sbr.rel target = $region71
              $region76: #{custom-call.34} parent=68 // loop_exit
                _
            $region69: #{custom-call.34} parent=53 // pred_fallthru
              _
          $region54: #{custom-call.34} parent=49 // pred_fallthru
            _
          // Predicated region
          $region55: #{custom-call.34} parent=49 // pred_check
            _
          $region56: #{custom-call.34} parent=49 // pred_check_branch
            %135 = sbr.rel (0) target = $region58
          $region57: #{custom-call.34} parent=49 // pred_region
            loop: start=0, step=1, limit=1
            $region59: #{custom-call.34} parent=57 // loop_pre_header
              _
            $region60: #{custom-call.34} parent=57 // loop_header
              %s138 = sphi 0, %s142
              %p139 = scmp.ge.s32.totalorder %s138, 1
              %s143 = sphi %s129, %s129
              %s144 = sphi %s127, %s127
            $region61: #{custom-call.34} parent=57 // loop_header_branch
              %141 = sbr.rel (%p139) target = $region65
            $region62: #{custom-call.34} parent=57 // loop_body
              %v145 = vld [vmem:[%s143] sm:$0xf]
              %146 = vst [vmem:[%s144] sm:$0xf] %v145
            $region63: #{custom-call.34} parent=57 // loop_footer
              %s142 = sadd.s32 1, %s138
            $region64: #{custom-call.34} parent=57 // loop_footer_branch
              %137 = sbr.rel target = $region60
            $region65: #{custom-call.34} parent=57 // loop_exit
              _
          $region58: #{custom-call.34} parent=49 // pred_fallthru
            _
        $region50: #{custom-call.34} parent=15 // pred_fallthru
          _
        %160 = vnop
        %s161 = sand.u32 %s12, 1
        %s162 = sand.u32 %s12, 1
        %s163 = smul.addr %s162, 4
        %s164 = scalar_lea.vmem [#allocation5], %s163
        %s165 = smul.addr %s12, 4
        %s166 = scalar_lea.vmem %s2, %s165
        // Predicated region
        $region77: #{custom-call.34} parent=15 // pred_check
          _
        $region78: #{custom-call.34} parent=15 // pred_check_branch
          %168 = sbr.rel (0) target = $region80
        $region79: #{custom-call.34} parent=15 // pred_region
          // Predicated region
          $region81: #{custom-call.34} parent=79 // pred_check
            _
          $region82: #{custom-call.34} parent=79 // pred_check_branch
            %170 = sbr.rel target = $region84
          $region83: #{custom-call.34} parent=79 // pred_region
            // Predicated region
            $region96: #{custom-call.34} parent=83 // pred_check
              _
            $region97: #{custom-call.34} parent=83 // pred_check_branch
              %185 = sbr.rel (0) target = $region99
            $region98: #{custom-call.34} parent=83 // pred_region
              loop: start=0, step=1, limit=1
              $region100: #{custom-call.34} parent=98 // loop_pre_header
                _
              $region101: #{custom-call.34} parent=98 // loop_header
                %s188 = sphi 0, %s192
                %p189 = scmp.ge.s32.totalorder %s188, 1
                %s193 = sphi %s166, %s166
                %s194 = sphi %s164, %s164
              $region102: #{custom-call.34} parent=98 // loop_header_branch
                %191 = sbr.rel (%p189) target = $region106
              $region103: #{custom-call.34} parent=98 // loop_body
                %v195 = vld [vmem:[%s193] sm:$0xf]
                %196 = vst [vmem:[%s194] sm:$0xf] %v195
              $region104: #{custom-call.34} parent=98 // loop_footer
                %s192 = sadd.s32 1, %s188
              $region105: #{custom-call.34} parent=98 // loop_footer_branch
                %187 = sbr.rel target = $region101
              $region106: #{custom-call.34} parent=98 // loop_exit
                _
            $region99: #{custom-call.34} parent=83 // pred_fallthru
              _
          $region84: #{custom-call.34} parent=79 // pred_fallthru
            _
          // Predicated region
          $region85: #{custom-call.34} parent=79 // pred_check
            _
          $region86: #{custom-call.34} parent=79 // pred_check_branch
            %172 = sbr.rel (0) target = $region88
          $region87: #{custom-call.34} parent=79 // pred_region
            loop: start=0, step=1, limit=1
            $region89: #{custom-call.34} parent=87 // loop_pre_header
              _
            $region90: #{custom-call.34} parent=87 // loop_header
              %s175 = sphi 0, %s179
              %p176 = scmp.ge.s32.totalorder %s175, 1
              %s180 = sphi %s166, %s166
              %s181 = sphi %s164, %s164
            $region91: #{custom-call.34} parent=87 // loop_header_branch
              %178 = sbr.rel (%p176) target = $region95
            $region92: #{custom-call.34} parent=87 // loop_body
              %v182 = vld [vmem:[%s180] sm:$0xf]
              %183 = vst [vmem:[%s181] sm:$0xf] %v182
            $region93: #{custom-call.34} parent=87 // loop_footer
              %s179 = sadd.s32 1, %s175
            $region94: #{custom-call.34} parent=87 // loop_footer_branch
              %174 = sbr.rel target = $region90
            $region95: #{custom-call.34} parent=87 // loop_exit
              _
          $region88: #{custom-call.34} parent=79 // pred_fallthru
            _
        $region80: #{custom-call.34} parent=15 // pred_fallthru
          _
        %197 = vnop
        %s198 = sand.u32 %s12, 1
        %s199 = sand.u32 %s12, 1
        %s200 = smul.addr %s199, 4
        %s201 = scalar_lea.vmem [#allocation7], %s200
        %s202 = smul.addr %s12, 4
        %s203 = scalar_lea.vmem %s3, %s202
        // Predicated region
        $region107: #{custom-call.34} parent=15 // pred_check
          _
        $region108: #{custom-call.34} parent=15 // pred_check_branch
          %205 = sbr.rel (0) target = $region110
        $region109: #{custom-call.34} parent=15 // pred_region
          // Predicated region
          $region111: #{custom-call.34} parent=109 // pred_check
            _
          $region112: #{custom-call.34} parent=109 // pred_check_branch
            %207 = sbr.rel target = $region114
          $region113: #{custom-call.34} parent=109 // pred_region
            // Predicated region
            $region126: #{custom-call.34} parent=113 // pred_check
              _
            $region127: #{custom-call.34} parent=113 // pred_check_branch
              %222 = sbr.rel (0) target = $region129
            $region128: #{custom-call.34} parent=113 // pred_region
              loop: start=0, step=1, limit=1
              $region130: #{custom-call.34} parent=128 // loop_pre_header
                _
              $region131: #{custom-call.34} parent=128 // loop_header
                %s225 = sphi 0, %s229
                %p226 = scmp.ge.s32.totalorder %s225, 1
                %s230 = sphi %s203, %s203
                %s231 = sphi %s201, %s201
              $region132: #{custom-call.34} parent=128 // loop_header_branch
                %228 = sbr.rel (%p226) target = $region136
              $region133: #{custom-call.34} parent=128 // loop_body
                %v232 = vld [vmem:[%s230] sm:$0xf]
                %233 = vst [vmem:[%s231] sm:$0xf] %v232
              $region134: #{custom-call.34} parent=128 // loop_footer
                %s229 = sadd.s32 1, %s225
              $region135: #{custom-call.34} parent=128 // loop_footer_branch
                %224 = sbr.rel target = $region131
              $region136: #{custom-call.34} parent=128 // loop_exit
                _
            $region129: #{custom-call.34} parent=113 // pred_fallthru
              _
          $region114: #{custom-call.34} parent=109 // pred_fallthru
            _
          // Predicated region
          $region115: #{custom-call.34} parent=109 // pred_check
            _
          $region116: #{custom-call.34} parent=109 // pred_check_branch
            %209 = sbr.rel (0) target = $region118
          $region117: #{custom-call.34} parent=109 // pred_region
            loop: start=0, step=1, limit=1
            $region119: #{custom-call.34} parent=117 // loop_pre_header
              _
            $region120: #{custom-call.34} parent=117 // loop_header
              %s212 = sphi 0, %s216
              %p213 = scmp.ge.s32.totalorder %s212, 1
              %s217 = sphi %s203, %s203
              %s218 = sphi %s201, %s201
            $region121: #{custom-call.34} parent=117 // loop_header_branch
              %215 = sbr.rel (%p213) target = $region125
            $region122: #{custom-call.34} parent=117 // loop_body
              %v219 = vld [vmem:[%s217] sm:$0xf]
              %220 = vst [vmem:[%s218] sm:$0xf] %v219
            $region123: #{custom-call.34} parent=117 // loop_footer
              %s216 = sadd.s32 1, %s212
            $region124: #{custom-call.34} parent=117 // loop_footer_branch
              %211 = sbr.rel target = $region120
            $region125: #{custom-call.34} parent=117 // loop_exit
              _
          $region118: #{custom-call.34} parent=109 // pred_fallthru
            _
        $region110: #{custom-call.34} parent=15 // pred_fallthru
          _
        %234 = vnop
      $region16: #{custom-call.34} parent=5 // pred_fallthru
        _
      %p235 = scmp.le.s32.totalorder 1, %s12
      %p236 = scmp.lt.s32.totalorder %s12, 5
      %p237 = pnand %p235, %p236
      %p238 = pneg %p237
      // Predicated region
      $region137: #{custom-call.34} parent=5 // pred_check
        _
      $region138: #{custom-call.34} parent=5 // pred_check_branch
        %240 = sbr.rel (%p237) target = $region140
      $region139: #{custom-call.34} parent=5 // pred_region
        #allocation20 [shape = 'f32[4,4]{1,0}', space=vmem, size = 0x1000, scoped, tag = 'a top-left matrix']
        #allocation21 [shape = 'f32[4,4]{1,0}', space=vmem, size = 0x1000, scoped, tag = 'a top-right matrix']
        #allocation22 [shape = 'f32[4,4]{1,0}', space=vmem, size = 0x1000, scoped, tag = 'a bottom-left matrix']
        #allocation23 [shape = 'f32[4,4]{1,0}', space=vmem, size = 0x1000, scoped, tag = 'a bottom-right matrix']
        %s241 = ssub.s32 %s12, 1
        %s242 = sand.u32 %s17, 1
        %s243 = sand.u32 %s17, 1
        %s244 = smul.addr %s243, 4
        %s245 = scalar_lea.vmem [#allocation1], %s244
        %s246 = sand.u32 %s17, 1
        %s247 = sand.u32 %s17, 1
        %s248 = smul.addr %s247, 4
        %s249 = scalar_lea.vmem [#allocation3], %s248
        %s250 = sand.u32 %s17, 1
        %s251 = sand.u32 %s17, 1
        %s252 = smul.addr %s251, 4
        %s253 = scalar_lea.vmem [#allocation5], %s252
        %s254 = sand.u32 %s17, 1
        %s255 = sand.u32 %s17, 1
        %s256 = smul.addr %s255, 4
        %s257 = scalar_lea.vmem [#allocation7], %s256
        %s258 = sand.u32 %s17, 1
        %s259 = sand.u32 %s17, 1
        %s260 = smul.addr %s259, 4
        %s261 = scalar_lea.vmem [#allocation1], %s260
        %s262 = sand.u32 %s17, 1
        %s263 = sand.u32 %s17, 1
        %s264 = smul.addr %s263, 4
        %s265 = scalar_lea.vmem [#allocation3], %s264
        %s266 = sand.u32 %s17, 1
        %s267 = sand.u32 %s17, 1
        %s268 = smul.addr %s267, 4
        %s269 = scalar_lea.vmem [#allocation5], %s268
        %s270 = sand.u32 %s17, 1
        %s271 = sand.u32 %s17, 1
        %s272 = smul.addr %s271, 4
        %s273 = scalar_lea.vmem [#allocation7], %s272
        %p274 = pneg %p40
        %p275 = pneg %p37
        %s276 = sand.u32 %s27, 1
        %s277 = sand.u32 %s27, 1
        %s278 = smul.addr %s277, 4
        %s279 = scalar_lea.vmem [#allocation9], %s278
        %p280 = pneg %p68
        %p281 = pneg %p65
        %s282 = sand.u32 %s55, 1
        %s283 = sand.u32 %s55, 1
        %s284 = smul.addr %s283, 4
        %s285 = scalar_lea.vmem [#allocation11], %s284
        %s286 = sand.u32 %s17, 1
        %s287 = sand.u32 %s17, 1
        %s288 = smul.addr %s287, 4
        %s289 = scalar_lea.vmem [#allocation13], %s288
        %s290 = sand.u32 %s17, 1
        %s291 = sand.u32 %s17, 1
        %s292 = smul.addr %s291, 4
        %s293 = scalar_lea.vmem [#allocation15], %s292
        %s294 = sand.u32 %s17, 1
        %s295 = sand.u32 %s17, 1
        %s296 = smul.addr %s295, 4
        %s297 = scalar_lea.vmem [#allocation17], %s296
        %s298 = sand.u32 %s17, 1
        %s299 = sand.u32 %s17, 1
        %s300 = smul.addr %s299, 4
        %s301 = scalar_lea.vmem [#allocation19], %s300
        %s303 = sshllo.u32 0, 4
        %v304 = vld [vmem:[%s261] sm:%s303]
        %305 = vst [vmem:[#allocation0] sm:%s303] %v304
        %s307 = sshllo.u32 0, 4
        %v308 = vld [vmem:[%s265] sm:%s307]
        %309 = vst [vmem:[#allocation2] sm:%s307] %v308
        %s311 = sshllo.u32 0, 4
        %v312 = vld [vmem:[%s269] sm:%s311]
        %313 = vst [vmem:[#allocation4] sm:%s311] %v312
        %s315 = sshllo.u32 0, 4
        %v316 = vld [vmem:[%s273] sm:%s315]
        %317 = vst [vmem:[#allocation6] sm:%s315] %v316
        %s318 = sshrl.u32 %s17, 3
        %s319 = sshrl.u32 %s17, 3
        %s320 = smov [#allocation20]
        %v321 = vld [vmem:[#allocation0] sm:$0xff]
        %322 = vst [vmem:[%s320] sm:$0xff] %v321
        %s323 = smov [#allocation21]
        %v324 = vld [vmem:[#allocation2] sm:$0xff]
        %325 = vst [vmem:[%s323] sm:$0xff] %v324
        %s326 = smov [#allocation22]
        %v327 = vld [vmem:[#allocation4] sm:$0xff]
        %328 = vst [vmem:[%s326] sm:$0xff] %v327
        %s329 = smov [#allocation23]
        %v330 = vld [vmem:[#allocation6] sm:$0xff]
        %331 = vst [vmem:[%s329] sm:$0xff] %v330
        %332 = vst [vmem:[#allocation12] sm:$0xff] 0.0
        %333 = vst [vmem:[#allocation14] sm:$0xff] 0.0
        %334 = vst [vmem:[#allocation16] sm:$0xff] 0.0
        %335 = vst [vmem:[#allocation18] sm:$0xff] 0.0
        %s336 = smov [#allocation12]
        %v337 = vlaneseq
        %v338 = vand.u32 %v337, 127
        %v339 = vmov %v338
        %v340 = vlaneseq
        %v341 = vshrl.u32 %v340, 7
        %v342 = vmov %v341
        %v343 = vld [vmem:[%s336] sm:$0xf]
        %vm346 = vcmp.eq.s32.totalorder %v342, %v339
        %v347 = vsel %vm346, 1.0, %v343
        %348 = vst [vmem:[%s336] sm:$0xf] %v347
        %s349 = smov [#allocation18]
        %v350 = vlaneseq
        %v351 = vand.u32 %v350, 127
        %v352 = vmov %v351
        %v353 = vlaneseq
        %v354 = vshrl.u32 %v353, 7
        %v355 = vmov %v354
        %v356 = vld [vmem:[%s349] sm:$0xf]
        %vm359 = vcmp.eq.s32.totalorder %v355, %v352
        %v360 = vsel %vm359, 1.0, %v356
        %361 = vst [vmem:[%s349] sm:$0xf] %v360
        // While loop
        $region141: #{custom-call.34} parent=139 // loop_pre_header
          _
        $region142: #{custom-call.34} parent=139 // loop_header
          %s363 = sphi 0, %s905
          %v364 = vlaneseq
          %v365 = vand.u32 %v364, 127
          %v366 = vmov %v365
          %v367 = vlaneseq
          %v368 = vshrl.u32 %v367, 7
          %v369 = vmov %v368
          %s370 = smov [#allocation20]
          %v371 = vlaneseq
          %v372 = vand.u32 %v371, 127
          %vm373 = vcmp.ge.s32.totalorder %v372, 0
          %vm374 = vcmp.lt.s32.totalorder %v372, 4
          %vm375 = vmand %vm373, %vm374
          %v376 = vld [vmem:[%s370] sm:$0xf]
          %v377 = vsel %vm375, %v376, 0.0
          %v378 = vmul.f32 %v377, %v377
          %vm381 = vcmp.eq.s32.totalorder %v369, %v366
          %v382 = vsel %vm381, 0.0, %v378
          %v383 = vlaneseq
          %v384 = vand.u32 %v383, 127
          %v385 = vmov %v384
          %v386 = vlaneseq
          %v387 = vshrl.u32 %v386, 7
          %v388 = vmov %v387
          %s389 = smov [#allocation21]
          %v390 = vlaneseq
          %v391 = vand.u32 %v390, 127
          %vm392 = vcmp.ge.s32.totalorder %v391, 0
          %vm393 = vcmp.lt.s32.totalorder %v391, 4
          %vm394 = vmand %vm392, %vm393
          %v395 = vld [vmem:[%s389] sm:$0xf]
          %v396 = vsel %vm394, %v395, 0.0
          %v397 = vmul.f32 %v396, %v396
          %v398 = vadd.f32 %v382, %v397
          %v399 = vadd.f32 %v378, %v397
          %v400 = vlaneseq
          %v401 = vand.u32 %v400, 127
          %v402 = vmov %v401
          %v403 = vlaneseq
          %v404 = vshrl.u32 %v403, 7
          %v405 = vmov %v404
          %s406 = smov [#allocation22]
          %v407 = vlaneseq
          %v408 = vand.u32 %v407, 127
          %vm409 = vcmp.ge.s32.totalorder %v408, 0
          %vm410 = vcmp.lt.s32.totalorder %v408, 4
          %vm411 = vmand %vm409, %vm410
          %v412 = vld [vmem:[%s406] sm:$0xf]
          %v413 = vsel %vm411, %v412, 0.0
          %v414 = vmul.f32 %v413, %v413
          %v415 = vadd.f32 %v398, %v414
          %v416 = vadd.f32 %v399, %v414
          %v417 = vlaneseq
          %v418 = vand.u32 %v417, 127
          %v419 = vmov %v418
          %v420 = vlaneseq
          %v421 = vshrl.u32 %v420, 7
          %v422 = vmov %v421
          %s423 = smov [#allocation23]
          %v424 = vlaneseq
          %v425 = vand.u32 %v424, 127
          %vm426 = vcmp.ge.s32.totalorder %v425, 0
          %vm427 = vcmp.lt.s32.totalorder %v425, 4
          %vm428 = vmand %vm426, %vm427
          %v429 = vld [vmem:[%s423] sm:$0xf]
          %v430 = vsel %vm428, %v429, 0.0
          %v431 = vmul.f32 %v430, %v430
          %vm434 = vcmp.eq.s32.totalorder %v422, %v419
          %v435 = vsel %vm434, 0.0, %v431
          %v436 = vadd.f32 %v415, %v435
          %v437 = vadd.f32 %v416, %v431
          %438 = vadd.xlane.f32.xlu0 %v437
          %v439 = vpop.xlane.xlu0 %438
          %v440 = vrot.slane %v439, 4
          %v441 = vadd.f32 %v439, %v440
          %v442 = vrot.slane %v441, 2
          %v443 = vadd.f32 %v441, %v442
          %v444 = vrot.slane %v443, 1
          %v445 = vadd.f32 %v443, %v444
          %446 = vadd.xlane.f32.xlu0 %v436
          %v447 = vpop.xlane.xlu0 %446
          %v448 = vrot.slane %v447, 4
          %v449 = vadd.f32 %v447, %v448
          %v450 = vrot.slane %v449, 2
          %v451 = vadd.f32 %v449, %v450
          %v452 = vrot.slane %v451, 1
          %v453 = vadd.f32 %v451, %v452
          %s454 = vtos %v453
          %s455 = vtos %v445
          %s456 = smul.f32 1e-10, %s455
          %p457 = scmp.le.f32.partialorder %s454, %s456
          %p458 = scmp.ge.s32.totalorder %s363, 15
          %p459 = por %p457, %p458
        $region143: #{custom-call.34} parent=139 // loop_header_branch
          %907 = sbr.rel (%p459) target = $region147
        $region144: #{custom-call.34} parent=139 // loop_body
          loop: start=0, step=1, limit=7
          $region148: #{custom-call.34} parent=144 // loop_pre_header
            _
          $region149: #{custom-call.34} parent=144 // loop_header
            %s461 = sphi 0, %s465
            %p462 = scmp.ge.s32.totalorder %s461, 7
          $region150: #{custom-call.34} parent=144 // loop_header_branch
            %464 = sbr.rel (%p462) target = $region154
          $region151: #{custom-call.34} parent=144 // loop_body
            #allocation24 [shape = 'f32[1024]{0}', space=vmem, size = 0x1000, scoped, tag = 'a_tl_diag vmem']
            #allocation25 [shape = 'f32[1024]{0}', space=vmem, size = 0x1000, scoped, tag = 'a_tr_diag vmem']
            #allocation26 [shape = 'f32[1024]{0}', space=vmem, size = 0x1000, scoped, tag = 'a_br_diag vmem']
            #allocation27 [shape = 'f32[1024]{0}', space=vmem, size = 0x1000, scoped, tag = 'rt1 vmem']
            #allocation28 [shape = 'f32[1024]{0}', space=vmem, size = 0x1000, scoped, tag = 'rt2 vmem']
            #allocation29 [shape = 'f32[1024]{0}', space=vmem, size = 0x1000, scoped, tag = 'c vmem']
            #allocation30 [shape = 'f32[1024]{0}', space=vmem, size = 0x1000, scoped, tag = 's vmem']
            #allocation31 [shape = 'f32[4096]{0}', space=vmem, size = 0x4000, scoped, tag = 'c broadcast']
            #allocation32 [shape = 'f32[4096]{0}', space=vmem, size = 0x4000, scoped, tag = 's broadcast']
            %s466 = smov [#allocation20]
            %s467 = smov [#allocation24]
            %v468 = vlaneseq
            %v469 = vand.u32 %v468, 127
            %v470 = vmov %v469
            %v471 = vlaneseq
            %v472 = vshrl.u32 %v471, 7
            %v473 = vmov %v472
            %v474 = vld [vmem:[%s466] sm:$0xf]
            %vm477 = vcmp.eq.s32.totalorder %v473, %v470
            %v478 = vsel %vm477, %v474, 0.0
            %v479 = vrot.slane %v478, 4
            %v480 = vadd.f32 %v478, %v479
            %v481 = vrot.slane %v480, 2
            %v482 = vadd.f32 %v480, %v481
            %v483 = vrot.slane %v482, 1
            %v484 = vadd.f32 %v482, %v483
            %485 = vst [vmem:[%s467] sm:$0x1] %v484
            %s486 = smov [#allocation21]
            %s487 = smov [#allocation25]
            %v488 = vlaneseq
            %v489 = vand.u32 %v488, 127
            %v490 = vmov %v489
            %v491 = vlaneseq
            %v492 = vshrl.u32 %v491, 7
            %v493 = vmov %v492
            %v494 = vld [vmem:[%s486] sm:$0xf]
            %vm497 = vcmp.eq.s32.totalorder %v493, %v490
            %v498 = vsel %vm497, %v494, 0.0
            %v499 = vrot.slane %v498, 4
            %v500 = vadd.f32 %v498, %v499
            %v501 = vrot.slane %v500, 2
            %v502 = vadd.f32 %v500, %v501
            %v503 = vrot.slane %v502, 1
            %v504 = vadd.f32 %v502, %v503
            %505 = vst [vmem:[%s487] sm:$0x1] %v504
            %s506 = smov [#allocation23]
            %s507 = smov [#allocation26]
            %v508 = vlaneseq
            %v509 = vand.u32 %v508, 127
            %v510 = vmov %v509
            %v511 = vlaneseq
            %v512 = vshrl.u32 %v511, 7
            %v513 = vmov %v512
            %v514 = vld [vmem:[%s506] sm:$0xf]
            %vm517 = vcmp.eq.s32.totalorder %v513, %v510
            %v518 = vsel %vm517, %v514, 0.0
            %v519 = vrot.slane %v518, 4
            %v520 = vadd.f32 %v518, %v519
            %v521 = vrot.slane %v520, 2
            %v522 = vadd.f32 %v520, %v521
            %v523 = vrot.slane %v522, 1
            %v524 = vadd.f32 %v522, %v523
            %525 = vst [vmem:[%s507] sm:$0x1] %v524
            %s526 = smov [#allocation29]
            %s527 = smov [#allocation30]
            %s528 = smov [#allocation24]
            %v529 = vld [vmem:[%s528] sm:$0xff]
            %s530 = smov [#allocation25]
            %v531 = vld [vmem:[%s530] sm:$0xff]
            %s532 = smov [#allocation26]
            %v533 = vld [vmem:[%s532] sm:$0xff]
            %v534 = vsub.f32 %v533, %v529
            %v535 = vmul.f32 2.0, %v531
            %v536 = vrcp.pop %v535
            %v537 = vmul.f32 %v534, %v536
            %vm538 = vcmp.ge.f32.partialorder %v537, 0.0
            %v539 = vmul.f32 %v537, %v537
            %v540 = vadd.f32 1.0, %v539
            %v541 = vrsqrt.pop %v540
            %v542 = vmul.f32 %v540, %v541
            %vm543 = vcmp.eq.f32.partialorder %v540, inf
            %v544 = vsel %vm543, %v540, %v542
            %vm545 = vcmp.eq.f32.partialorder %v540, 0.0
            %v546 = vand.u32 %v540, 2147483648
            %v547 = vsel %vm545, %v546, %v544
            %v548 = vxor.u32 %v547, 2147483648
            %v549 = vsel %vm538, %v547, %v548
            %v550 = vadd.f32 %v537, %v549
            %v551 = vrcp.pop %v550
            %v552 = vand.u32 2147483647, %v529
            %v553 = vand.u32 2147483647, %v531
            %v554 = vand.u32 2147483647, %v533
            %v555 = vmin.f32 %v552, %v554
            %v556 = vmul.f32 1.1920929e-08, %v555
            %vm557 = vcmp.le.f32.partialorder %v553, %v556
            %v558 = vsel %vm557, 0.0, %v551
            %v559 = vmul.f32 %v558, %v558
            %v560 = vadd.f32 1.0, %v559
            %v561 = vrsqrt.pop %v560
            %v562 = vmul.f32 %v558, %v561
            %v563 = vmul.f32 %v558, %v531
            %v564 = vsub.f32 %v529, %v563
            %v565 = vmul.f32 %v558, %v531
            %v566 = vadd.f32 %v533, %v565
            %s567 = smov [#allocation27]
            %568 = vst [vmem:[%s567] sm:$0xff] %v564
            %s569 = smov [#allocation28]
            %570 = vst [vmem:[%s569] sm:$0xff] %v566
            %s571 = smov %s526
            %572 = vst [vmem:[%s571] sm:$0xff] %v561
            %s573 = smov %s527
            %574 = vst [vmem:[%s573] sm:$0xff] %v562
            %s575 = smov [#allocation29]
            %v576 = vld [vmem:[%s575] ss:$0 sm:$0xff]
            %v577 = vlaneseq
            %v578 = vand.u32 %v577, 127
            %v579 = vmov %v578
            %v580 = vlaneseq
            %v581 = vshrl.u32 %v580, 7
            %v582 = vmov %v581
            %vm584 = vcmp.eq.s32.totalorder %v582, %v579
            %v585 = vsel %vm584, %v576, 0.0
            %586 = vadd.xlane.f32.xlu0 %v585
            %v587 = vpop.xlane.xlu0 %586
            %s588 = smov [#allocation31]
            %589 = vst [vmem:[%s588] sm:$0xff] %v587
            %s590 = smov [#allocation30]
            %v591 = vld [vmem:[%s590] ss:$0 sm:$0xff]
            %v592 = vlaneseq
            %v593 = vand.u32 %v592, 127
            %v594 = vmov %v593
            %v595 = vlaneseq
            %v596 = vshrl.u32 %v595, 7
            %v597 = vmov %v596
            %vm599 = vcmp.eq.s32.totalorder %v597, %v594
            %v600 = vsel %vm599, %v591, 0.0
            %601 = vadd.xlane.f32.xlu0 %v600
            %v602 = vpop.xlane.xlu0 %601
            %s603 = smov [#allocation32]
            %604 = vst [vmem:[%s603] sm:$0xff] %v602
            %s605 = smov [#allocation31]
            %v606 = vld [vmem:[%s605] sm:$0xff]
            %s607 = smov [#allocation32]
            %v608 = vld [vmem:[%s607] sm:$0xff]
            %s609 = smov [#allocation20]
            %s610 = smov [#allocation21]
            %s611 = smov [#allocation22]
            %s612 = smov [#allocation23]
            %v613 = vld [vmem:[%s609] sm:$0xf]
            %v614 = vld [vmem:[%s610] sm:$0xf]
            %v615 = vld [vmem:[%s611] sm:$0xf]
            %v616 = vld [vmem:[%s612] sm:$0xf]
            %v617 = vmul.f32 %v606, %v613
            %v618 = vmul.f32 %v608, %v615
            %v619 = vsub.f32 %v617, %v618
            %v620 = vmul.f32 %v606, %v614
            %v621 = vmul.f32 %v608, %v616
            %v622 = vsub.f32 %v620, %v621
            %v623 = vmul.f32 %v608, %v613
            %v624 = vmul.f32 %v606, %v615
            %v625 = vadd.f32 %v623, %v624
            %v626 = vmul.f32 %v608, %v614
            %v627 = vmul.f32 %v606, %v616
            %v628 = vadd.f32 %v626, %v627
            %629 = vst [vmem:[%s609] sm:$0xf] %v619
            %630 = vst [vmem:[%s610] sm:$0xf] %v622
            %631 = vst [vmem:[%s611] sm:$0xf] %v625
            %632 = vst [vmem:[%s612] sm:$0xf] %v628
            %s633 = smov [#allocation29]
            %v634 = vld [vmem:[%s633] ss:$0 sm:$0xff]
            %s635 = smov [#allocation30]
            %v636 = vld [vmem:[%s635] ss:$0 sm:$0xff]
            %s637 = smov [#allocation20]
            %s638 = smov [#allocation21]
            %s639 = smov [#allocation22]
            %s640 = smov [#allocation23]
            %v641 = vld [vmem:[%s637] sm:$0xf]
            %v642 = vld [vmem:[%s638] sm:$0xf]
            %v643 = vld [vmem:[%s639] sm:$0xf]
            %v644 = vld [vmem:[%s640] sm:$0xf]
            %v645 = vmul.f32 %v634, %v641
            %v646 = vmul.f32 %v636, %v642
            %v647 = vsub.f32 %v645, %v646
            %v648 = vmul.f32 %v636, %v641
            %v649 = vmul.f32 %v634, %v642
            %v650 = vadd.f32 %v648, %v649
            %v651 = vmul.f32 %v634, %v643
            %v652 = vmul.f32 %v636, %v644
            %v653 = vsub.f32 %v651, %v652
            %v654 = vmul.f32 %v636, %v643
            %v655 = vmul.f32 %v634, %v644
            %v656 = vadd.f32 %v654, %v655
            %657 = vst [vmem:[%s637] sm:$0xf] %v647
            %658 = vst [vmem:[%s638] sm:$0xf] %v650
            %659 = vst [vmem:[%s639] sm:$0xf] %v653
            %660 = vst [vmem:[%s640] sm:$0xf] %v656
            %s661 = smov [#allocation20]
            %s662 = smov [#allocation27]
            %v663 = vlaneseq
            %v664 = vand.u32 %v663, 127
            %v665 = vmov %v664
            %v666 = vlaneseq
            %v667 = vshrl.u32 %v666, 7
            %v668 = vmov %v667
            %v669 = vld [vmem:[%s662] ss:$0 sm:$0xff]
            %v670 = vld [vmem:[%s661] sm:$0xf]
            %vm673 = vcmp.eq.s32.totalorder %v668, %v665
            %v674 = vsel %vm673, %v669, %v670
            %675 = vst [vmem:[%s661] sm:$0xf] %v674
            %s676 = smov [#allocation21]
            %v677 = vlaneseq
            %v678 = vand.u32 %v677, 127
            %v679 = vmov %v678
            %v680 = vlaneseq
            %v681 = vshrl.u32 %v680, 7
            %v682 = vmov %v681
            %v683 = vld [vmem:[%s676] sm:$0xf]
            %vm686 = vcmp.eq.s32.totalorder %v682, %v679
            %v687 = vsel %vm686, 0.0, %v683
            %688 = vst [vmem:[%s676] sm:$0xf] %v687
            %s689 = smov [#allocation22]
            %v690 = vlaneseq
            %v691 = vand.u32 %v690, 127
            %v692 = vmov %v691
            %v693 = vlaneseq
            %v694 = vshrl.u32 %v693, 7
            %v695 = vmov %v694
            %v696 = vld [vmem:[%s689] sm:$0xf]
            %vm699 = vcmp.eq.s32.totalorder %v695, %v692
            %v700 = vsel %vm699, 0.0, %v696
            %701 = vst [vmem:[%s689] sm:$0xf] %v700
            %s702 = smov [#allocation23]
            %s703 = smov [#allocation28]
            %v704 = vlaneseq
            %v705 = vand.u32 %v704, 127
            %v706 = vmov %v705
            %v707 = vlaneseq
            %v708 = vshrl.u32 %v707, 7
            %v709 = vmov %v708
            %v710 = vld [vmem:[%s703] ss:$0 sm:$0xff]
            %v711 = vld [vmem:[%s702] sm:$0xf]
            %vm714 = vcmp.eq.s32.totalorder %v709, %v706
            %v715 = vsel %vm714, %v710, %v711
            %716 = vst [vmem:[%s702] sm:$0xf] %v715
            %s717 = smov [#allocation20]
            %s718 = smov [#allocation21]
            %v719 = vld [vmem:[%s718] sm:$0xf]
            %720 = vrot.lane.b32.xlu0 %v719, 1
            %v721 = vpop.permute.xlu0 %720
            %v722 = vld [vmem:[%s717] sm:$0xf]
            %v723 = vld [vmem:[%s717] sm:$0xf]
            %724 = vrot.lane.b32.xlu0 %v723, 1
            %v725 = vpop.permute.xlu0 %724
            %v726 = vlaneseq
            %v727 = vand.u32 %v726, 127
            %vm728 = vcmp.eq.s32.totalorder %v727, 0
            %v729 = vsel %vm728, %v723, %v725
            %v730 = vlaneseq
            %v731 = vand.u32 %v730, 127
            %vm732 = vcmp.eq.s32.totalorder %v731, 1
            %v733 = vsel %vm732, %v721, %v729
            %v734 = vlaneseq
            %v735 = vand.u32 %v734, 127
            %vm736 = vcmp.ge.s32.totalorder %v735, 0
            %vm737 = vcmp.lt.s32.totalorder %v735, 4
            %vm738 = vmand %vm736, %vm737
            %v739 = vsel %vm738, %v733, 0.0
            %v740 = vld [vmem:[%s718] sm:$0xf]
            %741 = vrot.lane.b32.xlu0 %v740, 127
            %v742 = vpop.permute.xlu0 %741
            %v743 = vlaneseq
            %v744 = vand.u32 %v743, 127
            %vm745 = vcmp.eq.s32.totalorder %v744, 3
            %v746 = vsel %vm745, %v722, %v742
            %747 = vst [vmem:[%s717] sm:$0xf] %v739
            %748 = vst [vmem:[%s718] sm:$0xf] %v746
            %s749 = smov [#allocation22]
            %s750 = smov [#allocation23]
            %v751 = vld [vmem:[%s750] sm:$0xf]
            %752 = vrot.lane.b32.xlu0 %v751, 1
            %v753 = vpop.permute.xlu0 %752
            %v754 = vld [vmem:[%s749] sm:$0xf]
            %v755 = vld [vmem:[%s749] sm:$0xf]
            %756 = vrot.lane.b32.xlu0 %v755, 1
            %v757 = vpop.permute.xlu0 %756
            %v758 = vlaneseq
            %v759 = vand.u32 %v758, 127
            %vm760 = vcmp.eq.s32.totalorder %v759, 0
            %v761 = vsel %vm760, %v755, %v757
            %v762 = vlaneseq
            %v763 = vand.u32 %v762, 127
            %vm764 = vcmp.eq.s32.totalorder %v763, 1
            %v765 = vsel %vm764, %v753, %v761
            %v766 = vlaneseq
            %v767 = vand.u32 %v766, 127
            %vm768 = vcmp.ge.s32.totalorder %v767, 0
            %vm769 = vcmp.lt.s32.totalorder %v767, 4
            %vm770 = vmand %vm768, %vm769
            %v771 = vsel %vm770, %v765, 0.0
            %v772 = vld [vmem:[%s750] sm:$0xf]
            %773 = vrot.lane.b32.xlu0 %v772, 127
            %v774 = vpop.permute.xlu0 %773
            %v775 = vlaneseq
            %v776 = vand.u32 %v775, 127
            %vm777 = vcmp.eq.s32.totalorder %v776, 3
            %v778 = vsel %vm777, %v754, %v774
            %779 = vst [vmem:[%s749] sm:$0xf] %v771
            %780 = vst [vmem:[%s750] sm:$0xf] %v778
            %s781 = smov [#allocation20]
            %s782 = smov [#allocation22]
            %v783 = vld [vmem:[%s781] ss:$0 sm:$0xff]
            %s785 = scalar_lea.vmem %s781, 4294967295
            %v786 = vld [vmem:[%s785] sm:$0xe]
            %v787 = vlaneseq
            %v788 = vshrl.u32 %v787, 7
            %vm789 = vcmp.eq.s32.totalorder %v788, 0
            %v790 = vsel %vm789, %v783, %v786
            %s791 = scalar_lea.vmem %s781, 3
            %v792 = vld [vmem:[%s791] ss:$0 sm:$0xff]
            %793 = vst [vmem:[%s781] sm:$0xf] %v790
            %v794 = vld [vmem:[%s782] ss:$0 sm:$0xff]
            %s795 = scalar_lea.vmem %s781, 1
            %796 = vst [vmem:[%s795] sm:$0x1] %v794
            %s797 = scalar_lea.vmem %s782, 1
            %v798 = vld [vmem:[%s797] sm:$0x7]
            %v799 = vlaneseq
            %v800 = vshrl.u32 %v799, 7
            %vm801 = vcmp.eq.s32.totalorder %v800, 3
            %v802 = vsel %vm801, %v792, %v798
            %v803 = vld [vmem:[%s782] ss:$0 sm:$0xff]
            %804 = vst [vmem:[%s782] sm:$0xf] %v802
            %s805 = smov [#allocation21]
            %s806 = smov [#allocation23]
            %v807 = vld [vmem:[%s805] ss:$0 sm:$0xff]
            %s809 = scalar_lea.vmem %s805, 4294967295
            %v810 = vld [vmem:[%s809] sm:$0xe]
            %v811 = vlaneseq
            %v812 = vshrl.u32 %v811, 7
            %vm813 = vcmp.eq.s32.totalorder %v812, 0
            %v814 = vsel %vm813, %v807, %v810
            %s815 = scalar_lea.vmem %s805, 3
            %v816 = vld [vmem:[%s815] ss:$0 sm:$0xff]
            %817 = vst [vmem:[%s805] sm:$0xf] %v814
            %v818 = vld [vmem:[%s806] ss:$0 sm:$0xff]
            %s819 = scalar_lea.vmem %s805, 1
            %820 = vst [vmem:[%s819] sm:$0x1] %v818
            %s821 = scalar_lea.vmem %s806, 1
            %v822 = vld [vmem:[%s821] sm:$0x7]
            %v823 = vlaneseq
            %v824 = vshrl.u32 %v823, 7
            %vm825 = vcmp.eq.s32.totalorder %v824, 3
            %v826 = vsel %vm825, %v816, %v822
            %v827 = vld [vmem:[%s806] ss:$0 sm:$0xff]
            %828 = vst [vmem:[%s806] sm:$0xf] %v826
            %s829 = smov [#allocation31]
            %v830 = vld [vmem:[%s829] sm:$0xff]
            %s831 = smov [#allocation32]
            %v832 = vld [vmem:[%s831] sm:$0xff]
            %s833 = smov [#allocation12]
            %s834 = smov [#allocation14]
            %s835 = smov [#allocation16]
            %s836 = smov [#allocation18]
            %v837 = vld [vmem:[%s833] sm:$0xf]
            %v838 = vld [vmem:[%s834] sm:$0xf]
            %v839 = vld [vmem:[%s835] sm:$0xf]
            %v840 = vld [vmem:[%s836] sm:$0xf]
            %v841 = vmul.f32 %v830, %v837
            %v842 = vmul.f32 %v832, %v839
            %v843 = vsub.f32 %v841, %v842
            %v844 = vmul.f32 %v830, %v838
            %v845 = vmul.f32 %v832, %v840
            %v846 = vsub.f32 %v844, %v845
            %v847 = vmul.f32 %v832, %v837
            %v848 = vmul.f32 %v830, %v839
            %v849 = vadd.f32 %v847, %v848
            %v850 = vmul.f32 %v832, %v838
            %v851 = vmul.f32 %v830, %v840
            %v852 = vadd.f32 %v850, %v851
            %853 = vst [vmem:[%s833] sm:$0xf] %v843
            %854 = vst [vmem:[%s834] sm:$0xf] %v846
            %855 = vst [vmem:[%s835] sm:$0xf] %v849
            %856 = vst [vmem:[%s836] sm:$0xf] %v852
            %s857 = smov [#allocation12]
            %s858 = smov [#allocation16]
            %v859 = vld [vmem:[%s857] ss:$0 sm:$0xff]
            %s861 = scalar_lea.vmem %s857, 4294967295
            %v862 = vld [vmem:[%s861] sm:$0xe]
            %v863 = vlaneseq
            %v864 = vshrl.u32 %v863, 7
            %vm865 = vcmp.eq.s32.totalorder %v864, 0
            %v866 = vsel %vm865, %v859, %v862
            %s867 = scalar_lea.vmem %s857, 3
            %v868 = vld [vmem:[%s867] ss:$0 sm:$0xff]
            %869 = vst [vmem:[%s857] sm:$0xf] %v866
            %v870 = vld [vmem:[%s858] ss:$0 sm:$0xff]
            %s871 = scalar_lea.vmem %s857, 1
            %872 = vst [vmem:[%s871] sm:$0x1] %v870
            %s873 = scalar_lea.vmem %s858, 1
            %v874 = vld [vmem:[%s873] sm:$0x7]
            %v875 = vlaneseq
            %v876 = vshrl.u32 %v875, 7
            %vm877 = vcmp.eq.s32.totalorder %v876, 3
            %v878 = vsel %vm877, %v868, %v874
            %v879 = vld [vmem:[%s858] ss:$0 sm:$0xff]
            %880 = vst [vmem:[%s858] sm:$0xf] %v878
            %s881 = smov [#allocation14]
            %s882 = smov [#allocation18]
            %v883 = vld [vmem:[%s881] ss:$0 sm:$0xff]
            %s885 = scalar_lea.vmem %s881, 4294967295
            %v886 = vld [vmem:[%s885] sm:$0xe]
            %v887 = vlaneseq
            %v888 = vshrl.u32 %v887, 7
            %vm889 = vcmp.eq.s32.totalorder %v888, 0
            %v890 = vsel %vm889, %v883, %v886
            %s891 = scalar_lea.vmem %s881, 3
            %v892 = vld [vmem:[%s891] ss:$0 sm:$0xff]
            %893 = vst [vmem:[%s881] sm:$0xf] %v890
            %v894 = vld [vmem:[%s882] ss:$0 sm:$0xff]
            %s895 = scalar_lea.vmem %s881, 1
            %896 = vst [vmem:[%s895] sm:$0x1] %v894
            %s897 = scalar_lea.vmem %s882, 1
            %v898 = vld [vmem:[%s897] sm:$0x7]
            %v899 = vlaneseq
            %v900 = vshrl.u32 %v899, 7
            %vm901 = vcmp.eq.s32.totalorder %v900, 3
            %v902 = vsel %vm901, %v892, %v898
            %v903 = vld [vmem:[%s882] ss:$0 sm:$0xff]
            %904 = vst [vmem:[%s882] sm:$0xf] %v902
          $region152: #{custom-call.34} parent=144 // loop_footer
            %s465 = sadd.s32 1, %s461
          $region153: #{custom-call.34} parent=144 // loop_footer_branch
            %460 = sbr.rel target = $region149
          $region154: #{custom-call.34} parent=144 // loop_exit
            _
          %s905 = sadd.s32 %s363, 1
        $region145: #{custom-call.34} parent=139 // loop_footer
          _
        $region146: #{custom-call.34} parent=139 // loop_footer_branch
          %362 = sbr.rel target = $region142
        $region147: #{custom-call.34} parent=139 // loop_exit
          _
        %s908 = sand.u32 %s17, 7
        %s909 = scalar_lea.vmem [#allocation8], %s908
        %s910 = sand.u32 %s17, 7
        %s911 = scalar_lea.vmem [#allocation10], %s910
        %s912 = smov [#allocation20]
        %s913 = smov %s909
        %v914 = vlaneseq
        %v915 = vand.u32 %v914, 127
        %v916 = vmov %v915
        %v917 = vlaneseq
        %v918 = vshrl.u32 %v917, 7
        %v919 = vmov %v918
        %v920 = vld [vmem:[%s912] sm:$0xf]
        %vm923 = vcmp.eq.s32.totalorder %v919, %v916
        %v924 = vsel %vm923, %v920, 0.0
        %v925 = vrot.slane %v924, 4
        %v926 = vadd.f32 %v924, %v925
        %v927 = vrot.slane %v926, 2
        %v928 = vadd.f32 %v926, %v927
        %v929 = vrot.slane %v928, 1
        %v930 = vadd.f32 %v928, %v929
        %931 = vst [vmem:[%s913] sm:$0x1] %v930
        %s932 = smov [#allocation23]
        %s933 = smov %s911
        %v934 = vlaneseq
        %v935 = vand.u32 %v934, 127
        %v936 = vmov %v935
        %v937 = vlaneseq
        %v938 = vshrl.u32 %v937, 7
        %v939 = vmov %v938
        %v940 = vld [vmem:[%s932] sm:$0xf]
        %vm943 = vcmp.eq.s32.totalorder %v939, %v936
        %v944 = vsel %vm943, %v940, 0.0
        %v945 = vrot.slane %v944, 4
        %v946 = vadd.f32 %v944, %v945
        %v947 = vrot.slane %v946, 2
        %v948 = vadd.f32 %v946, %v947
        %v949 = vrot.slane %v948, 1
        %v950 = vadd.f32 %v948, %v949
        %951 = vst [vmem:[%s933] sm:$0x1] %v950
        %s953 = sshllo.u32 0, 4
        %v955 = vld [vmem:[#allocation8] sm:%s953]
        %s956 = sshllo.u32 0, 4
        %957 = vst [vmem:[%s279] sm:%s956] %v955
        %s959 = sshllo.u32 0, 4
        %v961 = vld [vmem:[#allocation10] sm:%s959]
        %s962 = sshllo.u32 0, 4
        %963 = vst [vmem:[%s285] sm:%s962] %v961
        %s965 = sshllo.u32 0, 4
        %v967 = vld [vmem:[#allocation12] sm:%s965]
        %s968 = sshllo.u32 0, 4
        %969 = vst [vmem:[%s289] sm:%s968] %v967
        %s971 = sshllo.u32 0, 4
        %v973 = vld [vmem:[#allocation14] sm:%s971]
        %s974 = sshllo.u32 0, 4
        %975 = vst [vmem:[%s293] sm:%s974] %v973
        %s977 = sshllo.u32 0, 4
        %v979 = vld [vmem:[#allocation16] sm:%s977]
        %s980 = sshllo.u32 0, 4
        %981 = vst [vmem:[%s297] sm:%s980] %v979
        %s983 = sshllo.u32 0, 4
        %v985 = vld [vmem:[#allocation18] sm:%s983]
        %s986 = sshllo.u32 0, 4
        %987 = vst [vmem:[%s301] sm:%s986] %v985
        %s988 = sand.u32 %s27, 1
        %s989 = sand.u32 %s27, 1
        %s990 = smul.addr %s989, 4
        %s991 = scalar_lea.vmem [#allocation9], %s990
        %s992 = sand.u32 %s55, 1
        %s993 = sand.u32 %s55, 1
        %s994 = smul.addr %s993, 4
        %s995 = scalar_lea.vmem [#allocation11], %s994
        %s996 = sand.u32 %s17, 1
        %s997 = sand.u32 %s17, 1
        %s998 = smul.addr %s997, 4
        %s999 = scalar_lea.vmem [#allocation13], %s998
        %s1000 = sand.u32 %s17, 1
        %s1001 = sand.u32 %s17, 1
        %s1002 = smul.addr %s1001, 4
        %s1003 = scalar_lea.vmem [#allocation15], %s1002
        %s1004 = sand.u32 %s17, 1
        %s1005 = sand.u32 %s17, 1
        %s1006 = smul.addr %s1005, 4
        %s1007 = scalar_lea.vmem [#allocation17], %s1006
        %s1008 = sand.u32 %s17, 1
        %s1009 = sand.u32 %s17, 1
        %s1010 = smul.addr %s1009, 4
        %s1011 = scalar_lea.vmem [#allocation19], %s1010
        // Predicated region
        $region155: #{custom-call.34} parent=139 // pred_check
          %p1012 = pneg %p37
        $region156: #{custom-call.34} parent=139 // pred_check_branch
          %1014 = sbr.rel (%p1012) target = $region158
        $region157: #{custom-call.34} parent=139 // pred_region
          %s1015 = sshrl.u32 %s17, 3
          %s1016 = smul.addr %s1015, 4
          %s1017 = scalar_lea.vmem %s4, %s1016
          // Predicated region
          $region159: #{custom-call.34} parent=157 // pred_check
            _
          $region160: #{custom-call.34} parent=157 // pred_check_branch
            %1019 = sbr.rel (0) target = $region162
          $region161: #{custom-call.34} parent=157 // pred_region
            // Predicated region
            $region163: #{custom-call.34} parent=161 // pred_check
              _
            $region164: #{custom-call.34} parent=161 // pred_check_branch
              %1021 = sbr.rel target = $region166
            $region165: #{custom-call.34} parent=161 // pred_region
              // Predicated region
              $region178: #{custom-call.34} parent=165 // pred_check
                _
              $region179: #{custom-call.34} parent=165 // pred_check_branch
                %1036 = sbr.rel (0) target = $region181
              $region180: #{custom-call.34} parent=165 // pred_region
                loop: start=0, step=1, limit=1
                $region182: #{custom-call.34} parent=180 // loop_pre_header
                  _
                $region183: #{custom-call.34} parent=180 // loop_header
                  %s1039 = sphi 0, %s1043
                  %p1040 = scmp.ge.s32.totalorder %s1039, 1
                  %s1044 = sphi %s991, %s991
                  %s1045 = sphi %s1017, %s1017
                $region184: #{custom-call.34} parent=180 // loop_header_branch
                  %1042 = sbr.rel (%p1040) target = $region188
                $region185: #{custom-call.34} parent=180 // loop_body
                  %v1046 = vld [vmem:[%s1044] sm:$0xf]
                  %1047 = vst [vmem:[%s1045] sm:$0xf] %v1046
                $region186: #{custom-call.34} parent=180 // loop_footer
                  %s1043 = sadd.s32 1, %s1039
                $region187: #{custom-call.34} parent=180 // loop_footer_branch
                  %1038 = sbr.rel target = $region183
                $region188: #{custom-call.34} parent=180 // loop_exit
                  _
              $region181: #{custom-call.34} parent=165 // pred_fallthru
                _
            $region166: #{custom-call.34} parent=161 // pred_fallthru
              _
            // Predicated region
            $region167: #{custom-call.34} parent=161 // pred_check
              _
            $region168: #{custom-call.34} parent=161 // pred_check_branch
              %1023 = sbr.rel (0) target = $region170
            $region169: #{custom-call.34} parent=161 // pred_region
              loop: start=0, step=1, limit=1
              $region171: #{custom-call.34} parent=169 // loop_pre_header
                _
              $region172: #{custom-call.34} parent=169 // loop_header
                %s1026 = sphi 0, %s1030
                %p1027 = scmp.ge.s32.totalorder %s1026, 1
                %s1031 = sphi %s991, %s991
                %s1032 = sphi %s1017, %s1017
              $region173: #{custom-call.34} parent=169 // loop_header_branch
                %1029 = sbr.rel (%p1027) target = $region177
              $region174: #{custom-call.34} parent=169 // loop_body
                %v1033 = vld [vmem:[%s1031] sm:$0xf]
                %1034 = vst [vmem:[%s1032] sm:$0xf] %v1033
              $region175: #{custom-call.34} parent=169 // loop_footer
                %s1030 = sadd.s32 1, %s1026
              $region176: #{custom-call.34} parent=169 // loop_footer_branch
                %1025 = sbr.rel target = $region172
              $region177: #{custom-call.34} parent=169 // loop_exit
                _
            $region170: #{custom-call.34} parent=161 // pred_fallthru
              _
          $region162: #{custom-call.34} parent=157 // pred_fallthru
            _
          %1048 = vnop
        $region158: #{custom-call.34} parent=139 // pred_fallthru
          _
        // Predicated region
        $region189: #{custom-call.34} parent=139 // pred_check
          %p1049 = pneg %p65
        $region190: #{custom-call.34} parent=139 // pred_check_branch
          %1051 = sbr.rel (%p1049) target = $region192
        $region191: #{custom-call.34} parent=139 // pred_region
          %s1052 = sshrl.u32 %s17, 3
          %s1053 = smul.addr %s1052, 4
          %s1054 = scalar_lea.vmem %s5, %s1053
          // Predicated region
          $region193: #{custom-call.34} parent=191 // pred_check
            _
          $region194: #{custom-call.34} parent=191 // pred_check_branch
            %1056 = sbr.rel (0) target = $region196
          $region195: #{custom-call.34} parent=191 // pred_region
            // Predicated region
            $region197: #{custom-call.34} parent=195 // pred_check
              _
            $region198: #{custom-call.34} parent=195 // pred_check_branch
              %1058 = sbr.rel target = $region200
            $region199: #{custom-call.34} parent=195 // pred_region
              // Predicated region
              $region212: #{custom-call.34} parent=199 // pred_check
                _
              $region213: #{custom-call.34} parent=199 // pred_check_branch
                %1073 = sbr.rel (0) target = $region215
              $region214: #{custom-call.34} parent=199 // pred_region
                loop: start=0, step=1, limit=1
                $region216: #{custom-call.34} parent=214 // loop_pre_header
                  _
                $region217: #{custom-call.34} parent=214 // loop_header
                  %s1076 = sphi 0, %s1080
                  %p1077 = scmp.ge.s32.totalorder %s1076, 1
                  %s1081 = sphi %s995, %s995
                  %s1082 = sphi %s1054, %s1054
                $region218: #{custom-call.34} parent=214 // loop_header_branch
                  %1079 = sbr.rel (%p1077) target = $region222
                $region219: #{custom-call.34} parent=214 // loop_body
                  %v1083 = vld [vmem:[%s1081] sm:$0xf]
                  %1084 = vst [vmem:[%s1082] sm:$0xf] %v1083
                $region220: #{custom-call.34} parent=214 // loop_footer
                  %s1080 = sadd.s32 1, %s1076
                $region221: #{custom-call.34} parent=214 // loop_footer_branch
                  %1075 = sbr.rel target = $region217
                $region222: #{custom-call.34} parent=214 // loop_exit
                  _
              $region215: #{custom-call.34} parent=199 // pred_fallthru
                _
            $region200: #{custom-call.34} parent=195 // pred_fallthru
              _
            // Predicated region
            $region201: #{custom-call.34} parent=195 // pred_check
              _
            $region202: #{custom-call.34} parent=195 // pred_check_branch
              %1060 = sbr.rel (0) target = $region204
            $region203: #{custom-call.34} parent=195 // pred_region
              loop: start=0, step=1, limit=1
              $region205: #{custom-call.34} parent=203 // loop_pre_header
                _
              $region206: #{custom-call.34} parent=203 // loop_header
                %s1063 = sphi 0, %s1067
                %p1064 = scmp.ge.s32.totalorder %s1063, 1
                %s1068 = sphi %s995, %s995
                %s1069 = sphi %s1054, %s1054
              $region207: #{custom-call.34} parent=203 // loop_header_branch
                %1066 = sbr.rel (%p1064) target = $region211
              $region208: #{custom-call.34} parent=203 // loop_body
                %v1070 = vld [vmem:[%s1068] sm:$0xf]
                %1071 = vst [vmem:[%s1069] sm:$0xf] %v1070
              $region209: #{custom-call.34} parent=203 // loop_footer
                %s1067 = sadd.s32 1, %s1063
              $region210: #{custom-call.34} parent=203 // loop_footer_branch
                %1062 = sbr.rel target = $region206
              $region211: #{custom-call.34} parent=203 // loop_exit
                _
            $region204: #{custom-call.34} parent=195 // pred_fallthru
              _
          $region196: #{custom-call.34} parent=191 // pred_fallthru
            _
          %1085 = vnop
        $region192: #{custom-call.34} parent=139 // pred_fallthru
          _
        %s1086 = smul.addr %s17, 4
        %s1087 = scalar_lea.vmem %s6, %s1086
        // Predicated region
        $region223: #{custom-call.34} parent=139 // pred_check
          _
        $region224: #{custom-call.34} parent=139 // pred_check_branch
          %1089 = sbr.rel (0) target = $region226
        $region225: #{custom-call.34} parent=139 // pred_region
          // Predicated region
          $region227: #{custom-call.34} parent=225 // pred_check
            _
          $region228: #{custom-call.34} parent=225 // pred_check_branch
            %1091 = sbr.rel target = $region230
          $region229: #{custom-call.34} parent=225 // pred_region
            // Predicated region
            $region242: #{custom-call.34} parent=229 // pred_check
              _
            $region243: #{custom-call.34} parent=229 // pred_check_branch
              %1106 = sbr.rel (0) target = $region245
            $region244: #{custom-call.34} parent=229 // pred_region
              loop: start=0, step=1, limit=1
              $region246: #{custom-call.34} parent=244 // loop_pre_header
                _
              $region247: #{custom-call.34} parent=244 // loop_header
                %s1109 = sphi 0, %s1113
                %p1110 = scmp.ge.s32.totalorder %s1109, 1
                %s1114 = sphi %s999, %s999
                %s1115 = sphi %s1087, %s1087
              $region248: #{custom-call.34} parent=244 // loop_header_branch
                %1112 = sbr.rel (%p1110) target = $region252
              $region249: #{custom-call.34} parent=244 // loop_body
                %v1116 = vld [vmem:[%s1114] sm:$0xf]
                %1117 = vst [vmem:[%s1115] sm:$0xf] %v1116
              $region250: #{custom-call.34} parent=244 // loop_footer
                %s1113 = sadd.s32 1, %s1109
              $region251: #{custom-call.34} parent=244 // loop_footer_branch
                %1108 = sbr.rel target = $region247
              $region252: #{custom-call.34} parent=244 // loop_exit
                _
            $region245: #{custom-call.34} parent=229 // pred_fallthru
              _
          $region230: #{custom-call.34} parent=225 // pred_fallthru
            _
          // Predicated region
          $region231: #{custom-call.34} parent=225 // pred_check
            _
          $region232: #{custom-call.34} parent=225 // pred_check_branch
            %1093 = sbr.rel (0) target = $region234
          $region233: #{custom-call.34} parent=225 // pred_region
            loop: start=0, step=1, limit=1
            $region235: #{custom-call.34} parent=233 // loop_pre_header
              _
            $region236: #{custom-call.34} parent=233 // loop_header
              %s1096 = sphi 0, %s1100
              %p1097 = scmp.ge.s32.totalorder %s1096, 1
              %s1101 = sphi %s999, %s999
              %s1102 = sphi %s1087, %s1087
            $region237: #{custom-call.34} parent=233 // loop_header_branch
              %1099 = sbr.rel (%p1097) target = $region241
            $region238: #{custom-call.34} parent=233 // loop_body
              %v1103 = vld [vmem:[%s1101] sm:$0xf]
              %1104 = vst [vmem:[%s1102] sm:$0xf] %v1103
            $region239: #{custom-call.34} parent=233 // loop_footer
              %s1100 = sadd.s32 1, %s1096
            $region240: #{custom-call.34} parent=233 // loop_footer_branch
              %1095 = sbr.rel target = $region236
            $region241: #{custom-call.34} parent=233 // loop_exit
              _
          $region234: #{custom-call.34} parent=225 // pred_fallthru
            _
        $region226: #{custom-call.34} parent=139 // pred_fallthru
          _
        %1118 = vnop
        %s1119 = smul.addr %s17, 4
        %s1120 = scalar_lea.vmem %s7, %s1119
        // Predicated region
        $region253: #{custom-call.34} parent=139 // pred_check
          _
        $region254: #{custom-call.34} parent=139 // pred_check_branch
          %1122 = sbr.rel (0) target = $region256
        $region255: #{custom-call.34} parent=139 // pred_region
          // Predicated region
          $region257: #{custom-call.34} parent=255 // pred_check
            _
          $region258: #{custom-call.34} parent=255 // pred_check_branch
            %1124 = sbr.rel target = $region260
          $region259: #{custom-call.34} parent=255 // pred_region
            // Predicated region
            $region272: #{custom-call.34} parent=259 // pred_check
              _
            $region273: #{custom-call.34} parent=259 // pred_check_branch
              %1139 = sbr.rel (0) target = $region275
            $region274: #{custom-call.34} parent=259 // pred_region
              loop: start=0, step=1, limit=1
              $region276: #{custom-call.34} parent=274 // loop_pre_header
                _
              $region277: #{custom-call.34} parent=274 // loop_header
                %s1142 = sphi 0, %s1146
                %p1143 = scmp.ge.s32.totalorder %s1142, 1
                %s1147 = sphi %s1003, %s1003
                %s1148 = sphi %s1120, %s1120
              $region278: #{custom-call.34} parent=274 // loop_header_branch
                %1145 = sbr.rel (%p1143) target = $region282
              $region279: #{custom-call.34} parent=274 // loop_body
                %v1149 = vld [vmem:[%s1147] sm:$0xf]
                %1150 = vst [vmem:[%s1148] sm:$0xf] %v1149
              $region280: #{custom-call.34} parent=274 // loop_footer
                %s1146 = sadd.s32 1, %s1142
              $region281: #{custom-call.34} parent=274 // loop_footer_branch
                %1141 = sbr.rel target = $region277
              $region282: #{custom-call.34} parent=274 // loop_exit
                _
            $region275: #{custom-call.34} parent=259 // pred_fallthru
              _
          $region260: #{custom-call.34} parent=255 // pred_fallthru
            _
          // Predicated region
          $region261: #{custom-call.34} parent=255 // pred_check
            _
          $region262: #{custom-call.34} parent=255 // pred_check_branch
            %1126 = sbr.rel (0) target = $region264
          $region263: #{custom-call.34} parent=255 // pred_region
            loop: start=0, step=1, limit=1
            $region265: #{custom-call.34} parent=263 // loop_pre_header
              _
            $region266: #{custom-call.34} parent=263 // loop_header
              %s1129 = sphi 0, %s1133
              %p1130 = scmp.ge.s32.totalorder %s1129, 1
              %s1134 = sphi %s1003, %s1003
              %s1135 = sphi %s1120, %s1120
            $region267: #{custom-call.34} parent=263 // loop_header_branch
              %1132 = sbr.rel (%p1130) target = $region271
            $region268: #{custom-call.34} parent=263 // loop_body
              %v1136 = vld [vmem:[%s1134] sm:$0xf]
              %1137 = vst [vmem:[%s1135] sm:$0xf] %v1136
            $region269: #{custom-call.34} parent=263 // loop_footer
              %s1133 = sadd.s32 1, %s1129
            $region270: #{custom-call.34} parent=263 // loop_footer_branch
              %1128 = sbr.rel target = $region266
            $region271: #{custom-call.34} parent=263 // loop_exit
              _
          $region264: #{custom-call.34} parent=255 // pred_fallthru
            _
        $region256: #{custom-call.34} parent=139 // pred_fallthru
          _
        %1151 = vnop
        %s1152 = smul.addr %s17, 4
        %s1153 = scalar_lea.vmem %s8, %s1152
        // Predicated region
        $region283: #{custom-call.34} parent=139 // pred_check
          _
        $region284: #{custom-call.34} parent=139 // pred_check_branch
          %1155 = sbr.rel (0) target = $region286
        $region285: #{custom-call.34} parent=139 // pred_region
          // Predicated region
          $region287: #{custom-call.34} parent=285 // pred_check
            _
          $region288: #{custom-call.34} parent=285 // pred_check_branch
            %1157 = sbr.rel target = $region290
          $region289: #{custom-call.34} parent=285 // pred_region
            // Predicated region
            $region302: #{custom-call.34} parent=289 // pred_check
              _
            $region303: #{custom-call.34} parent=289 // pred_check_branch
              %1172 = sbr.rel (0) target = $region305
            $region304: #{custom-call.34} parent=289 // pred_region
              loop: start=0, step=1, limit=1
              $region306: #{custom-call.34} parent=304 // loop_pre_header
                _
              $region307: #{custom-call.34} parent=304 // loop_header
                %s1175 = sphi 0, %s1179
                %p1176 = scmp.ge.s32.totalorder %s1175, 1
                %s1180 = sphi %s1007, %s1007
                %s1181 = sphi %s1153, %s1153
              $region308: #{custom-call.34} parent=304 // loop_header_branch
                %1178 = sbr.rel (%p1176) target = $region312
              $region309: #{custom-call.34} parent=304 // loop_body
                %v1182 = vld [vmem:[%s1180] sm:$0xf]
                %1183 = vst [vmem:[%s1181] sm:$0xf] %v1182
              $region310: #{custom-call.34} parent=304 // loop_footer
                %s1179 = sadd.s32 1, %s1175
              $region311: #{custom-call.34} parent=304 // loop_footer_branch
                %1174 = sbr.rel target = $region307
              $region312: #{custom-call.34} parent=304 // loop_exit
                _
            $region305: #{custom-call.34} parent=289 // pred_fallthru
              _
          $region290: #{custom-call.34} parent=285 // pred_fallthru
            _
          // Predicated region
          $region291: #{custom-call.34} parent=285 // pred_check
            _
          $region292: #{custom-call.34} parent=285 // pred_check_branch
            %1159 = sbr.rel (0) target = $region294
          $region293: #{custom-call.34} parent=285 // pred_region
            loop: start=0, step=1, limit=1
            $region295: #{custom-call.34} parent=293 // loop_pre_header
              _
            $region296: #{custom-call.34} parent=293 // loop_header
              %s1162 = sphi 0, %s1166
              %p1163 = scmp.ge.s32.totalorder %s1162, 1
              %s1167 = sphi %s1007, %s1007
              %s1168 = sphi %s1153, %s1153
            $region297: #{custom-call.34} parent=293 // loop_header_branch
              %1165 = sbr.rel (%p1163) target = $region301
            $region298: #{custom-call.34} parent=293 // loop_body
              %v1169 = vld [vmem:[%s1167] sm:$0xf]
              %1170 = vst [vmem:[%s1168] sm:$0xf] %v1169
            $region299: #{custom-call.34} parent=293 // loop_footer
              %s1166 = sadd.s32 1, %s1162
            $region300: #{custom-call.34} parent=293 // loop_footer_branch
              %1161 = sbr.rel target = $region296
            $region301: #{custom-call.34} parent=293 // loop_exit
              _
          $region294: #{custom-call.34} parent=285 // pred_fallthru
            _
        $region286: #{custom-call.34} parent=139 // pred_fallthru
          _
        %1184 = vnop
        %s1185 = smul.addr %s17, 4
        %s1186 = scalar_lea.vmem %s9, %s1185
        // Predicated region
        $region313: #{custom-call.34} parent=139 // pred_check
          _
        $region314: #{custom-call.34} parent=139 // pred_check_branch
          %1188 = sbr.rel (0) target = $region316
        $region315: #{custom-call.34} parent=139 // pred_region
          // Predicated region
          $region317: #{custom-call.34} parent=315 // pred_check
            _
          $region318: #{custom-call.34} parent=315 // pred_check_branch
            %1190 = sbr.rel target = $region320
          $region319: #{custom-call.34} parent=315 // pred_region
            // Predicated region
            $region332: #{custom-call.34} parent=319 // pred_check
              _
            $region333: #{custom-call.34} parent=319 // pred_check_branch
              %1205 = sbr.rel (0) target = $region335
            $region334: #{custom-call.34} parent=319 // pred_region
              loop: start=0, step=1, limit=1
              $region336: #{custom-call.34} parent=334 // loop_pre_header
                _
              $region337: #{custom-call.34} parent=334 // loop_header
                %s1208 = sphi 0, %s1212
                %p1209 = scmp.ge.s32.totalorder %s1208, 1
                %s1213 = sphi %s1011, %s1011
                %s1214 = sphi %s1186, %s1186
              $region338: #{custom-call.34} parent=334 // loop_header_branch
                %1211 = sbr.rel (%p1209) target = $region342
              $region339: #{custom-call.34} parent=334 // loop_body
                %v1215 = vld [vmem:[%s1213] sm:$0xf]
                %1216 = vst [vmem:[%s1214] sm:$0xf] %v1215
              $region340: #{custom-call.34} parent=334 // loop_footer
                %s1212 = sadd.s32 1, %s1208
              $region341: #{custom-call.34} parent=334 // loop_footer_branch
                %1207 = sbr.rel target = $region337
              $region342: #{custom-call.34} parent=334 // loop_exit
                _
            $region335: #{custom-call.34} parent=319 // pred_fallthru
              _
          $region320: #{custom-call.34} parent=315 // pred_fallthru
            _
          // Predicated region
          $region321: #{custom-call.34} parent=315 // pred_check
            _
          $region322: #{custom-call.34} parent=315 // pred_check_branch
            %1192 = sbr.rel (0) target = $region324
          $region323: #{custom-call.34} parent=315 // pred_region
            loop: start=0, step=1, limit=1
            $region325: #{custom-call.34} parent=323 // loop_pre_header
              _
            $region326: #{custom-call.34} parent=323 // loop_header
              %s1195 = sphi 0, %s1199
              %p1196 = scmp.ge.s32.totalorder %s1195, 1
              %s1200 = sphi %s1011, %s1011
              %s1201 = sphi %s1186, %s1186
            $region327: #{custom-call.34} parent=323 // loop_header_branch
              %1198 = sbr.rel (%p1196) target = $region331
            $region328: #{custom-call.34} parent=323 // loop_body
              %v1202 = vld [vmem:[%s1200] sm:$0xf]
              %1203 = vst [vmem:[%s1201] sm:$0xf] %v1202
            $region329: #{custom-call.34} parent=323 // loop_footer
              %s1199 = sadd.s32 1, %s1195
            $region330: #{custom-call.34} parent=323 // loop_footer_branch
              %1194 = sbr.rel target = $region326
            $region331: #{custom-call.34} parent=323 // loop_exit
              _
          $region324: #{custom-call.34} parent=315 // pred_fallthru
            _
        $region316: #{custom-call.34} parent=139 // pred_fallthru
          _
        %1217 = vnop
      $region140: #{custom-call.34} parent=5 // pred_fallthru
        _
      %p1218 = scmp.le.s32.totalorder 2, %s12
      // Predicated region
      $region343: #{custom-call.34} parent=5 // pred_check
        %p1219 = pneg %p1218
      $region344: #{custom-call.34} parent=5 // pred_check_branch
        %1221 = sbr.rel (%p1219) target = $region346
      $region345: #{custom-call.34} parent=5 // pred_region
        %s1222 = ssub.s32 %s12, 2
        // Predicated region
        $region347: #{custom-call.34} parent=345 // pred_check
          %p1223 = pneg %p43
        $region348: #{custom-call.34} parent=345 // pred_check_branch
          %1225 = sbr.rel (%p1223) target = $region350
        $region349: #{custom-call.34} parent=345 // pred_region
          %s1226 = sand.u32 %s28, 1
          %s1227 = sand.u32 %s28, 1
          %s1228 = smul.addr %s1227, 4
          %s1229 = scalar_lea.vmem [#allocation9], %s1228
        $region350: #{custom-call.34} parent=345 // pred_fallthru
          _
        // Predicated region
        $region351: #{custom-call.34} parent=345 // pred_check
          %p1230 = pneg %p71
        $region352: #{custom-call.34} parent=345 // pred_check_branch
          %1232 = sbr.rel (%p1230) target = $region354
        $region353: #{custom-call.34} parent=345 // pred_region
          %s1233 = sand.u32 %s56, 1
          %s1234 = sand.u32 %s56, 1
          %s1235 = smul.addr %s1234, 4
          %s1236 = scalar_lea.vmem [#allocation11], %s1235
        $region354: #{custom-call.34} parent=345 // pred_fallthru
          _
        %s1237 = sand.u32 %s18, 1
        %s1238 = sand.u32 %s18, 1
        %s1239 = smul.addr %s1238, 4
        %s1240 = scalar_lea.vmem [#allocation13], %s1239
        %s1241 = sand.u32 %s18, 1
        %s1242 = sand.u32 %s18, 1
        %s1243 = smul.addr %s1242, 4
        %s1244 = scalar_lea.vmem [#allocation15], %s1243
        %s1245 = sand.u32 %s18, 1
        %s1246 = sand.u32 %s18, 1
        %s1247 = smul.addr %s1246, 4
        %s1248 = scalar_lea.vmem [#allocation17], %s1247
        %s1249 = sand.u32 %s18, 1
        %s1250 = sand.u32 %s18, 1
        %s1251 = smul.addr %s1250, 4
        %s1252 = scalar_lea.vmem [#allocation19], %s1251
      $region346: #{custom-call.34} parent=5 // pred_fallthru
        _
    $region6: #{custom-call.34} parent=1 // loop_footer
      %s16 = sadd.s32 1, %s12
    $region7: #{custom-call.34} parent=1 // loop_footer_branch
      %11 = sbr.rel target = $region3
    $region8: #{custom-call.34} parent=1 // loop_exit
      _

// kernel: reverse
$region0: #{reverse}
  %s0 = inlined_call_operand.vmem [shape: f32[4,8], index: 0, kind: input, shape index: {}]
  %s1 = inlined_call_operand.vmem [shape: f32[4,8], index: 1, kind: output, shape index: {}]
  %v2 = vlaneseq
  %v3 = vsub.s32 7, %v2
  %4 = vset.pattern.permute.xlu0 %v3
  $region1: #{reverse} parent=0
    #allocation0 [shape = 'u8[4096]{0}', space=vmem, size = 0x1000, scoped, tag = 'operand span for operand 0']
    #allocation1 [shape = 'u8[2048]{0}', space=vmem, size = 0x800, scoped, tag = 'packed  for operand 0']
    #allocation2 [shape = 'u8[4096]{0}', space=vmem, size = 0x1000, scoped, tag = 'operand span for operand 1']
    #allocation3 [shape = 'u8[2048]{0}', space=vmem, size = 0x800, scoped, tag = 'packed  for operand 1']
    // Predicated region
    $region2: #{reverse} parent=1 // pred_check
      _
    $region3: #{reverse} parent=1 // pred_check_branch
      %6 = sbr.rel (0) target = $region5
    $region4: #{reverse} parent=1 // pred_region
      // Predicated region
      $region6: #{reverse} parent=4 // pred_check
        _
      $region7: #{reverse} parent=4 // pred_check_branch
        %8 = sbr.rel target = $region9
      $region8: #{reverse} parent=4 // pred_region
        // Predicated region
        $region21: #{reverse} parent=8 // pred_check
          _
        $region22: #{reverse} parent=8 // pred_check_branch
          %23 = sbr.rel (0) target = $region24
        $region23: #{reverse} parent=8 // pred_region
          loop: start=0, step=1, limit=1
          $region25: #{reverse} parent=23 // loop_pre_header
            _
          $region26: #{reverse} parent=23 // loop_header
            %s26 = sphi 0, %s30
            %p27 = scmp.ge.s32.totalorder %s26, 1
            %s31 = sphi %s0, %s0
            %s32 = sphi [#allocation1], [#allocation1]
          $region27: #{reverse} parent=23 // loop_header_branch
            %29 = sbr.rel (%p27) target = $region31
          $region28: #{reverse} parent=23 // loop_body
            %v33 = vld [vmem:[%s31] sm:$0xf]
            %34 = vst [vmem:[%s32] sm:$0xf] %v33
          $region29: #{reverse} parent=23 // loop_footer
            %s30 = sadd.s32 1, %s26
          $region30: #{reverse} parent=23 // loop_footer_branch
            %25 = sbr.rel target = $region26
          $region31: #{reverse} parent=23 // loop_exit
            _
        $region24: #{reverse} parent=8 // pred_fallthru
          _
      $region9: #{reverse} parent=4 // pred_fallthru
        _
      // Predicated region
      $region10: #{reverse} parent=4 // pred_check
        _
      $region11: #{reverse} parent=4 // pred_check_branch
        %10 = sbr.rel (0) target = $region13
      $region12: #{reverse} parent=4 // pred_region
        loop: start=0, step=1, limit=1
        $region14: #{reverse} parent=12 // loop_pre_header
          _
        $region15: #{reverse} parent=12 // loop_header
          %s13 = sphi 0, %s17
          %p14 = scmp.ge.s32.totalorder %s13, 1
          %s18 = sphi %s0, %s0
          %s19 = sphi [#allocation1], [#allocation1]
        $region16: #{reverse} parent=12 // loop_header_branch
          %16 = sbr.rel (%p14) target = $region20
        $region17: #{reverse} parent=12 // loop_body
          %v20 = vld [vmem:[%s18] sm:$0xf]
          %21 = vst [vmem:[%s19] sm:$0xf] %v20
        $region18: #{reverse} parent=12 // loop_footer
          %s17 = sadd.s32 1, %s13
        $region19: #{reverse} parent=12 // loop_footer_branch
          %12 = sbr.rel target = $region15
        $region20: #{reverse} parent=12 // loop_exit
          _
      $region13: #{reverse} parent=4 // pred_fallthru
        _
    $region5: #{reverse} parent=1 // pred_fallthru
      _
    %35 = vnop
    %s37 = sshllo.u32 0, 4
    %v38 = vld [vmem:[#allocation1] sm:%s37]
    %39 = vst [vmem:[#allocation0] sm:%s37] %v38
    %v40 = vld [vmem:[#allocation0] sm:$0xff]
    %41 = vperm.xlu0 %4, %v40
    %v42 = vpop.permute.xlu0 %41
    %43 = vst [vmem:[#allocation2] sm:$0xff] %v42
    %s45 = sshllo.u32 0, 4
    %v47 = vld [vmem:[#allocation2] sm:%s45]
    %s48 = sshllo.u32 0, 4
    %49 = vst [vmem:[#allocation3] sm:%s48] %v47
    // Predicated region
    $region32: #{reverse} parent=1 // pred_check
      _
    $region33: #{reverse} parent=1 // pred_check_branch
      %51 = sbr.rel (0) target = $region35
    $region34: #{reverse} parent=1 // pred_region
      // Predicated region
      $region36: #{reverse} parent=34 // pred_check
        _
      $region37: #{reverse} parent=34 // pred_check_branch
        %53 = sbr.rel target = $region39
      $region38: #{reverse} parent=34 // pred_region
        // Predicated region
        $region51: #{reverse} parent=38 // pred_check
          _
        $region52: #{reverse} parent=38 // pred_check_branch
          %68 = sbr.rel (0) target = $region54
        $region53: #{reverse} parent=38 // pred_region
          loop: start=0, step=1, limit=1
          $region55: #{reverse} parent=53 // loop_pre_header
            _
          $region56: #{reverse} parent=53 // loop_header
            %s71 = sphi 0, %s75
            %p72 = scmp.ge.s32.totalorder %s71, 1
            %s76 = sphi [#allocation3], [#allocation3]
            %s77 = sphi %s1, %s1
          $region57: #{reverse} parent=53 // loop_header_branch
            %74 = sbr.rel (%p72) target = $region61
          $region58: #{reverse} parent=53 // loop_body
            %v78 = vld [vmem:[%s76] sm:$0xf]
            %79 = vst [vmem:[%s77] sm:$0xf] %v78
          $region59: #{reverse} parent=53 // loop_footer
            %s75 = sadd.s32 1, %s71
          $region60: #{reverse} parent=53 // loop_footer_branch
            %70 = sbr.rel target = $region56
          $region61: #{reverse} parent=53 // loop_exit
            _
        $region54: #{reverse} parent=38 // pred_fallthru
          _
      $region39: #{reverse} parent=34 // pred_fallthru
        _
      // Predicated region
      $region40: #{reverse} parent=34 // pred_check
        _
      $region41: #{reverse} parent=34 // pred_check_branch
        %55 = sbr.rel (0) target = $region43
      $region42: #{reverse} parent=34 // pred_region
        loop: start=0, step=1, limit=1
        $region44: #{reverse} parent=42 // loop_pre_header
          _
        $region45: #{reverse} parent=42 // loop_header
          %s58 = sphi 0, %s62
          %p59 = scmp.ge.s32.totalorder %s58, 1
          %s63 = sphi [#allocation3], [#allocation3]
          %s64 = sphi %s1, %s1
        $region46: #{reverse} parent=42 // loop_header_branch
          %61 = sbr.rel (%p59) target = $region50
        $region47: #{reverse} parent=42 // loop_body
          %v65 = vld [vmem:[%s63] sm:$0xf]
          %66 = vst [vmem:[%s64] sm:$0xf] %v65
        $region48: #{reverse} parent=42 // loop_footer
          %s62 = sadd.s32 1, %s58
        $region49: #{reverse} parent=42 // loop_footer_branch
          %57 = sbr.rel target = $region45
        $region50: #{reverse} parent=42 // loop_exit
          _
      $region43: #{reverse} parent=34 // pred_fallthru
        _
    $region35: #{reverse} parent=1 // pred_fallthru
      _
    %80 = vnop

// kernel: custom-call.19
$region0: #{custom-call.19}
  %s0 = inlined_call_operand.vmem [shape: f32[4,8,8], index: 0, kind: input, shape index: {}]
  %s1 = inlined_call_operand.vmem [shape: f32[4,8,8], index: 1, kind: output, shape index: {0}]
  %s2 = inlined_call_operand.vmem [shape: f32[4,8], index: 2, kind: output, shape index: {1}]
  %3 = xla_tuple %s1, %s2
  $region1: #{custom-call.19} parent=0
    #allocation0 [shape = 'u8[8192]{0}', space=vmem, size = 0x2000, scoped, tag = 'operand span for operand 0']
    #allocation1 [shape = 'u8[8192]{0}', space=vmem, size = 0x2000, scoped, tag = 'operand span for operand 1']
    #allocation2 [shape = 'u8[4096]{0}', space=vmem, size = 0x1000, scoped, tag = 'operand span for operand 2']
    #allocation3 [shape = 'u8[4096]{0}', space=vmem, size = 0x1000, scoped, tag = 'packed  for operand 2']
    loop: start=0, step=1, limit=6
    $region2: #{custom-call.19} parent=1 // loop_pre_header
      _
    $region3: #{custom-call.19} parent=1 // loop_header
      %s5 = sphi 0, %s9
      %p6 = scmp.ge.s32.totalorder %s5, 6
      %s12 = sphi 0, %s31
      %s13 = sphi 0, %s27
      %s14 = sphi 0, %s23
      %s15 = sphi 0, %s12
      %s16 = sphi 0, %s13
      %s17 = sphi 0, %s14
      %s18 = sphi 0, %s15
      %s19 = sphi 0, %s16
      %s20 = sphi 0, %s17
      %s46 = sphi 0, %s48
      %s49 = sphi 0, %s46
      %s50 = sphi 0, %s49
      %s66 = sphi 0, %s50
    $region4: #{custom-call.19} parent=1 // loop_header_branch
      %8 = sbr.rel (%p6) target = $region8
    $region5: #{custom-call.19} parent=1 // loop_body
      %s10 = ssub.s32 %s5, 1
      %s11 = ssub.s32 %s5, 2
      %s21 = sadd.s32 1, %s14
      %p22 = scmp.ge.s32.totalorder %s21, 1
      %s23 = scalar_select %p22, 0, %s21
      %s24 = sadd.s32 1, %s13
      %s25 = scalar_select %p22, %s24, %s13
      %p26 = scmp.ge.s32.totalorder %s25, 1
      %s27 = scalar_select %p26, 0, %s25
      %s28 = sadd.s32 1, %s12
      %s29 = scalar_select %p26, %s28, %s12
      %p30 = scmp.ge.s32.totalorder %s29, 4
      %s31 = scalar_select %p30, 0, %s29
      %p32 = scmp.lt.s32.totalorder %s12, 0
      %s33 = ssub.s32 0, %s12
      %s34 = scalar_select %p32, %s33, %s12
      %s35 = sshrl.u32 %s34, 3
      %s36 = ssub.s32 0, %s35
      %s37 = scalar_select %p32, %s36, %s35
      %p38 = scmp.lt.s32.totalorder %s31, 0
      %s39 = ssub.s32 0, %s31
      %s40 = scalar_select %p38, %s39, %s31
      %s41 = sshrl.u32 %s40, 3
      %s42 = ssub.s32 0, %s41
      %s43 = scalar_select %p38, %s42, %s41
      %s44 = ssub.s32 %s37, %s43
      %p45 = scmp.eq.s32.totalorder %s44, 0
      %s47 = sadd.s32 %s46, 1
      %s48 = scalar_select %p45, %s46, %s47
      %p51 = pneg %p45
      %p52 = scmp.eq.s32.totalorder %s5, 3
      %p53 = por %p51, %p52
      %p54 = scmp.ne.s32.totalorder %s46, %s49
      %p55 = scmp.eq.s32.totalorder %s5, 0
      %p56 = por %p54, %p55
      %p57 = scmp.ne.s32.totalorder %s46, %s49
      %p58 = scmp.eq.s32.totalorder %s10, 3
      %p59 = por %p57, %p58
      %p60 = scmp.ne.s32.totalorder %s49, %s50
      %p61 = scmp.eq.s32.totalorder %s10, 0
      %p62 = por %p60, %p61
      %p63 = scmp.ne.s32.totalorder %s49, %s50
      %p64 = scmp.eq.s32.totalorder %s11, 3
      %p65 = por %p63, %p64
      %p67 = scmp.ne.s32.totalorder %s50, %s66
      %p68 = scmp.eq.s32.totalorder %s11, 0
      %p69 = por %p67, %p68
      %p70 = scmp.le.s32.totalorder 1, %s5
      %p71 = scmp.lt.s32.totalorder %s5, 5
      %p72 = pnand %p70, %p71
      %p73 = pneg %p72
      // Predicated region
      $region9: #{custom-call.19} parent=5 // pred_check
        _
      $region10: #{custom-call.19} parent=5 // pred_check_branch
        %75 = sbr.rel (%p72) target = $region12
      $region11: #{custom-call.19} parent=5 // pred_region
        %s76 = ssub.s32 %s5, 1
      $region12: #{custom-call.19} parent=5 // pred_fallthru
        _
      %p77 = scmp.lt.s32.totalorder %s5, 4
      // Predicated region
      $region13: #{custom-call.19} parent=5 // pred_check
        %p78 = pneg %p77
      $region14: #{custom-call.19} parent=5 // pred_check_branch
        %80 = sbr.rel (%p78) target = $region16
      $region15: #{custom-call.19} parent=5 // pred_region
        %s81 = sand.u32 %s5, 1
        %s82 = sand.u32 %s5, 1
        %s83 = smul.addr %s82, 8
        %s84 = scalar_lea.vmem [#allocation0], %s83
        %s85 = sadd.s32 %s14, %s13
        %s86 = sadd.s32 %s85, %s12
        %s87 = smul.addr %s86, 8
        %s88 = scalar_lea.vmem %s0, %s87
        // Predicated region
        $region17: #{custom-call.19} parent=15 // pred_check
          _
        $region18: #{custom-call.19} parent=15 // pred_check_branch
          %90 = sbr.rel (0) target = $region20
        $region19: #{custom-call.19} parent=15 // pred_region
          // Predicated region
          $region21: #{custom-call.19} parent=19 // pred_check
            _
          $region22: #{custom-call.19} parent=19 // pred_check_branch
            %92 = sbr.rel (0) target = $region24
          $region23: #{custom-call.19} parent=19 // pred_region
            // Predicated region
            $region36: #{custom-call.19} parent=23 // pred_check
              _
            $region37: #{custom-call.19} parent=23 // pred_check_branch
              %107 = sbr.rel (0) target = $region39
            $region38: #{custom-call.19} parent=23 // pred_region
              loop: start=0, step=1, limit=1
              $region40: #{custom-call.19} parent=38 // loop_pre_header
                _
              $region41: #{custom-call.19} parent=38 // loop_header
                %s109 = sphi 0, %s113
                %p110 = scmp.ge.s32.totalorder %s109, 1
                %s114 = sphi %s88, %s88
                %s115 = sphi %s84, %s84
              $region42: #{custom-call.19} parent=38 // loop_header_branch
                %112 = sbr.rel (%p110) target = $region46
              $region43: #{custom-call.19} parent=38 // loop_body
                %v116 = vld [vmem:[%s114] sm:$0xff]
                %117 = vst [vmem:[%s115] sm:$0xff] %v116
              $region44: #{custom-call.19} parent=38 // loop_footer
                %s113 = sadd.s32 1, %s109
              $region45: #{custom-call.19} parent=38 // loop_footer_branch
                %108 = sbr.rel target = $region41
              $region46: #{custom-call.19} parent=38 // loop_exit
                _
            $region39: #{custom-call.19} parent=23 // pred_fallthru
              _
            // Predicated region
            $region47: #{custom-call.19} parent=23 // pred_check
              _
            $region48: #{custom-call.19} parent=23 // pred_check_branch
              %119 = sbr.rel target = $region50
            $region49: #{custom-call.19} parent=23 // pred_region
              _
            $region50: #{custom-call.19} parent=23 // pred_fallthru
              _
          $region24: #{custom-call.19} parent=19 // pred_fallthru
            _
          // Predicated region
          $region25: #{custom-call.19} parent=19 // pred_check
            _
          $region26: #{custom-call.19} parent=19 // pred_check_branch
            %94 = sbr.rel target = $region28
          $region27: #{custom-call.19} parent=19 // pred_region
            loop: start=0, step=1, limit=1
            $region29: #{custom-call.19} parent=27 // loop_pre_header
              _
            $region30: #{custom-call.19} parent=27 // loop_header
              %s97 = sphi 0, %s101
              %p98 = scmp.ge.s32.totalorder %s97, 1
              %s102 = sphi %s88, %s88
              %s103 = sphi %s84, %s84
            $region31: #{custom-call.19} parent=27 // loop_header_branch
              %100 = sbr.rel (%p98) target = $region35
            $region32: #{custom-call.19} parent=27 // loop_body
              %v104 = vld [vmem:[%s102] sm:$0xff]
              %105 = vst [vmem:[%s103] sm:$0xff] %v104
            $region33: #{custom-call.19} parent=27 // loop_footer
              %s101 = sadd.s32 1, %s97
            $region34: #{custom-call.19} parent=27 // loop_footer_branch
              %96 = sbr.rel target = $region30
            $region35: #{custom-call.19} parent=27 // loop_exit
              _
          $region28: #{custom-call.19} parent=19 // pred_fallthru
            _
        $region20: #{custom-call.19} parent=15 // pred_fallthru
          _
        %120 = vnop
      $region16: #{custom-call.19} parent=5 // pred_fallthru
        _
      %p121 = scmp.le.s32.totalorder 1, %s5
      %p122 = scmp.lt.s32.totalorder %s5, 5
      %p123 = pnand %p121, %p122
      %p124 = pneg %p123
      // Predicated region
      $region51: #{custom-call.19} parent=5 // pred_check
        _
      $region52: #{custom-call.19} parent=5 // pred_check_branch
        %126 = sbr.rel (%p123) target = $region54
      $region53: #{custom-call.19} parent=5 // pred_region
        #allocation4 [shape = 'f32[8,128]{1,0}', space=vmem, size = 0x1000, scoped, tag = 'scratch for Householder reflectors']
        %s127 = ssub.s32 %s5, 1
        %s128 = sand.u32 %s10, 1
        %s129 = sand.u32 %s10, 1
        %s130 = smul.addr %s129, 8
        %s131 = scalar_lea.vmem [#allocation0], %s130
        %s132 = sand.u32 %s10, 1
        %s133 = sand.u32 %s10, 1
        %s134 = smul.addr %s133, 8
        %s135 = scalar_lea.vmem [#allocation0], %s134
        %s136 = sand.u32 %s10, 1
        %s137 = sand.u32 %s10, 1
        %s138 = smul.addr %s137, 8
        %s139 = scalar_lea.vmem [#allocation1], %s138
        %p140 = pneg %p62
        %p141 = pneg %p59
        %s142 = sand.u32 %s49, 1
        %s143 = sand.u32 %s49, 1
        %s144 = smul.addr %s143, 4
        %s145 = scalar_lea.vmem [#allocation3], %s144
        %p146 = scmp.lt.s32.totalorder %s15, 0
        %s147 = ssub.s32 0, %s15
        %s148 = scalar_select %p146, %s147, %s15
        %s149 = sshrl.u32 %s148, 3
        %s150 = ssub.s32 0, %s149
        %s151 = scalar_select %p146, %s150, %s149
        %s152 = sand.u32 %s15, 7
        %s153 = scalar_lea.vmem [#allocation2], %s152
        %v154 = vld [vmem:[%s131] sm:$0xff]
        %155 = vst [vmem:[%s139] sm:$0xff] %v154
        %156 = vst [vmem:[%s153] sm:$0x1] 0.0
        loop: start=0, step=1, limit=8
        $region55: #{custom-call.19} parent=53 // loop_pre_header
          _
        $region56: #{custom-call.19} parent=53 // loop_header
          %s158 = sphi 0, %s162
          %p159 = scmp.ge.s32.totalorder %s158, 8
        $region57: #{custom-call.19} parent=53 // loop_header_branch
          %161 = sbr.rel (%p159) target = $region61
        $region58: #{custom-call.19} parent=53 // loop_body
          %v163 = vld [vmem:[%s139] sm:$0xff]
          %v164 = vlaneseq
          %v165 = vshrl.u32 %v164, 7
          %v167 = vstv %s158
          %vm168 = vcmp.gt.s32.totalorder %v165, %v167
          %vm169 = vcmp.lt.s32.totalorder %v165, 8
          %vm170 = vmand %vm168, %vm169
          %v171 = vsel %vm170, %v163, 0.0
          %v172 = vmul.f32 %v171, %v171
          %v173 = vrot.slane %v172, 4
          %v174 = vadd.f32 %v172, %v173
          %v175 = vrot.slane %v174, 2
          %v176 = vadd.f32 %v174, %v175
          %v177 = vrot.slane %v176, 1
          %v178 = vadd.f32 %v176, %v177
          %v179 = vrsqrt.pop %v178
          %v180 = vmul.f32 %v178, %v179
          %vm181 = vcmp.eq.f32.partialorder %v178, inf
          %v182 = vsel %vm181, %v178, %v180
          %vm183 = vcmp.eq.f32.partialorder %v178, 0.0
          %v184 = vand.u32 %v178, 2147483648
          %v185 = vsel %vm183, %v184, %v182
          %vm186 = vcmp.eq.f32.partialorder %v178, 0.0
          %s187 = sshrl.u32 %s158, 3
          %s188 = sand.u32 %s158, 7
          %s189 = smul.addr %s187, 8
          %s190 = sadd.s32 %s188, %s189
          %s191 = scalar_lea.vmem %s139, %s190 [#allocation1]
          %v192 = vld [vmem:[%s191] ss:$0 sm:$0xff]
          %v193 = vand.u32 2147483647, %v192
          %v194 = vmax.f32 %v193, 0.0
          %v195 = vand.u32 2147483647, %v185
          %v196 = vmax.f32 %v194, %v195
          %v197 = vrcp.pop %v196
          %v198 = vmul.f32 %v193, %v197
          %v199 = vmul.f32 %v198, %v198
          %v200 = vrcp.pop %v196
          %v201 = vmul.f32 0.0, %v200
          %v202 = vmul.f32 %v201, %v201
          %v203 = vadd.f32 %v199, %v202
          %v204 = vrcp.pop %v196
          %v205 = vmul.f32 %v195, %v204
          %v206 = vmul.f32 %v205, %v205
          %v207 = vadd.f32 %v203, %v206
          %vm208 = vcmp.eq.f32.partialorder %v196, 0.0
          %v209 = vrsqrt.pop %v207
          %v210 = vmul.f32 %v207, %v209
          %vm211 = vcmp.eq.f32.partialorder %v207, inf
          %v212 = vsel %vm211, %v207, %v210
          %vm213 = vcmp.eq.f32.partialorder %v207, 0.0
          %v214 = vand.u32 %v207, 2147483648
          %v215 = vsel %vm213, %v214, %v212
          %v216 = vmul.f32 %v196, %v215
          %v217 = vsel %vm208, 0.0, %v216
          %vm218 = vcmp.lt.f32.partialorder %v192, 0.0
          %v219 = vxor.u32 %v217, 2147483648
          %v220 = vsel %vm218, %v217, %v219
          %v221 = vsub.f32 %v220, %v192
          %v222 = vrcp.pop %v220
          %v223 = vmul.f32 %v221, %v222
          %v224 = vsel %vm186, %v192, %v220
          %v225 = vsel %vm186, 0.0, %v223
          %v226 = vsub.f32 %v192, %v224
          %s227 = smov %s139
          %v228 = vlaneseq
          %v229 = vshrl.u32 %v228, 7
          %v230 = vmov %v229
          %v231 = vld [vmem:[%s227] sm:$0xff]
          %v233 = vstv %s158
          %vm234 = vcmp.gt.s32.totalorder %v230, %v233
          %vm235 = vcmp.lt.s32.totalorder %v230, 8
          %vm236 = vmand %vm234, %vm235
          %v237 = vsel %vm236, %v231, 0.0
          %v238 = vrcp.pop %v226
          %v239 = vmul.f32 %v237, %v238
          %v240 = vsel %vm186, 0.0, %v239
          %v241 = vstv %s158
          %v242 = vlaneseq
          %v243 = vand.u32 %v242, 127
          %vm244 = vcmp.eq.s32.totalorder %v243, %v241
          %v245 = vsel %vm244, %v240, 0.0
          %246 = vadd.xlane.f32.xlu0 %v245
          %v247 = vpop.xlane.xlu0 %246
          %248 = vst [vmem:[#allocation4] sm:$0xff] %v247
          %s249 = scalar_lea.vmem [#allocation4], %s158
          %250 = vst [vmem:[%s249] sm:$0x1] 1.0
          %v251 = vstv %s158
          %v252 = vlaneseq
          %v253 = vand.u32 %v252, 127
          %vm254 = vcmp.eq.s32.totalorder %v253, %v251
          %v255 = vsel %vm254, %v225, 0.0
          %256 = vadd.xlane.f32.xlu0 %v255
          %v257 = vpop.xlane.xlu0 %256
          %v258 = vstv %s158
          %v259 = vlaneseq
          %v260 = vand.u32 %v259, 127
          %vm261 = vcmp.eq.s32.totalorder %v260, %v258
          %v262 = vld [vmem:[%s153] ss:$0 sm:$0xff]
          %v263 = vsel %vm261, %v257, %v262
          %264 = vst [vmem:[%s153] sm:$0x1] %v263
          %s265 = smov %s139
          %s266 = smov [#allocation4]
          %v267 = vlaneseq
          %v268 = vshrl.u32 %v267, 7
          %v269 = vmov %v268
          %v271 = vld [vmem:[%s266] sm:$0xff]
          %v272 = vld [vmem:[%s265] sm:$0xff]
          %v273 = vmul.f32 %v271, %v272
          %vm274 = vcmp.lt.s32.totalorder %v269, 8
          %v275 = vsel %vm274, %v273, 0.0
          %v276 = vrot.slane %v275, 4
          %v277 = vadd.f32 %v275, %v276
          %v278 = vrot.slane %v277, 2
          %v279 = vadd.f32 %v277, %v278
          %v280 = vrot.slane %v279, 1
          %v281 = vadd.f32 %v279, %v280
          %s282 = smov %s265
          %s283 = smov %s266
          %v284 = vlaneseq
          %v285 = vshrl.u32 %v284, 7
          %v286 = vmov %v285
          %v287 = vmul.f32 %v281, %v257
          %v289 = vlaneseq
          %v290 = vand.u32 %v289, 127
          %v291 = vld [vmem:[%s283] sm:$0xff]
          %v292 = vmul.f32 %v291, %v287
          %v293 = vld [vmem:[%s282] sm:$0xff]
          %v294 = vstv %s158
          %vm295 = vcmp.gt.s32.totalorder %v290, %v294
          %v296 = vsub.f32 %v293, %v292
          %v297 = vsel %vm295, %v296, %v293
          %v298 = vstv %s158
          %v299 = vlaneseq
          %v300 = vand.u32 %v299, 127
          %vm301 = vcmp.eq.s32.totalorder %v300, %v298
          %v302 = vstv %s158
          %vm303 = vcmp.ge.s32.totalorder %v286, %v302
          %vm304 = vmand %vm301, %vm303
          %v305 = vsel %vm304, %v291, %v297
          %306 = vst [vmem:[%s282] sm:$0xff] %v305
          %s307 = scalar_lea.vmem %s282, %s158
          %v308 = vld [vmem:[%s307] ss:$0 sm:$0xff]
          %v309 = vstv %s158
          %v310 = vlaneseq
          %v311 = vand.u32 %v310, 127
          %vm312 = vcmp.eq.s32.totalorder %v311, %v309
          %v313 = vsel %vm312, %v224, %v308
          %314 = vst [vmem:[%s307] sm:$0x1] %v313
        $region59: #{custom-call.19} parent=53 // loop_footer
          %s162 = sadd.s32 1, %s158
        $region60: #{custom-call.19} parent=53 // loop_footer_branch
          %157 = sbr.rel target = $region56
        $region61: #{custom-call.19} parent=53 // loop_exit
          _
        %s316 = sshllo.u32 0, 4
        %v318 = vld [vmem:[#allocation2] sm:%s316]
        %s319 = sshllo.u32 0, 4
        %320 = vst [vmem:[%s145] sm:%s319] %v318
        %s321 = sand.u32 %s10, 1
        %s322 = sand.u32 %s10, 1
        %s323 = smul.addr %s322, 8
        %s324 = scalar_lea.vmem [#allocation1], %s323
        %s325 = sand.u32 %s49, 1
        %s326 = sand.u32 %s49, 1
        %s327 = smul.addr %s326, 4
        %s328 = scalar_lea.vmem [#allocation3], %s327
        %s329 = sadd.s32 %s17, %s16
        %s330 = sadd.s32 %s329, %s15
        %s331 = smul.addr %s330, 8
        %s332 = scalar_lea.vmem %s1, %s331
        // Predicated region
        $region62: #{custom-call.19} parent=53 // pred_check
          _
        $region63: #{custom-call.19} parent=53 // pred_check_branch
          %334 = sbr.rel (0) target = $region65
        $region64: #{custom-call.19} parent=53 // pred_region
          // Predicated region
          $region66: #{custom-call.19} parent=64 // pred_check
            _
          $region67: #{custom-call.19} parent=64 // pred_check_branch
            %336 = sbr.rel (0) target = $region69
          $region68: #{custom-call.19} parent=64 // pred_region
            // Predicated region
            $region81: #{custom-call.19} parent=68 // pred_check
              _
            $region82: #{custom-call.19} parent=68 // pred_check_branch
              %351 = sbr.rel (0) target = $region84
            $region83: #{custom-call.19} parent=68 // pred_region
              loop: start=0, step=1, limit=1
              $region85: #{custom-call.19} parent=83 // loop_pre_header
                _
              $region86: #{custom-call.19} parent=83 // loop_header
                %s353 = sphi 0, %s357
                %p354 = scmp.ge.s32.totalorder %s353, 1
                %s358 = sphi %s324, %s324
                %s359 = sphi %s332, %s332
              $region87: #{custom-call.19} parent=83 // loop_header_branch
                %356 = sbr.rel (%p354) target = $region91
              $region88: #{custom-call.19} parent=83 // loop_body
                %v360 = vld [vmem:[%s358] sm:$0xff]
                %361 = vst [vmem:[%s359] sm:$0xff] %v360
              $region89: #{custom-call.19} parent=83 // loop_footer
                %s357 = sadd.s32 1, %s353
              $region90: #{custom-call.19} parent=83 // loop_footer_branch
                %352 = sbr.rel target = $region86
              $region91: #{custom-call.19} parent=83 // loop_exit
                _
            $region84: #{custom-call.19} parent=68 // pred_fallthru
              _
            // Predicated region
            $region92: #{custom-call.19} parent=68 // pred_check
              _
            $region93: #{custom-call.19} parent=68 // pred_check_branch
              %363 = sbr.rel target = $region95
            $region94: #{custom-call.19} parent=68 // pred_region
              _
            $region95: #{custom-call.19} parent=68 // pred_fallthru
              _
          $region69: #{custom-call.19} parent=64 // pred_fallthru
            _
          // Predicated region
          $region70: #{custom-call.19} parent=64 // pred_check
            _
          $region71: #{custom-call.19} parent=64 // pred_check_branch
            %338 = sbr.rel target = $region73
          $region72: #{custom-call.19} parent=64 // pred_region
            loop: start=0, step=1, limit=1
            $region74: #{custom-call.19} parent=72 // loop_pre_header
              _
            $region75: #{custom-call.19} parent=72 // loop_header
              %s341 = sphi 0, %s345
              %p342 = scmp.ge.s32.totalorder %s341, 1
              %s346 = sphi %s324, %s324
              %s347 = sphi %s332, %s332
            $region76: #{custom-call.19} parent=72 // loop_header_branch
              %344 = sbr.rel (%p342) target = $region80
            $region77: #{custom-call.19} parent=72 // loop_body
              %v348 = vld [vmem:[%s346] sm:$0xff]
              %349 = vst [vmem:[%s347] sm:$0xff] %v348
            $region78: #{custom-call.19} parent=72 // loop_footer
              %s345 = sadd.s32 1, %s341
            $region79: #{custom-call.19} parent=72 // loop_footer_branch
              %340 = sbr.rel target = $region75
            $region80: #{custom-call.19} parent=72 // loop_exit
              _
          $region73: #{custom-call.19} parent=64 // pred_fallthru
            _
        $region65: #{custom-call.19} parent=53 // pred_fallthru
          _
        %364 = vnop
        // Predicated region
        $region96: #{custom-call.19} parent=53 // pred_check
          %p365 = pneg %p59
        $region97: #{custom-call.19} parent=53 // pred_check_branch
          %367 = sbr.rel (%p365) target = $region99
        $region98: #{custom-call.19} parent=53 // pred_region
          %p368 = scmp.lt.s32.totalorder %s15, 0
          %s369 = ssub.s32 0, %s15
          %s370 = scalar_select %p368, %s369, %s15
          %s371 = sshrl.u32 %s370, 3
          %s372 = ssub.s32 0, %s371
          %s373 = scalar_select %p368, %s372, %s371
          %s374 = smul.addr %s373, 4
          %s375 = scalar_lea.vmem %s2, %s374
          // Predicated region
          $region100: #{custom-call.19} parent=98 // pred_check
            _
          $region101: #{custom-call.19} parent=98 // pred_check_branch
            %377 = sbr.rel (0) target = $region103
          $region102: #{custom-call.19} parent=98 // pred_region
            // Predicated region
            $region104: #{custom-call.19} parent=102 // pred_check
              _
            $region105: #{custom-call.19} parent=102 // pred_check_branch
              %379 = sbr.rel target = $region107
            $region106: #{custom-call.19} parent=102 // pred_region
              // Predicated region
              $region119: #{custom-call.19} parent=106 // pred_check
                _
              $region120: #{custom-call.19} parent=106 // pred_check_branch
                %394 = sbr.rel (0) target = $region122
              $region121: #{custom-call.19} parent=106 // pred_region
                loop: start=0, step=1, limit=1
                $region123: #{custom-call.19} parent=121 // loop_pre_header
                  _
                $region124: #{custom-call.19} parent=121 // loop_header
                  %s397 = sphi 0, %s401
                  %p398 = scmp.ge.s32.totalorder %s397, 1
                  %s402 = sphi %s328, %s328
                  %s403 = sphi %s375, %s375
                $region125: #{custom-call.19} parent=121 // loop_header_branch
                  %400 = sbr.rel (%p398) target = $region129
                $region126: #{custom-call.19} parent=121 // loop_body
                  %v404 = vld [vmem:[%s402] sm:$0xf]
                  %405 = vst [vmem:[%s403] sm:$0xf] %v404
                $region127: #{custom-call.19} parent=121 // loop_footer
                  %s401 = sadd.s32 1, %s397
                $region128: #{custom-call.19} parent=121 // loop_footer_branch
                  %396 = sbr.rel target = $region124
                $region129: #{custom-call.19} parent=121 // loop_exit
                  _
              $region122: #{custom-call.19} parent=106 // pred_fallthru
                _
            $region107: #{custom-call.19} parent=102 // pred_fallthru
              _
            // Predicated region
            $region108: #{custom-call.19} parent=102 // pred_check
              _
            $region109: #{custom-call.19} parent=102 // pred_check_branch
              %381 = sbr.rel (0) target = $region111
            $region110: #{custom-call.19} parent=102 // pred_region
              loop: start=0, step=1, limit=1
              $region112: #{custom-call.19} parent=110 // loop_pre_header
                _
              $region113: #{custom-call.19} parent=110 // loop_header
                %s384 = sphi 0, %s388
                %p385 = scmp.ge.s32.totalorder %s384, 1
                %s389 = sphi %s328, %s328
                %s390 = sphi %s375, %s375
              $region114: #{custom-call.19} parent=110 // loop_header_branch
                %387 = sbr.rel (%p385) target = $region118
              $region115: #{custom-call.19} parent=110 // loop_body
                %v391 = vld [vmem:[%s389] sm:$0xf]
                %392 = vst [vmem:[%s390] sm:$0xf] %v391
              $region116: #{custom-call.19} parent=110 // loop_footer
                %s388 = sadd.s32 1, %s384
              $region117: #{custom-call.19} parent=110 // loop_footer_branch
                %383 = sbr.rel target = $region113
              $region118: #{custom-call.19} parent=110 // loop_exit
                _
            $region111: #{custom-call.19} parent=102 // pred_fallthru
              _
          $region103: #{custom-call.19} parent=98 // pred_fallthru
            _
          %406 = vnop
        $region99: #{custom-call.19} parent=53 // pred_fallthru
          _
      $region54: #{custom-call.19} parent=5 // pred_fallthru
        _
      %p407 = scmp.le.s32.totalorder 2, %s5
      // Predicated region
      $region130: #{custom-call.19} parent=5 // pred_check
        %p408 = pneg %p407
      $region131: #{custom-call.19} parent=5 // pred_check_branch
        %410 = sbr.rel (%p408) target = $region133
      $region132: #{custom-call.19} parent=5 // pred_region
        %s411 = ssub.s32 %s5, 2
        %s412 = sand.u32 %s11, 1
        %s413 = sand.u32 %s11, 1
        %s414 = smul.addr %s413, 8
        %s415 = scalar_lea.vmem [#allocation1], %s414
        // Predicated region
        $region134: #{custom-call.19} parent=132 // pred_check
          %p416 = pneg %p65
        $region135: #{custom-call.19} parent=132 // pred_check_branch
          %418 = sbr.rel (%p416) target = $region137
        $region136: #{custom-call.19} parent=132 // pred_region
          %s419 = sand.u32 %s50, 1
          %s420 = sand.u32 %s50, 1
          %s421 = smul.addr %s420, 4
          %s422 = scalar_lea.vmem [#allocation3], %s421
        $region137: #{custom-call.19} parent=132 // pred_fallthru
          _
      $region133: #{custom-call.19} parent=5 // pred_fallthru
        _
    $region6: #{custom-call.19} parent=1 // loop_footer
      %s9 = sadd.s32 1, %s5
    $region7: #{custom-call.19} parent=1 // loop_footer_branch
      %4 = sbr.rel target = $region3
    $region8: #{custom-call.19} parent=1 // loop_exit
      _

// kernel: recover_block_forward.3
$region0: #{recover_block_forward.3}
  #allocation0 [shape = 'u32[]', space=smem, size = 0x4, offset = 0x4, fixed_abs, tag = 'smem constant byte address 0x4 - core index']
  #allocation1 [shape = 'u32[144,128]{1,0:T(1,128)}', space=vmem, size = 0x12000, scoped, tag = 'internal scratch']
  #allocation2 [shape = 'f32[1]{0:T(128)S(6)}', space=smem, size = 0x200, scoped, tag = 'scoped memory for recover_block_forward.3']
  %s0 = inlined_call_operand.<no memory space> [shape: f32[1], index: 0, kind: input, shape index: {}]
  %s1 = inlined_call_operand.vmem [shape: f32[4,8,8], index: 1, kind: input, shape index: {}]
  %s2 = inlined_call_operand.vmem [shape: f32[4,1,8], index: 2, kind: input, shape index: {}]
  %s3 = inlined_call_operand.vmem [shape: f32[4,8,64], index: 3, kind: input, shape index: {}]
  %s4 = inlined_call_operand.vmem [shape: f32[256,64], index: 4, kind: input, shape index: {}]
  %s5 = inlined_call_operand.vmem [shape: f32[64,256], index: 5, kind: input, shape index: {}]
  %s6 = inlined_call_operand.vmem [shape: f32[4,8,256], index: 6, kind: input, shape index: {}, may-alias: {6,7}]
  %s7 = inlined_call_operand.vmem [shape: f32[4,8,256], index: 7, kind: output, shape index: {}, may-alias: {6,7}]
  %s8 = sld [smem:[#allocation0]]
  $region61: #{recover_block_forward.3} parent=0
    _
  %s10 = ssub.s32 1, %s8
  %s11 = scalar_select 0, %s10, %s8
  %12 = sst [smem:[#allocation2]] %s0
  loop: start=0, step=1, limit=4
  $region2: #{recover_block_forward.3} parent=0 // loop_pre_header
    _
  $region3: #{recover_block_forward.3} parent=0 // loop_header
    %s14 = sphi 0, %s18
    %p15 = scmp.ge.s32.totalorder %s14, 4
    %s22 = sphi 0, %s22
    %s24 = sphi 0, %s22
    %s25 = sphi 0, %s24
    %s39 = sphi 0, %s25
    %s45 = sphi 0, %s47
    %s48 = sphi 0, %s45
    %s49 = sphi 0, %s48
    %s65 = sphi 0, %s49
    %s71 = sphi 0, %s73
    %s74 = sphi 0, %s71
    %s75 = sphi 0, %s74
    %s91 = sphi 0, %s75
    %s97 = sphi 0, %s99
    %s100 = sphi 0, %s97
    %s101 = sphi 0, %s100
    %s117 = sphi 0, %s101
    %s121 = sphi 0, %s121
    %s123 = sphi 0, %s121
    %s124 = sphi 0, %s123
    %s138 = sphi 0, %s124
    %s142 = sphi 0, %s142
    %s144 = sphi 0, %s142
    %s145 = sphi 0, %s144
    %s159 = sphi 0, %s145
    %s165 = sphi 0, %s167
    %s168 = sphi 0, %s165
    %s169 = sphi 0, %s168
    %s185 = sphi 0, %s169
    %s191 = sphi 0, %s193
    %s194 = sphi 0, %s191
    %s195 = sphi 0, %s194
    %s211 = sphi 0, %s195
  $region4: #{recover_block_forward.3} parent=0 // loop_header_branch
    %17 = sbr.rel (%p15) target = $region8
  $region5: #{recover_block_forward.3} parent=0 // loop_body
    %s19 = ssub.s32 %s14, 1
    %s20 = ssub.s32 %s14, 2
    %s21 = sadd.s32 %s14, 1
    %s23 = sadd.s32 %s22, 1
    %p26 = scmp.eq.s32.totalorder %s14, 1
    %p27 = scmp.ne.s32.totalorder %s22, %s24
    %p28 = scmp.eq.s32.totalorder %s14, 0
    %p29 = por %p27, %p28
    %p30 = scmp.ne.s32.totalorder %s22, %s24
    %p31 = scmp.eq.s32.totalorder %s19, 1
    %p32 = por %p30, %p31
    %p33 = scmp.ne.s32.totalorder %s24, %s25
    %p34 = scmp.eq.s32.totalorder %s19, 0
    %p35 = por %p33, %p34
    %p36 = scmp.ne.s32.totalorder %s24, %s25
    %p37 = scmp.eq.s32.totalorder %s20, 1
    %p38 = por %p36, %p37
    %p40 = scmp.ne.s32.totalorder %s25, %s39
    %p41 = scmp.eq.s32.totalorder %s20, 0
    %p42 = por %p40, %p41
    %s43 = ssub.s32 %s14, %s21
    %p44 = scmp.eq.s32.totalorder %s43, 0
    %s46 = sadd.s32 %s45, 1
    %s47 = scalar_select %p44, %s45, %s46
    %p50 = pneg %p44
    %p51 = scmp.eq.s32.totalorder %s14, 1
    %p52 = por %p50, %p51
    %p53 = scmp.ne.s32.totalorder %s45, %s48
    %p54 = scmp.eq.s32.totalorder %s14, 0
    %p55 = por %p53, %p54
    %p56 = scmp.ne.s32.totalorder %s45, %s48
    %p57 = scmp.eq.s32.totalorder %s19, 1
    %p58 = por %p56, %p57
    %p59 = scmp.ne.s32.totalorder %s48, %s49
    %p60 = scmp.eq.s32.totalorder %s19, 0
    %p61 = por %p59, %p60
    %p62 = scmp.ne.s32.totalorder %s48, %s49
    %p63 = scmp.eq.s32.totalorder %s20, 1
    %p64 = por %p62, %p63
    %p66 = scmp.ne.s32.totalorder %s49, %s65
    %p67 = scmp.eq.s32.totalorder %s20, 0
    %p68 = por %p66, %p67
    %s69 = ssub.s32 %s14, %s21
    %p70 = scmp.eq.s32.totalorder %s69, 0
    %s72 = sadd.s32 %s71, 1
    %s73 = scalar_select %p70, %s71, %s72
    %p76 = pneg %p70
    %p77 = scmp.eq.s32.totalorder %s14, 1
    %p78 = por %p76, %p77
    %p79 = scmp.ne.s32.totalorder %s71, %s74
    %p80 = scmp.eq.s32.totalorder %s14, 0
    %p81 = por %p79, %p80
    %p82 = scmp.ne.s32.totalorder %s71, %s74
    %p83 = scmp.eq.s32.totalorder %s19, 1
    %p84 = por %p82, %p83
    %p85 = scmp.ne.s32.totalorder %s74, %s75
    %p86 = scmp.eq.s32.totalorder %s19, 0
    %p87 = por %p85, %p86
    %p88 = scmp.ne.s32.totalorder %s74, %s75
    %p89 = scmp.eq.s32.totalorder %s20, 1
    %p90 = por %p88, %p89
    %p92 = scmp.ne.s32.totalorder %s75, %s91
    %p93 = scmp.eq.s32.totalorder %s20, 0
    %p94 = por %p92, %p93
    %s95 = ssub.s32 %s14, %s21
    %p96 = scmp.eq.s32.totalorder %s95, 0
    %s98 = sadd.s32 %s97, 1
    %s99 = scalar_select %p96, %s97, %s98
    %p102 = pneg %p96
    %p103 = scmp.eq.s32.totalorder %s14, 1
    %p104 = por %p102, %p103
    %p105 = scmp.ne.s32.totalorder %s97, %s100
    %p106 = scmp.eq.s32.totalorder %s14, 0
    %p107 = por %p105, %p106
    %p108 = scmp.ne.s32.totalorder %s97, %s100
    %p109 = scmp.eq.s32.totalorder %s19, 1
    %p110 = por %p108, %p109
    %p111 = scmp.ne.s32.totalorder %s100, %s101
    %p112 = scmp.eq.s32.totalorder %s19, 0
    %p113 = por %p111, %p112
    %p114 = scmp.ne.s32.totalorder %s100, %s101
    %p115 = scmp.eq.s32.totalorder %s20, 1
    %p116 = por %p114, %p115
    %p118 = scmp.ne.s32.totalorder %s101, %s117
    %p119 = scmp.eq.s32.totalorder %s20, 0
    %p120 = por %p118, %p119
    %s122 = sadd.s32 %s121, 1
    %p125 = scmp.eq.s32.totalorder %s14, 1
    %p126 = scmp.ne.s32.totalorder %s121, %s123
    %p127 = scmp.eq.s32.totalorder %s14, 0
    %p128 = por %p126, %p127
    %p129 = scmp.ne.s32.totalorder %s121, %s123
    %p130 = scmp.eq.s32.totalorder %s19, 1
    %p131 = por %p129, %p130
    %p132 = scmp.ne.s32.totalorder %s123, %s124
    %p133 = scmp.eq.s32.totalorder %s19, 0
    %p134 = por %p132, %p133
    %p135 = scmp.ne.s32.totalorder %s123, %s124
    %p136 = scmp.eq.s32.totalorder %s20, 1
    %p137 = por %p135, %p136
    %p139 = scmp.ne.s32.totalorder %s124, %s138
    %p140 = scmp.eq.s32.totalorder %s20, 0
    %p141 = por %p139, %p140
    %s143 = sadd.s32 %s142, 1
    %p146 = scmp.eq.s32.totalorder %s14, 1
    %p147 = scmp.ne.s32.totalorder %s142, %s144
    %p148 = scmp.eq.s32.totalorder %s14, 0
    %p149 = por %p147, %p148
    %p150 = scmp.ne.s32.totalorder %s142, %s144
    %p151 = scmp.eq.s32.totalorder %s19, 1
    %p152 = por %p150, %p151
    %p153 = scmp.ne.s32.totalorder %s144, %s145
    %p154 = scmp.eq.s32.totalorder %s19, 0
    %p155 = por %p153, %p154
    %p156 = scmp.ne.s32.totalorder %s144, %s145
    %p157 = scmp.eq.s32.totalorder %s20, 1
    %p158 = por %p156, %p157
    %p160 = scmp.ne.s32.totalorder %s145, %s159
    %p161 = scmp.eq.s32.totalorder %s20, 0
    %p162 = por %p160, %p161
    %s163 = ssub.s32 %s14, %s21
    %p164 = scmp.eq.s32.totalorder %s163, 0
    %s166 = sadd.s32 %s165, 1
    %s167 = scalar_select %p164, %s165, %s166
    %p170 = pneg %p164
    %p171 = scmp.eq.s32.totalorder %s14, 1
    %p172 = por %p170, %p171
    %p173 = scmp.ne.s32.totalorder %s165, %s168
    %p174 = scmp.eq.s32.totalorder %s14, 0
    %p175 = por %p173, %p174
    %p176 = scmp.ne.s32.totalorder %s165, %s168
    %p177 = scmp.eq.s32.totalorder %s19, 1
    %p178 = por %p176, %p177
    %p179 = scmp.ne.s32.totalorder %s168, %s169
    %p180 = scmp.eq.s32.totalorder %s19, 0
    %p181 = por %p179, %p180
    %p182 = scmp.ne.s32.totalorder %s168, %s169
    %p183 = scmp.eq.s32.totalorder %s20, 1
    %p184 = por %p182, %p183
    %p186 = scmp.ne.s32.totalorder %s169, %s185
    %p187 = scmp.eq.s32.totalorder %s20, 0
    %p188 = por %p186, %p187
    %s189 = ssub.s32 %s14, %s21
    %p190 = scmp.eq.s32.totalorder %s189, 0
    %s192 = sadd.s32 %s191, 1
    %s193 = scalar_select %p190, %s191, %s192
    %p196 = pneg %p190
    %p197 = scmp.eq.s32.totalorder %s14, 1
    %p198 = por %p196, %p197
    %p199 = scmp.ne.s32.totalorder %s191, %s194
    %p200 = scmp.eq.s32.totalorder %s14, 0
    %p201 = por %p199, %p200
    %p202 = scmp.ne.s32.totalorder %s191, %s194
    %p203 = scmp.eq.s32.totalorder %s19, 1
    %p204 = por %p202, %p203
    %p205 = scmp.ne.s32.totalorder %s194, %s195
    %p206 = scmp.eq.s32.totalorder %s19, 0
    %p207 = por %p205, %p206
    %p208 = scmp.ne.s32.totalorder %s194, %s195
    %p209 = scmp.eq.s32.totalorder %s20, 1
    %p210 = por %p208, %p209
    %p212 = scmp.ne.s32.totalorder %s195, %s211
    %p213 = scmp.eq.s32.totalorder %s20, 0
    %p214 = por %p212, %p213
    %p215 = scmp.le.s32.totalorder 1, %s14
    %p216 = scmp.lt.s32.totalorder %s14, 3
    %p217 = pnand %p215, %p216
    %p218 = pneg %p217
    // Predicated region
    $region9: #{recover_block_forward.3} parent=5 // pred_check
      _
    $region10: #{recover_block_forward.3} parent=5 // pred_check_branch
      %220 = sbr.rel (%p217) target = $region12
    $region11: #{recover_block_forward.3} parent=5 // pred_region
      %s221 = ssub.s32 %s14, 1
      // Predicated region
      $region13: #{recover_block_forward.3} parent=11 // pred_check
        %p222 = pneg %p35
      $region14: #{recover_block_forward.3} parent=11 // pred_check_branch
        %224 = sbr.rel (%p222) target = $region16
      $region15: #{recover_block_forward.3} parent=11 // pred_region
        _
      $region16: #{recover_block_forward.3} parent=11 // pred_fallthru
        _
      // Predicated region
      $region17: #{recover_block_forward.3} parent=11 // pred_check
        %p225 = pneg %p134
      $region18: #{recover_block_forward.3} parent=11 // pred_check_branch
        %227 = sbr.rel (%p225) target = $region20
      $region19: #{recover_block_forward.3} parent=11 // pred_region
        _
      $region20: #{recover_block_forward.3} parent=11 // pred_fallthru
        _
      // Predicated region
      $region21: #{recover_block_forward.3} parent=11 // pred_check
        %p228 = pneg %p155
      $region22: #{recover_block_forward.3} parent=11 // pred_check_branch
        %230 = sbr.rel (%p228) target = $region24
      $region23: #{recover_block_forward.3} parent=11 // pred_region
        _
      $region24: #{recover_block_forward.3} parent=11 // pred_fallthru
        _
    $region12: #{recover_block_forward.3} parent=5 // pred_fallthru
      _
    %p231 = scmp.lt.s32.totalorder %s14, 2
    // Predicated region
    $region25: #{recover_block_forward.3} parent=5 // pred_check
      %p232 = pneg %p231
    $region26: #{recover_block_forward.3} parent=5 // pred_check_branch
      %234 = sbr.rel (%p232) target = $region28
    $region27: #{recover_block_forward.3} parent=5 // pred_region
      // Predicated region
      $region29: #{recover_block_forward.3} parent=27 // pred_check
        %p235 = pneg %p55
      $region30: #{recover_block_forward.3} parent=27 // pred_check_branch
        %237 = sbr.rel (%p235) target = $region32
      $region31: #{recover_block_forward.3} parent=27 // pred_region
        %s238 = smul.u32 2, %s14
        %p239 = scmp.lt.s32.totalorder %s238, 3
        %s240 = scalar_select %p239, %s238, 3
        %s241 = smul.addr %s240, 8
        %s242 = scalar_lea.vmem %s1, %s241
        %s243 = smul.u32 2, %s14
      $region32: #{recover_block_forward.3} parent=27 // pred_fallthru
        _
      // Predicated region
      $region33: #{recover_block_forward.3} parent=27 // pred_check
        %p244 = pneg %p81
      $region34: #{recover_block_forward.3} parent=27 // pred_check_branch
        %246 = sbr.rel (%p244) target = $region36
      $region35: #{recover_block_forward.3} parent=27 // pred_region
        %s247 = smul.u32 2, %s14
        %p248 = scmp.lt.s32.totalorder %s247, 3
        %s249 = scalar_select %p248, %s247, 3
        %s250 = scalar_lea.vmem %s2, %s249
        %s251 = smul.u32 2, %s14
      $region36: #{recover_block_forward.3} parent=27 // pred_fallthru
        _
      // Predicated region
      $region37: #{recover_block_forward.3} parent=27 // pred_check
        %p252 = pneg %p107
      $region38: #{recover_block_forward.3} parent=27 // pred_check_branch
        %254 = sbr.rel (%p252) target = $region40
      $region39: #{recover_block_forward.3} parent=27 // pred_region
        %s255 = smul.u32 2, %s14
        %p256 = scmp.lt.s32.totalorder %s255, 3
        %s257 = scalar_select %p256, %s255, 3
        %s258 = smul.addr %s257, 8
        %s259 = scalar_lea.vmem %s3, %s258
        %s260 = smul.u32 2, %s14
      $region40: #{recover_block_forward.3} parent=27 // pred_fallthru
        _
      // Predicated region
      $region41: #{recover_block_forward.3} parent=27 // pred_check
        %p261 = pneg %p175
      $region42: #{recover_block_forward.3} parent=27 // pred_check_branch
        %263 = sbr.rel (%p261) target = $region44
      $region43: #{recover_block_forward.3} parent=27 // pred_region
        %s264 = smul.u32 2, %s14
        %p265 = scmp.lt.s32.totalorder %s264, 3
        %s266 = scalar_select %p265, %s264, 3
        %s267 = smul.addr %s266, 2
        %s268 = smul.addr %s267, 8
        %s269 = scalar_lea.vmem %s6, %s268
        %s270 = smul.u32 2, %s14
      $region44: #{recover_block_forward.3} parent=27 // pred_fallthru
        _
    $region28: #{recover_block_forward.3} parent=5 // pred_fallthru
      _
    %p271 = scmp.le.s32.totalorder 1, %s14
    %p272 = scmp.lt.s32.totalorder %s14, 3
    %p273 = pnand %p271, %p272
    %p274 = pneg %p273
    // Predicated region
    $region45: #{recover_block_forward.3} parent=5 // pred_check
      _
    $region46: #{recover_block_forward.3} parent=5 // pred_check_branch
      %276 = sbr.rel (%p273) target = $region48
    $region47: #{recover_block_forward.3} parent=5 // pred_region
      %s277 = ssub.s32 %s14, 1
      %p278 = pneg %p35
      %p279 = pneg %p32
      %s280 = smul.u32 2, %s19
      %p281 = scmp.lt.s32.totalorder %s280, 3
      %s282 = scalar_select %p281, %s280, 3
      %s283 = smul.addr %s282, 8
      %s284 = scalar_lea.vmem %s1, %s283
      %p285 = pneg %p61
      %p286 = pneg %p58
      %s287 = smul.u32 2, %s19
      %p288 = scmp.lt.s32.totalorder %s287, 3
      %s289 = scalar_select %p288, %s287, 3
      %s290 = scalar_lea.vmem %s2, %s289
      %p291 = pneg %p87
      %p292 = pneg %p84
      %s293 = smul.u32 2, %s19
      %p294 = scmp.lt.s32.totalorder %s293, 3
      %s295 = scalar_select %p294, %s293, 3
      %s296 = smul.addr %s295, 8
      %s297 = scalar_lea.vmem %s3, %s296
      %p298 = pneg %p113
      %p299 = pneg %p110
      %p300 = pneg %p134
      %p301 = pneg %p131
      %p302 = pneg %p155
      %p303 = pneg %p152
      %s304 = smul.u32 2, %s19
      %p305 = scmp.lt.s32.totalorder %s304, 3
      %s306 = scalar_select %p305, %s304, 3
      %s307 = smul.addr %s306, 2
      %s308 = smul.addr %s307, 8
      %s309 = scalar_lea.vmem %s6, %s308
      %p310 = pneg %p181
      %p311 = pneg %p178
      %p312 = pneg %p207
      %p313 = pneg %p204
      %s314 = smul.u32 2, %s19
      %p315 = scmp.lt.s32.totalorder %s314, 3
      %s316 = scalar_select %p315, %s314, 3
      %s317 = smul.addr %s316, 2
      %s318 = smul.addr %s317, 8
      %s319 = scalar_lea.vmem %s7, %s318
      %s320 = smul.u32 2, %s19
      %p321 = scmp.lt.s32.totalorder %s320, 3
      %s322 = scalar_select %p321, %s320, 3
      %s323 = smul.addr %s322, 8
      %s324 = scalar_lea.vmem %s1, %s323
      %s325 = smul.u32 2, %s19
      %s326 = smul.u32 2, %s19
      %p327 = scmp.lt.s32.totalorder %s326, 3
      %s328 = scalar_select %p327, %s326, 3
      %s329 = scalar_lea.vmem %s2, %s328
      %s330 = smul.u32 2, %s19
      %s331 = smul.u32 2, %s19
      %p332 = scmp.lt.s32.totalorder %s331, 3
      %s333 = scalar_select %p332, %s331, 3
      %s334 = smul.addr %s333, 8
      %s335 = scalar_lea.vmem %s3, %s334
      %s336 = smul.u32 2, %s19
      %s337 = smul.u32 2, %s19
      %p338 = scmp.lt.s32.totalorder %s337, 3
      %s339 = scalar_select %p338, %s337, 3
      %s340 = smul.addr %s339, 2
      %s341 = smul.addr %s340, 8
      %s342 = scalar_lea.vmem %s6, %s341
      %s343 = smul.u32 2, %s19
      %s344 = smul.u32 2, %s19
      %p345 = scmp.lt.s32.totalorder %s344, 3
      %s346 = scalar_select %p345, %s344, 3
      %s347 = smul.addr %s346, 2
      %s348 = smul.addr %s347, 8
      %s349 = scalar_lea.vmem %s7, %s348
      %s350 = smul.u32 2, %s19
      %v351 = vld [vmem:[%s342] sm:$0xff]
      %v352 = vld [vmem:[%s342 + $0x8] sm:$0xff]
      %v353 = vld [vmem:[%s342 + $0x10] sm:$0xff]
      %v354 = vld [vmem:[%s342 + $0x18] sm:$0xff]
      %v355 = vld [vmem:[%s4] sm:$0xff]
      %v356 = vld [vmem:[%s4 + $0x8] sm:$0xff]
      %v357 = vld [vmem:[%s4 + $0x10] sm:$0xff]
      %v358 = vld [vmem:[%s4 + $0x18] sm:$0xff]
      %v359 = vld [vmem:[%s4 + $0x20] sm:$0xff]
      %v360 = vld [vmem:[%s4 + $0x28] sm:$0xff]
      %v361 = vld [vmem:[%s4 + $0x30] sm:$0xff]
      %v362 = vld [vmem:[%s4 + $0x38] sm:$0xff]
      %v363 = vld [vmem:[%s4 + $0x40] sm:$0xff]
      %v364 = vld [vmem:[%s4 + $0x48] sm:$0xff]
      %v365 = vld [vmem:[%s4 + $0x50] sm:$0xff]
      %v366 = vld [vmem:[%s4 + $0x58] sm:$0xff]
      %v367 = vld [vmem:[%s4 + $0x60] sm:$0xff]
      %v368 = vld [vmem:[%s4 + $0x68] sm:$0xff]
      %v369 = vld [vmem:[%s4 + $0x70] sm:$0xff]
      %v370 = vld [vmem:[%s4 + $0x78] sm:$0xff]
      %v371 = vld [vmem:[%s4 + $0x80] sm:$0xff]
      %v372 = vld [vmem:[%s4 + $0x88] sm:$0xff]
      %v373 = vld [vmem:[%s4 + $0x90] sm:$0xff]
      %v374 = vld [vmem:[%s4 + $0x98] sm:$0xff]
      %v375 = vld [vmem:[%s4 + $0xa0] sm:$0xff]
      %v376 = vld [vmem:[%s4 + $0xa8] sm:$0xff]
      %v377 = vld [vmem:[%s4 + $0xb0] sm:$0xff]
      %v378 = vld [vmem:[%s4 + $0xb8] sm:$0xff]
      %v379 = vld [vmem:[%s4 + $0xc0] sm:$0xff]
      %v380 = vld [vmem:[%s4 + $0xc8] sm:$0xff]
      %v381 = vld [vmem:[%s4 + $0xd0] sm:$0xff]
      %v382 = vld [vmem:[%s4 + $0xd8] sm:$0xff]
      %v383 = vld [vmem:[%s4 + $0xe0] sm:$0xff]
      %v384 = vld [vmem:[%s4 + $0xe8] sm:$0xff]
      %v385 = vld [vmem:[%s4 + $0xf0] sm:$0xff]
      %v386 = vld [vmem:[%s4 + $0xf8] sm:$0xff]
      %387 = vmatprep.subr.mxu0 0.0
      %388 = vmatpush1.msra.mxu0 %v355
      %389 = vmatprep.subr.mxu0 0.0
      %390 = vmatpush1.msra.mxu0 %v356
      %391 = vmatprep.subr.mxu0 0.0
      %392 = vmatpush1.msra.mxu0 %v357
      %393 = vmatprep.subr.mxu0 0.0
      %394 = vmatpush1.msra.mxu0 %v358
      %395 = vmatprep.subr.mxu0 0.0
      %396 = vmatpush1.msra.mxu0 %v359
      %397 = vmatprep.subr.mxu0 0.0
      %398 = vmatpush1.msra.mxu0 %v360
      %399 = vmatprep.subr.mxu0 0.0
      %400 = vmatpush1.msra.mxu0 %v361
      %401 = vmatprep.subr.mxu0 0.0
      %402 = vmatpush1.msra.mxu0 %v362
      %403 = vmatprep.subr.mxu0 0.0
      %404 = vmatpush1.msra.mxu0 %v363
      %405 = vmatprep.subr.mxu0 0.0
      %406 = vmatpush1.msra.mxu0 %v364
      %407 = vmatprep.subr.mxu0 0.0
      %408 = vmatpush1.msra.mxu0 %v365
      %409 = vmatprep.subr.mxu0 0.0
      %410 = vmatpush1.msra.mxu0 %v366
      %411 = vmatprep.subr.mxu0 0.0
      %412 = vmatpush1.msra.mxu0 %v367
      %413 = vmatprep.subr.mxu0 0.0
      %414 = vmatpush1.msra.mxu0 %v368
      %415 = vmatprep.subr.mxu0 0.0
      %416 = vmatpush1.msra.mxu0 %v369
      %417 = vmatprep.subr.mxu0 0.0
      %418 = vmatpush1.msra.mxu0 %v370
      %419 = vmatprep.subr.mxu0 0.0
      %420 = vmatpush1.msra.mxu0 %v371
      %421 = vmatprep.subr.mxu0 0.0
      %422 = vmatpush1.msra.mxu0 %v372
      %423 = vmatprep.subr.mxu0 0.0
      %424 = vmatpush1.msra.mxu0 %v373
      %425 = vmatprep.subr.mxu0 0.0
      %426 = vmatpush1.msra.mxu0 %v374
      %427 = vmatprep.subr.mxu0 0.0
      %428 = vmatpush1.msra.mxu0 %v375
      %429 = vmatprep.subr.mxu0 0.0
      %430 = vmatpush1.msra.mxu0 %v376
      %431 = vmatprep.subr.mxu0 0.0
      %432 = vmatpush1.msra.mxu0 %v377
      %433 = vmatprep.subr.mxu0 0.0
      %434 = vmatpush1.msra.mxu0 %v378
      %435 = vmatprep.subr.mxu0 0.0
      %436 = vmatpush1.msra.mxu0 %v379
      %437 = vmatprep.subr.mxu0 0.0
      %438 = vmatpush1.msra.mxu0 %v380
      %439 = vmatprep.subr.mxu0 0.0
      %440 = vmatpush1.msra.mxu0 %v381
      %441 = vmatprep.subr.mxu0 0.0
      %442 = vmatpush1.msra.mxu0 %v382
      %443 = vmatprep.subr.mxu0 0.0
      %444 = vmatpush1.msra.mxu0 %v383
      %445 = vmatprep.subr.mxu0 0.0
      %446 = vmatpush1.msra.mxu0 %v384
      %447 = vmatprep.subr.mxu0 0.0
      %448 = vmatpush1.msra.mxu0 %v385
      %449 = vmatprep.subr.mxu0 0.0
      %450 = vmatpush1.msra.mxu0 %v386
      %451 = vmatprep.mubr.f32.mxu0 %v352
      %452 = vmatmul.mubr.f32.gmra.mrb[0].mxu0 %v351
      %v453 = vpop.f32.mrb[0].mxu0
      %v454 = vadd.f32 0.0, %v453
      %v455 = vpop.f32.mrb[0].mxu0
      %456 = vmatprep.mubr.f32.mxu0 %v354
      %457 = vmatmul.mubr.f32.gmra.mrb[0].mxu0 %v353
      %v458 = vpop.f32.mrb[0].mxu0
      %v459 = vadd.f32 0.0, %v458
      %v460 = vpop.f32.mrb[0].mxu0
      %461 = vdwg.mxu0
      %s462 = sld [smem:[#allocation2]]
      %v463 = vld [vmem:[%s329] sm:$0x1]
      %v464 = vld [vmem:[%s329 + $0x1] sm:$0x1]
      %v465 = vstv %s462
      %v466 = vmul.f32 %v465, %v463
      %v467 = vmul.f32 %v465, %v464
      %469 = vset.pattern.permute.xlu0 0
      %470 = vperm.xlu0 %469, %v466
      %v471 = vpop.permute.xlu0 %470
      %v473 = vlaneseq
      %v474 = vshrl.u32 %v473, 7
      %v475 = vsub.s32 0, %v474
      %v476 = vrot.slane %v471, %v475
      %478 = vset.pattern.permute.xlu0 0
      %479 = vperm.xlu0 %478, %v467
      %v480 = vpop.permute.xlu0 %479
      %v482 = vlaneseq
      %v483 = vshrl.u32 %v482, 7
      %v484 = vsub.s32 0, %v483
      %v485 = vrot.slane %v480, %v484
      %v486 = vsub.f32 %v463, %v476
      %v487 = vsub.f32 %v464, %v485
      %v488 = vmax.f32 %v486, 0.0
      %v489 = vmax.f32 %v487, 0.0
      %v490 = vld [vmem:[%s324] sm:$0xff]
      %v491 = vld [vmem:[%s324 + $0x8] sm:$0xff]
      %v494 = vlaneseq
      %v495 = vshrl.u32 %v494, 7
      %v496 = vsub.s32 0, %v495
      %v497 = vrot.slane %v488, %v496
      %v498 = vlaneseq
      %v499 = vshrl.u32 %v498, 7
      %v500 = vsub.s32 0, %v499
      %v501 = vrot.slane %v489, %v500
      %v504 = vmul.f32 %v490, %v497
      %v505 = vmul.f32 %v491, %v501
      %v506 = vld [vmem:[%s335] sm:$0xff]
      %v507 = vld [vmem:[%s335 + $0x8] sm:$0xff]
      %509 = vset.pattern.permute.xlu0 0
      %510 = vperm.xlu0 %509, %v504
      %v511 = vpop.permute.xlu0 %510
      %514 = vset.pattern.permute.xlu0 0
      %515 = vperm.xlu0 %514, %v505
      %v516 = vpop.permute.xlu0 %515
      %v518 = vlaneseq
      %v519 = vshrl.u32 %v518, 7
      %v520 = vsub.s32 0, %v519
      %v521 = vrot.slane %v506, %v520
      %v522 = vlaneseq
      %v523 = vshrl.u32 %v522, 7
      %v524 = vsub.s32 0, %v523
      %v525 = vrot.slane %v507, %v524
      %v526 = vmul.f32 %v511, %v521
      %v527 = vmul.f32 %v516, %v525
      %v528 = vadd.f32 %v526, 0.0
      %v529 = vadd.f32 %v527, 0.0
      %530 = vset.pattern.permute.xlu0 1
      %531 = vperm.xlu0 %530, %v504
      %v532 = vpop.permute.xlu0 %531
      %534 = vset.pattern.permute.xlu0 1
      %535 = vperm.xlu0 %534, %v505
      %v536 = vpop.permute.xlu0 %535
      %v538 = vlaneseq
      %v539 = vshrl.u32 %v538, 7
      %v540 = vsub.s32 1, %v539
      %v541 = vrot.slane %v506, %v540
      %v542 = vlaneseq
      %v543 = vshrl.u32 %v542, 7
      %v544 = vsub.s32 1, %v543
      %v545 = vrot.slane %v507, %v544
      %v546 = vmul.f32 %v532, %v541
      %v547 = vmul.f32 %v536, %v545
      %v548 = vadd.f32 %v528, %v546
      %v549 = vadd.f32 %v529, %v547
      %550 = vset.pattern.permute.xlu0 2
      %551 = vperm.xlu0 %550, %v504
      %v552 = vpop.permute.xlu0 %551
      %554 = vset.pattern.permute.xlu0 2
      %555 = vperm.xlu0 %554, %v505
      %v556 = vpop.permute.xlu0 %555
      %v558 = vlaneseq
      %v559 = vshrl.u32 %v558, 7
      %v560 = vsub.s32 2, %v559
      %v561 = vrot.slane %v506, %v560
      %v562 = vlaneseq
      %v563 = vshrl.u32 %v562, 7
      %v564 = vsub.s32 2, %v563
      %v565 = vrot.slane %v507, %v564
      %v566 = vmul.f32 %v552, %v561
      %v567 = vmul.f32 %v556, %v565
      %v568 = vadd.f32 %v548, %v566
      %v569 = vadd.f32 %v549, %v567
      %570 = vset.pattern.permute.xlu0 3
      %571 = vperm.xlu0 %570, %v504
      %v572 = vpop.permute.xlu0 %571
      %574 = vset.pattern.permute.xlu0 3
      %575 = vperm.xlu0 %574, %v505
      %v576 = vpop.permute.xlu0 %575
      %v578 = vlaneseq
      %v579 = vshrl.u32 %v578, 7
      %v580 = vsub.s32 3, %v579
      %v581 = vrot.slane %v506, %v580
      %v582 = vlaneseq
      %v583 = vshrl.u32 %v582, 7
      %v584 = vsub.s32 3, %v583
      %v585 = vrot.slane %v507, %v584
      %v586 = vmul.f32 %v572, %v581
      %v587 = vmul.f32 %v576, %v585
      %v588 = vadd.f32 %v568, %v586
      %v589 = vadd.f32 %v569, %v587
      %590 = vset.pattern.permute.xlu0 4
      %591 = vperm.xlu0 %590, %v504
      %v592 = vpop.permute.xlu0 %591
      %594 = vset.pattern.permute.xlu0 4
      %595 = vperm.xlu0 %594, %v505
      %v596 = vpop.permute.xlu0 %595
      %v598 = vlaneseq
      %v599 = vshrl.u32 %v598, 7
      %v600 = vsub.s32 4, %v599
      %v601 = vrot.slane %v506, %v600
      %v602 = vlaneseq
      %v603 = vshrl.u32 %v602, 7
      %v604 = vsub.s32 4, %v603
      %v605 = vrot.slane %v507, %v604
      %v606 = vmul.f32 %v592, %v601
      %v607 = vmul.f32 %v596, %v605
      %v608 = vadd.f32 %v588, %v606
      %v609 = vadd.f32 %v589, %v607
      %610 = vset.pattern.permute.xlu0 5
      %611 = vperm.xlu0 %610, %v504
      %v612 = vpop.permute.xlu0 %611
      %614 = vset.pattern.permute.xlu0 5
      %615 = vperm.xlu0 %614, %v505
      %v616 = vpop.permute.xlu0 %615
      %v618 = vlaneseq
      %v619 = vshrl.u32 %v618, 7
      %v620 = vsub.s32 5, %v619
      %v621 = vrot.slane %v506, %v620
      %v622 = vlaneseq
      %v623 = vshrl.u32 %v622, 7
      %v624 = vsub.s32 5, %v623
      %v625 = vrot.slane %v507, %v624
      %v626 = vmul.f32 %v612, %v621
      %v627 = vmul.f32 %v616, %v625
      %v628 = vadd.f32 %v608, %v626
      %v629 = vadd.f32 %v609, %v627
      %630 = vset.pattern.permute.xlu0 6
      %631 = vperm.xlu0 %630, %v504
      %v632 = vpop.permute.xlu0 %631
      %634 = vset.pattern.permute.xlu0 6
      %635 = vperm.xlu0 %634, %v505
      %v636 = vpop.permute.xlu0 %635
      %v638 = vlaneseq
      %v639 = vshrl.u32 %v638, 7
      %v640 = vsub.s32 6, %v639
      %v641 = vrot.slane %v506, %v640
      %v642 = vlaneseq
      %v643 = vshrl.u32 %v642, 7
      %v644 = vsub.s32 6, %v643
      %v645 = vrot.slane %v507, %v644
      %v646 = vmul.f32 %v632, %v641
      %v647 = vmul.f32 %v636, %v645
      %v648 = vadd.f32 %v628, %v646
      %v649 = vadd.f32 %v629, %v647
      %650 = vset.pattern.permute.xlu0 7
      %651 = vperm.xlu0 %650, %v504
      %v652 = vpop.permute.xlu0 %651
      %654 = vset.pattern.permute.xlu0 7
      %655 = vperm.xlu0 %654, %v505
      %v656 = vpop.permute.xlu0 %655
      %v658 = vlaneseq
      %v659 = vshrl.u32 %v658, 7
      %v660 = vsub.s32 7, %v659
      %v661 = vrot.slane %v506, %v660
      %v662 = vlaneseq
      %v663 = vshrl.u32 %v662, 7
      %v664 = vsub.s32 7, %v663
      %v665 = vrot.slane %v507, %v664
      %v666 = vmul.f32 %v652, %v661
      %v667 = vmul.f32 %v656, %v665
      %v668 = vadd.f32 %v648, %v666
      %v669 = vadd.f32 %v649, %v667
      %v670 = vsub.f32 %v668, %v454
      %v671 = vsub.f32 %v669, %v459
      %v672 = vld [vmem:[%s5] sm:$0xff]
      %v673 = vld [vmem:[%s5 + $0x8] sm:$0xff]
      %v674 = vld [vmem:[%s5 + $0x10] sm:$0xff]
      %v675 = vld [vmem:[%s5 + $0x18] sm:$0xff]
      %v676 = vld [vmem:[%s5 + $0x20] sm:$0xff]
      %v677 = vld [vmem:[%s5 + $0x28] sm:$0xff]
      %v678 = vld [vmem:[%s5 + $0x30] sm:$0xff]
      %v679 = vld [vmem:[%s5 + $0x38] sm:$0xff]
      %v680 = vld [vmem:[%s5 + $0x40] sm:$0xff]
      %v681 = vld [vmem:[%s5 + $0x48] sm:$0xff]
      %v682 = vld [vmem:[%s5 + $0x50] sm:$0xff]
      %v683 = vld [vmem:[%s5 + $0x58] sm:$0xff]
      %v684 = vld [vmem:[%s5 + $0x60] sm:$0xff]
      %v685 = vld [vmem:[%s5 + $0x68] sm:$0xff]
      %v686 = vld [vmem:[%s5 + $0x70] sm:$0xff]
      %v687 = vld [vmem:[%s5 + $0x78] sm:$0xff]
      %vm688 = vcmask 523264
      %v690 = vsel %vm688, %v670, 0
      %v693 = vsel %vm688, %v671, 0
      %695 = vmatprep.subr.mxu0 %v673
      %696 = vmatpush1.msra.mxu0 %v672
      %697 = vmatprep.subr.mxu0 %v675
      %698 = vmatpush1.msra.mxu0 %v674
      %699 = vmatprep.subr.mxu0 %v677
      %700 = vmatpush1.msra.mxu0 %v676
      %701 = vmatprep.subr.mxu0 %v679
      %702 = vmatpush1.msra.mxu0 %v678
      %703 = vmatprep.subr.mxu0 %v681
      %704 = vmatpush1.msra.mxu0 %v680
      %705 = vmatprep.subr.mxu0 %v683
      %706 = vmatpush1.msra.mxu0 %v682
      %707 = vmatprep.subr.mxu0 %v685
      %708 = vmatpush1.msra.mxu0 %v684
      %709 = vmatprep.subr.mxu0 %v687
      %710 = vmatpush1.msra.mxu0 %v686
      %711 = vmatprep.subr.mxu0 0.0
      %712 = vmatpush1.msra.mxu0 0.0
      %713 = vmatprep.subr.mxu0 0.0
      %714 = vmatpush1.msra.mxu0 0.0
      %715 = vmatprep.subr.mxu0 0.0
      %716 = vmatpush1.msra.mxu0 0.0
      %717 = vmatprep.subr.mxu0 0.0
      %718 = vmatpush1.msra.mxu0 0.0
      %719 = vmatprep.subr.mxu0 0.0
      %720 = vmatpush1.msra.mxu0 0.0
      %721 = vmatprep.subr.mxu0 0.0
      %722 = vmatpush1.msra.mxu0 0.0
      %723 = vmatprep.subr.mxu0 0.0
      %724 = vmatpush1.msra.mxu0 0.0
      %725 = vmatprep.subr.mxu0 0.0
      %726 = vmatpush1.msra.mxu0 0.0
      %727 = vmatprep.subr.mxu0 0.0
      %728 = vmatpush1.msra.mxu0 0.0
      %729 = vmatprep.subr.mxu0 0.0
      %730 = vmatpush1.msra.mxu0 0.0
      %731 = vmatprep.subr.mxu0 0.0
      %732 = vmatpush1.msra.mxu0 0.0
      %733 = vmatprep.subr.mxu0 0.0
      %734 = vmatpush1.msra.mxu0 0.0
      %735 = vmatprep.subr.mxu0 0.0
      %736 = vmatpush1.msra.mxu0 0.0
      %737 = vmatprep.subr.mxu0 0.0
      %738 = vmatpush1.msra.mxu0 0.0
      %739 = vmatprep.subr.mxu0 0.0
      %740 = vmatpush1.msra.mxu0 0.0
      %741 = vmatprep.subr.mxu0 0.0
      %742 = vmatpush1.msra.mxu0 0.0
      %743 = vmatprep.subr.mxu0 0.0
      %744 = vmatpush1.msra.mxu0 0.0
      %745 = vmatprep.subr.mxu0 0.0
      %746 = vmatpush1.msra.mxu0 0.0
      %747 = vmatprep.subr.mxu0 0.0
      %748 = vmatpush1.msra.mxu0 0.0
      %749 = vmatprep.subr.mxu0 0.0
      %750 = vmatpush1.msra.mxu0 0.0
      %751 = vmatprep.subr.mxu0 0.0
      %752 = vmatpush1.msra.mxu0 0.0
      %753 = vmatprep.subr.mxu0 0.0
      %754 = vmatpush1.msra.mxu0 0.0
      %755 = vmatprep.subr.mxu0 0.0
      %756 = vmatpush1.msra.mxu0 0.0
      %757 = vmatprep.subr.mxu0 0.0
      %758 = vmatpush1.msra.mxu0 0.0
      %759 = vmatprep.mubr.f32.mxu0 0.0
      %760 = vmatmul.mubr.f32.gmra.mrb[0].mxu0 %v690
      %v761 = vpop.f32.mrb[0].mxu0
      %v762 = vadd.f32 0.0, %v761
      %v763 = vpop.f32.mrb[0].mxu0
      %v764 = vadd.f32 0.0, %v763
      %765 = vmatprep.mubr.f32.mxu0 0.0
      %766 = vmatmul.mubr.f32.gmra.mrb[0].mxu0 %v693
      %v767 = vpop.f32.mrb[0].mxu0
      %v768 = vadd.f32 0.0, %v767
      %v769 = vpop.f32.mrb[0].mxu0
      %v770 = vadd.f32 0.0, %v769
      %771 = vdwg.mxu0
      %v772 = vadd.f32 %v351, %v762
      %v773 = vadd.f32 %v352, %v764
      %v774 = vadd.f32 %v353, %v768
      %v775 = vadd.f32 %v354, %v770
      %776 = vst [vmem:[%s349] sm:$0xff] %v772
      %777 = vst [vmem:[%s349 + $0x8] sm:$0xff] %v773
      %778 = vst [vmem:[%s349 + $0x10] sm:$0xff] %v774
      %779 = vst [vmem:[%s349 + $0x18] sm:$0xff] %v775
      %s780 = smul.u32 2, %s19
      %p781 = scmp.lt.s32.totalorder %s780, 3
      %s782 = scalar_select %p781, %s780, 3
      %s783 = smul.addr %s782, 2
      %s784 = smul.addr %s783, 8
      %s785 = scalar_lea.vmem %s7, %s784
      // Predicated region
      $region49: #{recover_block_forward.3} parent=47 // pred_check
        %p786 = pneg %p204
      $region50: #{recover_block_forward.3} parent=47 // pred_check_branch
        %788 = sbr.rel (%p786) target = $region52
      $region51: #{recover_block_forward.3} parent=47 // pred_region
        %s789 = smul.u32 2, %s19
      $region52: #{recover_block_forward.3} parent=47 // pred_fallthru
        _
    $region48: #{recover_block_forward.3} parent=5 // pred_fallthru
      _
    %p790 = scmp.le.s32.totalorder 2, %s14
    // Predicated region
    $region53: #{recover_block_forward.3} parent=5 // pred_check
      %p791 = pneg %p790
    $region54: #{recover_block_forward.3} parent=5 // pred_check_branch
      %793 = sbr.rel (%p791) target = $region56
    $region55: #{recover_block_forward.3} parent=5 // pred_region
      %s794 = ssub.s32 %s14, 2
      // Predicated region
      $region57: #{recover_block_forward.3} parent=55 // pred_check
        %p795 = pneg %p210
      $region58: #{recover_block_forward.3} parent=55 // pred_check_branch
        %797 = sbr.rel (%p795) target = $region60
      $region59: #{recover_block_forward.3} parent=55 // pred_region
        %s798 = smul.u32 2, %s20
        %p799 = scmp.lt.s32.totalorder %s798, 3
        %s800 = scalar_select %p799, %s798, 3
        %s801 = smul.addr %s800, 2
        %s802 = smul.addr %s801, 8
        %s803 = scalar_lea.vmem %s7, %s802
      $region60: #{recover_block_forward.3} parent=55 // pred_fallthru
        _
    $region56: #{recover_block_forward.3} parent=5 // pred_fallthru
      _
  $region6: #{recover_block_forward.3} parent=0 // loop_footer
    %s18 = sadd.s32 1, %s14
  $region7: #{recover_block_forward.3} parent=0 // loop_footer_branch
    %13 = sbr.rel target = $region3
  $region8: #{recover_block_forward.3} parent=0 // loop_exit
    _

</llo_original>
